<compile_context>
chip_gen: v7x
topology: tpu7x:2x2x1
jax: 0.10.0
libtpu: 0.0.40
codegen_flags: <defaults>
</compile_context>

<pallas_src>
import functools

import jax
import jax.numpy as jnp
from jax import lax
from jax.experimental import pallas as pl
from jax.experimental.pallas import tpu as pltpu

BN_EPS = 1e-5

_TAPS = ((-1, -1), (-1, 0), (-1, 1),
         (0, -1), (0, 0), (0, 1),
         (1, -1), (1, 0), (1, 1))


def _fire_kernel(x_ref, ws_ref, bs_ref, wcat_ref, bcat_ref, mask_ref,
                 out_ref, patch_ref, *, W):
    # x_ref:     (1, M, Cin)   bf16, block of whole images, pixels on sublanes
    # ws_ref:    (Cin, Cs)     bf16 squeeze 1x1 weight (BN-folded)
    # bs_ref:    (1, Cs)       f32 squeeze bias (BN-folded)
    # wcat_ref:  (9*Cs, Cout)  bf16 fused expand1x1+expand3x3 weight (BN-folded)
    # bcat_ref:  (1, Cout)     f32 fused expand bias (BN-folded)
    # mask_ref:  (8, M, 1)     f32 {0,1} border masks, 8 non-center taps
    # out_ref:   (1, M, Cout)  f32 output (channels already concatenated)
    # patch_ref: (M, 9*Cs)     bf16 VMEM scratch: im2col patch matrix
    M = x_ref.shape[1]
    Cs = ws_ref.shape[1]

    # squeeze: 1x1 conv == per-pixel matmul over channels, bias once, ReLU.
    s = jnp.dot(x_ref[0], ws_ref[...], preferred_element_type=jnp.float32)
    s = jnp.maximum(s + bs_ref[...], 0.0)                      # (M, Cs) f32

    # im2col over the 3x3 neighbourhood: tap (dy, dx) is a sublane roll of s
    # by -(dy*W + dx) times its precomputed border mask, written into its lane
    # slice of the persistent scratch (no concatenate, no padded buffer).
    mi = 0
    for t, (dy, dx) in enumerate(_TAPS):
        if dy == 0 and dx == 0:
            patch_ref[:, t * Cs:(t + 1) * Cs] = s.astype(patch_ref.dtype)
        else:
            d = dy * W + dx
            shifted = pltpu.roll(s, (-d) % M, 0)               # out[r] = s[r+d]
            patch_ref[:, t * Cs:(t + 1) * Cs] = (
                shifted * mask_ref[mi]).astype(patch_ref.dtype)
            mi += 1

    # fused expand1x1 + expand3x3 (+ bias + ReLU) in a single MXU matmul;
    # output channels come out already concatenated and lane-contiguous.
    out = jnp.dot(patch_ref[...], wcat_ref[...],
                  preferred_element_type=jnp.float32)
    out = jnp.maximum(out + bcat_ref[...], 0.0)                # (M, Cout)
    out_ref[0] = out.astype(out_ref.dtype)


def _build_tap_masks(H, W, images_per_block):
    """(8, ib*H*W, 1) f32 {0,1} masks for the 8 non-center 3x3 taps."""
    r = jnp.arange(H * W, dtype=jnp.int32)
    h = r // W
    w = r % W
    masks = []
    for dy, dx in _TAPS:
        if dy == 0 and dx == 0:
            continue
        valid = (h + dy >= 0) & (h + dy < H) & (w + dx >= 0) & (w + dx < W)
        masks.append(valid)
    m = jnp.stack(masks, axis=0).astype(jnp.float32)           # (8, H*W)
    m = jnp.tile(m, (1, images_per_block))                     # (8, ib*H*W)
    return m[:, :, None]                                       # (8, ib*H*W, 1)


def fire_bn_pallas(x_nchw, params, *, images_per_block=1):
    """x_nchw: (N, Cin, H, W) float32.  Returns (N, Ce1+Ce3, H, W) float32."""
    N, Cin, H, W = x_nchw.shape
    ib = images_per_block
    assert N % ib == 0, (N, ib)
    NB = N // ib
    M = ib * H * W

    ws, bs = params["ws"], params["bs"]          # (Cin, Cs), (1, Cs)
    we1, be1 = params["we1"], params["be1"]      # (Cs, Ce1), (1, Ce1)
    w3, b3 = params["w3"], params["b3"]          # (3, 3, Cs, Ce3), (1, Ce3)
    Cs = ws.shape[1]
    Ce1 = we1.shape[1]
    Ce3 = b3.shape[1]
    Cout = Ce1 + Ce3

    # Fuse the two expand convs into one (9*Cs, Cout) weight: the 1x1 weight
    # lives only in the center-tap (dy=dx=0) rows; the 3x3 HWIO weight
    # flattens so row t*Cs+c matches im2col column ordering (t = ky*3+kx).
    # TODO(synk): at production shapes, if the MXU is the saturating slot and
    #             Ce1 % 128 == 0, split this back into two matmuls to skip the
    #             zero-block MACs.
    w3_flat = w3.reshape(9 * Cs, Ce3)
    w1_blk = jnp.zeros((9 * Cs, Ce1), w3.dtype).at[4 * Cs:5 * Cs, :].set(we1)
    w_cat = jnp.concatenate([w1_blk, w3_flat], axis=1)         # (9*Cs, Cout)
    b_cat = jnp.concatenate([be1, b3], axis=1)                 # (1, Cout)

    # bf16 MXU operands; f32 accumulation happens inside the kernel.
    ws_bf = ws.astype(jnp.bfloat16)
    w_cat_bf = w_cat.astype(jnp.bfloat16)

    # Layout: NCHW -> NHWC -> (N//ib, ib*H*W, Cin) so the kernel never
    # reshapes across the (8,128) tile boundary.  Done once in XLA.
    x_flat = jnp.transpose(x_nchw, (0, 2, 3, 1)).reshape(NB, M, Cin)
    x_flat = x_flat.astype(jnp.bfloat16)

    masks = _build_tap_masks(H, W, ib)                         # (8, M, 1)

    # Rough per-step VMEM budget: double-buffered I/O blocks + patch scratch +
    # f32 intermediates + constants; keeps v5e's 16 MiB scoped default from
    # choking on bigger shapes while staying under every chip's physical VMEM.
    est = (2 * M * Cin * 2 + 2 * M * Cout * 4 + M * 9 * Cs * 2
           + 4 * M * Cs * 4 + 8 * M * 4
           + (Cin * Cs + 9 * Cs * Cout) * 2 + (Cs + Cout) * 4)
    vmem_limit = int(min(max(2 * est, 32 * 1024 * 1024), 64 * 1024 * 1024))

    out_flat = pl.pallas_call(
        functools.partial(_fire_kernel, W=W),
        out_shape=jax.ShapeDtypeStruct((NB, M, Cout), jnp.float32),
        grid_spec=pltpu.PrefetchScalarGridSpec(
            num_scalar_prefetch=0,
            grid=(NB,),
            in_specs=[
                pl.BlockSpec((1, M, Cin), lambda n: (n, 0, 0)),
                pl.BlockSpec((Cin, Cs), lambda n: (0, 0)),
                pl.BlockSpec((1, Cs), lambda n: (0, 0)),
                pl.BlockSpec((9 * Cs, Cout), lambda n: (0, 0)),
                pl.BlockSpec((1, Cout), lambda n: (0, 0)),
                pl.BlockSpec((8, M, 1), lambda n: (0, 0, 0)),
            ],
            out_specs=pl.BlockSpec((1, M, Cout), lambda n: (n, 0, 0)),
            scratch_shapes=[pltpu.VMEM((M, 9 * Cs), jnp.bfloat16)],
        ),
        compiler_params=pltpu.CompilerParams(
            dimension_semantics=("parallel",),
            vmem_limit_bytes=vmem_limit),
    )(x_flat, ws_bf, bs, w_cat_bf, b_cat, masks)

    out_nhwc = out_flat.reshape(N, H, W, Cout)
    return jnp.transpose(out_nhwc, (0, 3, 1, 2))               # NHWC -> NCHW


def _fold_bn(w_lastout, b, gamma, beta, mean, var):
    """Fold eval-mode BatchNorm into conv weight/bias (out channel last)."""
    scale = gamma / jnp.sqrt(var + BN_EPS)
    w_fold = w_lastout * scale          # broadcast over last (output) axis
    b_fold = (b - mean) * scale + beta
    return w_fold, b_fold


def init_params(key, inplanes, squeeze_planes, expand1x1_planes, expand3x3_planes):
    ks = jax.random.split(key, 12)

    # Conv weights (PyTorch layout OIHW), biases, BN params — deterministic.
    w_sq = jax.random.normal(ks[0], (squeeze_planes, inplanes, 1, 1), jnp.float32) * 0.1
    b_sq = jax.random.normal(ks[1], (squeeze_planes,), jnp.float32) * 0.1
    w_e1 = jax.random.normal(ks[2], (expand1x1_planes, squeeze_planes, 1, 1), jnp.float32) * 0.1
    b_e1 = jax.random.normal(ks[3], (expand1x1_planes,), jnp.float32) * 0.1
    w_e3 = jax.random.normal(ks[4], (expand3x3_planes, squeeze_planes, 3, 3), jnp.float32) * 0.1
    b_e3 = jax.random.normal(ks[5], (expand3x3_planes,), jnp.float32) * 0.1

    def bn(k, c):
        k1, k2, k3, k4 = jax.random.split(k, 4)
        gamma = 1.0 + 0.1 * jax.random.normal(k1, (c,), jnp.float32)
        beta = 0.1 * jax.random.normal(k2, (c,), jnp.float32)
        mean = 0.1 * jax.random.normal(k3, (c,), jnp.float32)
        var = jnp.abs(1.0 + 0.1 * jax.random.normal(k4, (c,), jnp.float32))
        return gamma, beta, mean, var

    g_s, bt_s, m_s, v_s = bn(ks[6], squeeze_planes)
    g_1, bt_1, m_1, v_1 = bn(ks[7], expand1x1_planes)
    g_3, bt_3, m_3, v_3 = bn(ks[8], expand3x3_planes)

    # Output channel last, then fold BN.
    ws = jnp.transpose(w_sq[:, :, 0, 0], (1, 0))               # (Cin, Cs)
    ws, bs = _fold_bn(ws, b_sq, g_s, bt_s, m_s, v_s)

    we1 = jnp.transpose(w_e1[:, :, 0, 0], (1, 0))              # (Cs, Ce1)
    we1, be1 = _fold_bn(we1, b_e1, g_1, bt_1, m_1, v_1)

    w3 = jnp.transpose(w_e3, (2, 3, 1, 0))                     # (3,3,Cs,Ce3) HWIO
    w3, b3 = _fold_bn(w3, b_e3, g_3, bt_3, m_3, v_3)

    return {
        "ws": ws, "bs": bs.reshape(1, -1),
        "we1": we1, "be1": be1.reshape(1, -1),
        "w3": w3, "b3": b3.reshape(1, -1),
    }


def fire_bn_reference(x_nchw, params):
    """Pure-JAX reference mirroring the kernel's bf16-operand / f32-acc path."""
    x = jnp.transpose(x_nchw, (0, 2, 3, 1)).astype(jnp.bfloat16)   # NHWC bf16
    dn = ("NHWC", "HWIO", "NHWC")

    ws = params["ws"].astype(jnp.bfloat16)[None, None]             # (1,1,Cin,Cs)
    s = lax.conv_general_dilated(x, ws, (1, 1), "SAME", dimension_numbers=dn,
                                 preferred_element_type=jnp.float32)
    s = jnp.maximum(s + params["bs"].reshape(1, 1, 1, -1), 0.0)
    s = s.astype(jnp.bfloat16)

    we1 = params["we1"].astype(jnp.bfloat16)[None, None]
    x1 = lax.conv_general_dilated(s, we1, (1, 1), "SAME", dimension_numbers=dn,
                                  preferred_element_type=jnp.float32)
    x1 = jnp.maximum(x1 + params["be1"].reshape(1, 1, 1, -1), 0.0)

    w3 = params["w3"].astype(jnp.bfloat16)
    x2 = lax.conv_general_dilated(s, w3, (1, 1), "SAME", dimension_numbers=dn,
                                  preferred_element_type=jnp.float32)
    x2 = jnp.maximum(x2 + params["b3"].reshape(1, 1, 1, -1), 0.0)

    out = jnp.concatenate([x1, x2], axis=-1)
    return jnp.transpose(out, (0, 3, 1, 2))


if __name__ == "__main__":
    # Small FireBN: inplanes=4, squeeze=8, expand1x1=8, expand3x3=8
    N, Cin, H, W = 2, 4, 16, 16
    Cs, Ce1, Ce3 = 8, 8, 8

    key = jax.random.PRNGKey(0)
    k_x, k_p = jax.random.split(key)
    x = jax.random.normal(k_x, (N, Cin, H, W), jnp.float32)
    params = init_params(k_p, Cin, Cs, Ce1, Ce3)

    ref = fire_bn_reference(x, params)

    out = jax.block_until_ready(fire_bn_pallas(x, params))
    assert out.shape == (N, Ce1 + Ce3, H, W), out.shape
    assert jnp.allclose(out, ref, atol=2e-3, rtol=2e-3), (
        float(jnp.max(jnp.abs(out - ref))))

    # Image-folding path (v5e/v6e small-image step-overhead amortization):
    # two whole images per grid step, one bigger matmul.
    out2 = jax.block_until_ready(fire_bn_pallas(x, params, images_per_block=2))
    assert jnp.allclose(out2, ref, atol=2e-3, rtol=2e-3), (
        float(jnp.max(jnp.abs(out2 - ref))))

    print("KERNEL_OK")
</pallas_src>

<mosaic_0001>
module attributes {stable_mosaic.version = 11 : i64} {
  func.func @_fire_kernel(%arg0: i32, %arg1: memref<1x256x4xbf16, #tpu.memory_space<vmem>>, %arg2: memref<4x8xbf16, #tpu.memory_space<vmem>>, %arg3: memref<1x8xf32, #tpu.memory_space<vmem>>, %arg4: memref<72x16xbf16, #tpu.memory_space<vmem>>, %arg5: memref<1x16xf32, #tpu.memory_space<vmem>>, %arg6: memref<8x256x1xf32, #tpu.memory_space<vmem>>, %arg7: memref<1x256x16xf32, #tpu.memory_space<vmem>>, %arg8: memref<256x72xbf16, #tpu.memory_space<vmem>>) attributes {dimension_semantics = [#tpu.dimension_semantics<parallel>], iteration_bounds = array<i64: 2>, scalar_prefetch = 0 : i64, scratch_operands = 1 : i64, tpu.core_type = #tpu.core_type<tc>, window_params = [{transform_indices = @transform_0, window_bounds = array<i64: 1, 256, 4>}, {pipeline_mode = #tpu.pipeline_mode<synchronous>, transform_indices = @transform_1, window_bounds = array<i64: 4, 8>}, {pipeline_mode = #tpu.pipeline_mode<synchronous>, transform_indices = @transform_2, window_bounds = array<i64: 1, 8>}, {pipeline_mode = #tpu.pipeline_mode<synchronous>, transform_indices = @transform_3, window_bounds = array<i64: 72, 16>}, {pipeline_mode = #tpu.pipeline_mode<synchronous>, transform_indices = @transform_4, window_bounds = array<i64: 1, 16>}, {pipeline_mode = #tpu.pipeline_mode<synchronous>, transform_indices = @transform_5, window_bounds = array<i64: 8, 256, 1>}, {transform_indices = @transform_6, window_bounds = array<i64: 1, 256, 16>}]} {
    %c0 = arith.constant 0 : index
    %c0_0 = arith.constant 0 : index
    %c0_1 = arith.constant 0 : index
    %0 = vector.load %arg1[%c0, %c0_0, %c0_1] : memref<1x256x4xbf16, #tpu.memory_space<vmem>>, vector<1x256x4xbf16>
    %1 = vector.shape_cast %0 : vector<1x256x4xbf16> to vector<256x4xbf16>
    %c0_2 = arith.constant 0 : index
    %c0_3 = arith.constant 0 : index
    %2 = vector.load %arg2[%c0_2, %c0_3] : memref<4x8xbf16, #tpu.memory_space<vmem>>, vector<4x8xbf16>
    %cst = arith.constant dense<0.000000e+00> : vector<256x8xf32>
    %3 = tpu.matmul %1, %2, %cst {dimension_numbers = #tpu.dot_dimension_numbers<[1], [0], [0], [1], [0, 0, 1, 1], [], []>} : vector<256x4xbf16>, vector<4x8xbf16>, vector<256x8xf32> -> vector<256x8xf32>
    %c0_4 = arith.constant 0 : index
    %c0_5 = arith.constant 0 : index
    %4 = vector.load %arg3[%c0_4, %c0_5] : memref<1x8xf32, #tpu.memory_space<vmem>>, vector<1x8xf32>
    %5 = vector.broadcast %4 : vector<1x8xf32> to vector<256x8xf32>
    %6 = arith.addf %3, %5 : vector<256x8xf32>
    %cst_6 = arith.constant 0.000000e+00 : f32
    %7 = vector.broadcast %cst_6 : f32 to vector<256x8xf32>
    %8 = arith.maximumf %6, %7 : vector<256x8xf32>
    %c17_i32 = arith.constant 17 : i32
    %9 = tpu.dynamic_rotate %8 by %c17_i32 dim 0 : vector<256x8xf32>, i32 -> vector<256x8xf32>
    %c0_7 = arith.constant 0 : index
    %c0_8 = arith.constant 0 : index
    %c0_9 = arith.constant 0 : index
    %10 = vector.load %arg6[%c0_7, %c0_8, %c0_9] : memref<8x256x1xf32, #tpu.memory_space<vmem>>, vector<1x256x1xf32>
    %11 = vector.shape_cast %10 : vector<1x256x1xf32> to vector<256x1xf32>
    %12 = vector.broadcast %11 : vector<256x1xf32> to vector<256x8xf32>
    %13 = arith.mulf %9, %12 : vector<256x8xf32>
    %14 = arith.truncf %13 : vector<256x8xf32> to vector<256x8xbf16>
    %c0_10 = arith.constant 0 : index
    %c0_11 = arith.constant 0 : index
    %15 = vector.load %arg8[%c0_10, %c0_11] : memref<256x72xbf16, #tpu.memory_space<vmem>>, vector<256x8xbf16>
    tpu.vector_store %arg8[%c0_10, %c0_11], %14 {strides = array<i32>} : memref<256x72xbf16, #tpu.memory_space<vmem>>, vector<256x8xbf16>,
    %c16_i32 = arith.constant 16 : i32
    %16 = tpu.dynamic_rotate %8 by %c16_i32 dim 0 : vector<256x8xf32>, i32 -> vector<256x8xf32>
    %c1 = arith.constant 1 : index
    %c0_12 = arith.constant 0 : index
    %c0_13 = arith.constant 0 : index
    %17 = vector.load %arg6[%c1, %c0_12, %c0_13] : memref<8x256x1xf32, #tpu.memory_space<vmem>>, vector<1x256x1xf32>
    %18 = vector.shape_cast %17 : vector<1x256x1xf32> to vector<256x1xf32>
    %19 = vector.broadcast %18 : vector<256x1xf32> to vector<256x8xf32>
    %20 = arith.mulf %16, %19 : vector<256x8xf32>
    %21 = arith.truncf %20 : vector<256x8xf32> to vector<256x8xbf16>
    %c0_14 = arith.constant 0 : index
    %c8 = arith.constant 8 : index
    %22 = vector.load %arg8[%c0_14, %c8] : memref<256x72xbf16, #tpu.memory_space<vmem>>, vector<256x8xbf16>
    tpu.vector_store %arg8[%c0_14, %c8], %21 {strides = array<i32>} : memref<256x72xbf16, #tpu.memory_space<vmem>>, vector<256x8xbf16>,
    %c15_i32 = arith.constant 15 : i32
    %23 = tpu.dynamic_rotate %8 by %c15_i32 dim 0 : vector<256x8xf32>, i32 -> vector<256x8xf32>
    %c2 = arith.constant 2 : index
    %c0_15 = arith.constant 0 : index
    %c0_16 = arith.constant 0 : index
    %24 = vector.load %arg6[%c2, %c0_15, %c0_16] : memref<8x256x1xf32, #tpu.memory_space<vmem>>, vector<1x256x1xf32>
    %25 = vector.shape_cast %24 : vector<1x256x1xf32> to vector<256x1xf32>
    %26 = vector.broadcast %25 : vector<256x1xf32> to vector<256x8xf32>
    %27 = arith.mulf %23, %26 : vector<256x8xf32>
    %28 = arith.truncf %27 : vector<256x8xf32> to vector<256x8xbf16>
    %c0_17 = arith.constant 0 : index
    %c16 = arith.constant 16 : index
    %29 = vector.load %arg8[%c0_17, %c16] : memref<256x72xbf16, #tpu.memory_space<vmem>>, vector<256x8xbf16>
    tpu.vector_store %arg8[%c0_17, %c16], %28 {strides = array<i32>} : memref<256x72xbf16, #tpu.memory_space<vmem>>, vector<256x8xbf16>,
    %c1_i32 = arith.constant 1 : i32
    %30 = tpu.dynamic_rotate %8 by %c1_i32 dim 0 : vector<256x8xf32>, i32 -> vector<256x8xf32>
    %c3 = arith.constant 3 : index
    %c0_18 = arith.constant 0 : index
    %c0_19 = arith.constant 0 : index
    %31 = vector.load %arg6[%c3, %c0_18, %c0_19] : memref<8x256x1xf32, #tpu.memory_space<vmem>>, vector<1x256x1xf32>
    %32 = vector.shape_cast %31 : vector<1x256x1xf32> to vector<256x1xf32>
    %33 = vector.broadcast %32 : vector<256x1xf32> to vector<256x8xf32>
    %34 = arith.mulf %30, %33 : vector<256x8xf32>
    %35 = arith.truncf %34 : vector<256x8xf32> to vector<256x8xbf16>
    %c0_20 = arith.constant 0 : index
    %c24 = arith.constant 24 : index
    %36 = vector.load %arg8[%c0_20, %c24] : memref<256x72xbf16, #tpu.memory_space<vmem>>, vector<256x8xbf16>
    tpu.vector_store %arg8[%c0_20, %c24], %35 {strides = array<i32>} : memref<256x72xbf16, #tpu.memory_space<vmem>>, vector<256x8xbf16>,
    %37 = arith.truncf %8 : vector<256x8xf32> to vector<256x8xbf16>
    %c0_21 = arith.constant 0 : index
    %c32 = arith.constant 32 : index
    %38 = vector.load %arg8[%c0_21, %c32] : memref<256x72xbf16, #tpu.memory_space<vmem>>, vector<256x8xbf16>
    tpu.vector_store %arg8[%c0_21, %c32], %37 {strides = array<i32>} : memref<256x72xbf16, #tpu.memory_space<vmem>>, vector<256x8xbf16>,
    %c255_i32 = arith.constant 255 : i32
    %39 = tpu.dynamic_rotate %8 by %c255_i32 dim 0 : vector<256x8xf32>, i32 -> vector<256x8xf32>
    %c4 = arith.constant 4 : index
    %c0_22 = arith.constant 0 : index
    %c0_23 = arith.constant 0 : index
    %40 = vector.load %arg6[%c4, %c0_22, %c0_23] : memref<8x256x1xf32, #tpu.memory_space<vmem>>, vector<1x256x1xf32>
    %41 = vector.shape_cast %40 : vector<1x256x1xf32> to vector<256x1xf32>
    %42 = vector.broadcast %41 : vector<256x1xf32> to vector<256x8xf32>
    %43 = arith.mulf %39, %42 : vector<256x8xf32>
    %44 = arith.truncf %43 : vector<256x8xf32> to vector<256x8xbf16>
    %c0_24 = arith.constant 0 : index
    %c40 = arith.constant 40 : index
    %45 = vector.load %arg8[%c0_24, %c40] : memref<256x72xbf16, #tpu.memory_space<vmem>>, vector<256x8xbf16>
    tpu.vector_store %arg8[%c0_24, %c40], %44 {strides = array<i32>} : memref<256x72xbf16, #tpu.memory_space<vmem>>, vector<256x8xbf16>,
    %c241_i32 = arith.constant 241 : i32
    %46 = tpu.dynamic_rotate %8 by %c241_i32 dim 0 : vector<256x8xf32>, i32 -> vector<256x8xf32>
    %c5 = arith.constant 5 : index
    %c0_25 = arith.constant 0 : index
    %c0_26 = arith.constant 0 : index
    %47 = vector.load %arg6[%c5, %c0_25, %c0_26] : memref<8x256x1xf32, #tpu.memory_space<vmem>>, vector<1x256x1xf32>
    %48 = vector.shape_cast %47 : vector<1x256x1xf32> to vector<256x1xf32>
    %49 = vector.broadcast %48 : vector<256x1xf32> to vector<256x8xf32>
    %50 = arith.mulf %46, %49 : vector<256x8xf32>
    %51 = arith.truncf %50 : vector<256x8xf32> to vector<256x8xbf16>
    %c0_27 = arith.constant 0 : index
    %c48 = arith.constant 48 : index
    %52 = vector.load %arg8[%c0_27, %c48] : memref<256x72xbf16, #tpu.memory_space<vmem>>, vector<256x8xbf16>
    tpu.vector_store %arg8[%c0_27, %c48], %51 {strides = array<i32>} : memref<256x72xbf16, #tpu.memory_space<vmem>>, vector<256x8xbf16>,
    %c240_i32 = arith.constant 240 : i32
    %53 = tpu.dynamic_rotate %8 by %c240_i32 dim 0 : vector<256x8xf32>, i32 -> vector<256x8xf32>
    %c6 = arith.constant 6 : index
    %c0_28 = arith.constant 0 : index
    %c0_29 = arith.constant 0 : index
    %54 = vector.load %arg6[%c6, %c0_28, %c0_29] : memref<8x256x1xf32, #tpu.memory_space<vmem>>, vector<1x256x1xf32>
    %55 = vector.shape_cast %54 : vector<1x256x1xf32> to vector<256x1xf32>
    %56 = vector.broadcast %55 : vector<256x1xf32> to vector<256x8xf32>
    %57 = arith.mulf %53, %56 : vector<256x8xf32>
    %58 = arith.truncf %57 : vector<256x8xf32> to vector<256x8xbf16>
    %c0_30 = arith.constant 0 : index
    %c56 = arith.constant 56 : index
    %59 = vector.load %arg8[%c0_30, %c56] : memref<256x72xbf16, #tpu.memory_space<vmem>>, vector<256x8xbf16>
    tpu.vector_store %arg8[%c0_30, %c56], %58 {strides = array<i32>} : memref<256x72xbf16, #tpu.memory_space<vmem>>, vector<256x8xbf16>,
    %c239_i32 = arith.constant 239 : i32
    %60 = tpu.dynamic_rotate %8 by %c239_i32 dim 0 : vector<256x8xf32>, i32 -> vector<256x8xf32>
    %c7 = arith.constant 7 : index
    %c0_31 = arith.constant 0 : index
    %c0_32 = arith.constant 0 : index
    %61 = vector.load %arg6[%c7, %c0_31, %c0_32] : memref<8x256x1xf32, #tpu.memory_space<vmem>>, vector<1x256x1xf32>
    %62 = vector.shape_cast %61 : vector<1x256x1xf32> to vector<256x1xf32>
    %63 = vector.broadcast %62 : vector<256x1xf32> to vector<256x8xf32>
    %64 = arith.mulf %60, %63 : vector<256x8xf32>
    %65 = arith.truncf %64 : vector<256x8xf32> to vector<256x8xbf16>
    %c0_33 = arith.constant 0 : index
    %c64 = arith.constant 64 : index
    %66 = vector.load %arg8[%c0_33, %c64] : memref<256x72xbf16, #tpu.memory_space<vmem>>, vector<256x8xbf16>
    tpu.vector_store %arg8[%c0_33, %c64], %65 {strides = array<i32>} : memref<256x72xbf16, #tpu.memory_space<vmem>>, vector<256x8xbf16>,
    %c0_34 = arith.constant 0 : index
    %c0_35 = arith.constant 0 : index
    %67 = vector.load %arg8[%c0_34, %c0_35] : memref<256x72xbf16, #tpu.memory_space<vmem>>, vector<256x72xbf16>
    %c0_36 = arith.constant 0 : index
    %c0_37 = arith.constant 0 : index
    %68 = vector.load %arg4[%c0_36, %c0_37] : memref<72x16xbf16, #tpu.memory_space<vmem>>, vector<72x16xbf16>
    %cst_38 = arith.constant dense<0.000000e+00> : vector<256x16xf32>
    %69 = tpu.matmul %67, %68, %cst_38 {dimension_numbers = #tpu.dot_dimension_numbers<[1], [0], [0], [1], [0, 0, 1, 1], [], []>} : vector<256x72xbf16>, vector<72x16xbf16>, vector<256x16xf32> -> vector<256x16xf32>
    %c0_39 = arith.constant 0 : index
    %c0_40 = arith.constant 0 : index
    %70 = vector.load %arg5[%c0_39, %c0_40] : memref<1x16xf32, #tpu.memory_space<vmem>>, vector<1x16xf32>
    %71 = vector.broadcast %70 : vector<1x16xf32> to vector<256x16xf32>
    %72 = arith.addf %69, %71 : vector<256x16xf32>
    %cst_41 = arith.constant 0.000000e+00 : f32
    %73 = vector.broadcast %cst_41 : f32 to vector<256x16xf32>
    %74 = arith.maximumf %72, %73 : vector<256x16xf32>
    %c0_42 = arith.constant 0 : index
    %c0_43 = arith.constant 0 : index
    %c0_44 = arith.constant 0 : index
    %75 = vector.load %arg7[%c0_42, %c0_43, %c0_44] : memref<1x256x16xf32, #tpu.memory_space<vmem>>, vector<1x256x16xf32>
    %76 = vector.shape_cast %75 : vector<1x256x16xf32> to vector<256x16xf32>
    %77 = vector.shape_cast %74 : vector<256x16xf32> to vector<1x256x16xf32>
    tpu.vector_store %arg7[%c0_42, %c0_43, %c0_44], %77 {strides = array<i32>} : memref<1x256x16xf32, #tpu.memory_space<vmem>>, vector<1x256x16xf32>,
    return
  }
  func.func @transform_0(%arg0: i32) -> (i32, i32, i32) {
    %c0_i32 = arith.constant 0 : i32
    %c0_i32_0 = arith.constant 0 : i32
    %c0_i32_1 = arith.constant 0 : i32
    return %arg0, %c0_i32, %c0_i32_0 : i32, i32, i32
  }
  func.func @transform_1(%arg0: i32) -> (i32, i32) {
    %c0_i32 = arith.constant 0 : i32
    %c0_i32_0 = arith.constant 0 : i32
    %c0_i32_1 = arith.constant 0 : i32
    return %c0_i32, %c0_i32_0 : i32, i32
  }
  func.func @transform_2(%arg0: i32) -> (i32, i32) {
    %c0_i32 = arith.constant 0 : i32
    %c0_i32_0 = arith.constant 0 : i32
    %c0_i32_1 = arith.constant 0 : i32
    return %c0_i32, %c0_i32_0 : i32, i32
  }
  func.func @transform_3(%arg0: i32) -> (i32, i32) {
    %c0_i32 = arith.constant 0 : i32
    %c0_i32_0 = arith.constant 0 : i32
    %c0_i32_1 = arith.constant 0 : i32
    return %c0_i32, %c0_i32_0 : i32, i32
  }
  func.func @transform_4(%arg0: i32) -> (i32, i32) {
    %c0_i32 = arith.constant 0 : i32
    %c0_i32_0 = arith.constant 0 : i32
    %c0_i32_1 = arith.constant 0 : i32
    return %c0_i32, %c0_i32_0 : i32, i32
  }
  func.func @transform_5(%arg0: i32) -> (i32, i32, i32) {
    %c0_i32 = arith.constant 0 : i32
    %c0_i32_0 = arith.constant 0 : i32
    %c0_i32_1 = arith.constant 0 : i32
    %c0_i32_2 = arith.constant 0 : i32
    return %c0_i32, %c0_i32_0, %c0_i32_1 : i32, i32, i32
  }
  func.func @transform_6(%arg0: i32) -> (i32, i32, i32) {
    %c0_i32 = arith.constant 0 : i32
    %c0_i32_0 = arith.constant 0 : i32
    %c0_i32_1 = arith.constant 0 : i32
    return %arg0, %c0_i32, %c0_i32_0 : i32, i32, i32
  }
}

</mosaic_0001>

<llo_original>
// kernel: tpu_custom_call.1
$region0: #{tpu_custom_call.1}
  #allocation0 [shape = 'u32[]', space=smem, size = 0x4, offset = 0x4, fixed_abs, tag = 'smem constant byte address 0x4 - core index']
  #allocation1 [shape = 'u32[144,128]{1,0:T(1,128)}', space=vmem, size = 0x12000, scoped, tag = 'internal scratch']
  #allocation2 [shape = 'bf16[256,72]{1,0:T(16,128)(2,1)}', space=vmem, size = 0x10000, scoped, tag = 'scratch operand']
  %s0 = inlined_call_operand.vmem [shape: bf16[2,256,4], index: 0, kind: input, shape index: {}]
  %s1 = inlined_call_operand.vmem [shape: bf16[4,8], index: 1, kind: input, shape index: {}]
  %s2 = inlined_call_operand.vmem [shape: f32[1,8], index: 2, kind: input, shape index: {}]
  %s3 = inlined_call_operand.vmem [shape: bf16[72,16], index: 3, kind: input, shape index: {}]
  %s4 = inlined_call_operand.vmem [shape: f32[1,16], index: 4, kind: input, shape index: {}]
  %s5 = inlined_call_operand.vmem [shape: f32[8,256,1], index: 5, kind: input, shape index: {}]
  %s6 = inlined_call_operand.vmem [shape: f32[2,256,16], index: 6, kind: output, shape index: {}]
  %s7 = sld [smem:[#allocation0]]
  $region57: #{tpu_custom_call.1} parent=0
    _
  %s9 = ssub.s32 1, %s7
  %s10 = scalar_select 0, %s9, %s7
  loop: start=0, step=1, limit=4
  $region2: #{tpu_custom_call.1} parent=0 // loop_pre_header
    _
  $region3: #{tpu_custom_call.1} parent=0 // loop_header
    %s12 = sphi 0, %s16
    %p13 = scmp.ge.s32.totalorder %s12, 4
    %s22 = sphi 0, %s24
    %s25 = sphi 0, %s22
    %s26 = sphi 0, %s25
    %s42 = sphi 0, %s26
    %s46 = sphi 0, %s46
    %s48 = sphi 0, %s46
    %s49 = sphi 0, %s48
    %s63 = sphi 0, %s49
    %s67 = sphi 0, %s67
    %s69 = sphi 0, %s67
    %s70 = sphi 0, %s69
    %s84 = sphi 0, %s70
    %s88 = sphi 0, %s88
    %s90 = sphi 0, %s88
    %s91 = sphi 0, %s90
    %s105 = sphi 0, %s91
    %s109 = sphi 0, %s109
    %s111 = sphi 0, %s109
    %s112 = sphi 0, %s111
    %s126 = sphi 0, %s112
    %s130 = sphi 0, %s130
    %s132 = sphi 0, %s130
    %s133 = sphi 0, %s132
    %s147 = sphi 0, %s133
    %s153 = sphi 0, %s155
    %s156 = sphi 0, %s153
    %s157 = sphi 0, %s156
    %s173 = sphi 0, %s157
  $region4: #{tpu_custom_call.1} parent=0 // loop_header_branch
    %15 = sbr.rel (%p13) target = $region8
  $region5: #{tpu_custom_call.1} parent=0 // loop_body
    %s17 = ssub.s32 %s12, 1
    %s18 = ssub.s32 %s12, 2
    %s19 = sadd.s32 %s12, 1
    %s20 = ssub.s32 %s12, %s19
    %p21 = scmp.eq.s32.totalorder %s20, 0
    %s23 = sadd.s32 %s22, 1
    %s24 = scalar_select %p21, %s22, %s23
    %p27 = pneg %p21
    %p28 = scmp.eq.s32.totalorder %s12, 1
    %p29 = por %p27, %p28
    %p30 = scmp.ne.s32.totalorder %s22, %s25
    %p31 = scmp.eq.s32.totalorder %s12, 0
    %p32 = por %p30, %p31
    %p33 = scmp.ne.s32.totalorder %s22, %s25
    %p34 = scmp.eq.s32.totalorder %s17, 1
    %p35 = por %p33, %p34
    %p36 = scmp.ne.s32.totalorder %s25, %s26
    %p37 = scmp.eq.s32.totalorder %s17, 0
    %p38 = por %p36, %p37
    %p39 = scmp.ne.s32.totalorder %s25, %s26
    %p40 = scmp.eq.s32.totalorder %s18, 1
    %p41 = por %p39, %p40
    %p43 = scmp.ne.s32.totalorder %s26, %s42
    %p44 = scmp.eq.s32.totalorder %s18, 0
    %p45 = por %p43, %p44
    %s47 = sadd.s32 %s46, 1
    %p50 = scmp.eq.s32.totalorder %s12, 1
    %p51 = scmp.ne.s32.totalorder %s46, %s48
    %p52 = scmp.eq.s32.totalorder %s12, 0
    %p53 = por %p51, %p52
    %p54 = scmp.ne.s32.totalorder %s46, %s48
    %p55 = scmp.eq.s32.totalorder %s17, 1
    %p56 = por %p54, %p55
    %p57 = scmp.ne.s32.totalorder %s48, %s49
    %p58 = scmp.eq.s32.totalorder %s17, 0
    %p59 = por %p57, %p58
    %p60 = scmp.ne.s32.totalorder %s48, %s49
    %p61 = scmp.eq.s32.totalorder %s18, 1
    %p62 = por %p60, %p61
    %p64 = scmp.ne.s32.totalorder %s49, %s63
    %p65 = scmp.eq.s32.totalorder %s18, 0
    %p66 = por %p64, %p65
    %s68 = sadd.s32 %s67, 1
    %p71 = scmp.eq.s32.totalorder %s12, 1
    %p72 = scmp.ne.s32.totalorder %s67, %s69
    %p73 = scmp.eq.s32.totalorder %s12, 0
    %p74 = por %p72, %p73
    %p75 = scmp.ne.s32.totalorder %s67, %s69
    %p76 = scmp.eq.s32.totalorder %s17, 1
    %p77 = por %p75, %p76
    %p78 = scmp.ne.s32.totalorder %s69, %s70
    %p79 = scmp.eq.s32.totalorder %s17, 0
    %p80 = por %p78, %p79
    %p81 = scmp.ne.s32.totalorder %s69, %s70
    %p82 = scmp.eq.s32.totalorder %s18, 1
    %p83 = por %p81, %p82
    %p85 = scmp.ne.s32.totalorder %s70, %s84
    %p86 = scmp.eq.s32.totalorder %s18, 0
    %p87 = por %p85, %p86
    %s89 = sadd.s32 %s88, 1
    %p92 = scmp.eq.s32.totalorder %s12, 1
    %p93 = scmp.ne.s32.totalorder %s88, %s90
    %p94 = scmp.eq.s32.totalorder %s12, 0
    %p95 = por %p93, %p94
    %p96 = scmp.ne.s32.totalorder %s88, %s90
    %p97 = scmp.eq.s32.totalorder %s17, 1
    %p98 = por %p96, %p97
    %p99 = scmp.ne.s32.totalorder %s90, %s91
    %p100 = scmp.eq.s32.totalorder %s17, 0
    %p101 = por %p99, %p100
    %p102 = scmp.ne.s32.totalorder %s90, %s91
    %p103 = scmp.eq.s32.totalorder %s18, 1
    %p104 = por %p102, %p103
    %p106 = scmp.ne.s32.totalorder %s91, %s105
    %p107 = scmp.eq.s32.totalorder %s18, 0
    %p108 = por %p106, %p107
    %s110 = sadd.s32 %s109, 1
    %p113 = scmp.eq.s32.totalorder %s12, 1
    %p114 = scmp.ne.s32.totalorder %s109, %s111
    %p115 = scmp.eq.s32.totalorder %s12, 0
    %p116 = por %p114, %p115
    %p117 = scmp.ne.s32.totalorder %s109, %s111
    %p118 = scmp.eq.s32.totalorder %s17, 1
    %p119 = por %p117, %p118
    %p120 = scmp.ne.s32.totalorder %s111, %s112
    %p121 = scmp.eq.s32.totalorder %s17, 0
    %p122 = por %p120, %p121
    %p123 = scmp.ne.s32.totalorder %s111, %s112
    %p124 = scmp.eq.s32.totalorder %s18, 1
    %p125 = por %p123, %p124
    %p127 = scmp.ne.s32.totalorder %s112, %s126
    %p128 = scmp.eq.s32.totalorder %s18, 0
    %p129 = por %p127, %p128
    %s131 = sadd.s32 %s130, 1
    %p134 = scmp.eq.s32.totalorder %s12, 1
    %p135 = scmp.ne.s32.totalorder %s130, %s132
    %p136 = scmp.eq.s32.totalorder %s12, 0
    %p137 = por %p135, %p136
    %p138 = scmp.ne.s32.totalorder %s130, %s132
    %p139 = scmp.eq.s32.totalorder %s17, 1
    %p140 = por %p138, %p139
    %p141 = scmp.ne.s32.totalorder %s132, %s133
    %p142 = scmp.eq.s32.totalorder %s17, 0
    %p143 = por %p141, %p142
    %p144 = scmp.ne.s32.totalorder %s132, %s133
    %p145 = scmp.eq.s32.totalorder %s18, 1
    %p146 = por %p144, %p145
    %p148 = scmp.ne.s32.totalorder %s133, %s147
    %p149 = scmp.eq.s32.totalorder %s18, 0
    %p150 = por %p148, %p149
    %s151 = ssub.s32 %s12, %s19
    %p152 = scmp.eq.s32.totalorder %s151, 0
    %s154 = sadd.s32 %s153, 1
    %s155 = scalar_select %p152, %s153, %s154
    %p158 = pneg %p152
    %p159 = scmp.eq.s32.totalorder %s12, 1
    %p160 = por %p158, %p159
    %p161 = scmp.ne.s32.totalorder %s153, %s156
    %p162 = scmp.eq.s32.totalorder %s12, 0
    %p163 = por %p161, %p162
    %p164 = scmp.ne.s32.totalorder %s153, %s156
    %p165 = scmp.eq.s32.totalorder %s17, 1
    %p166 = por %p164, %p165
    %p167 = scmp.ne.s32.totalorder %s156, %s157
    %p168 = scmp.eq.s32.totalorder %s17, 0
    %p169 = por %p167, %p168
    %p170 = scmp.ne.s32.totalorder %s156, %s157
    %p171 = scmp.eq.s32.totalorder %s18, 1
    %p172 = por %p170, %p171
    %p174 = scmp.ne.s32.totalorder %s157, %s173
    %p175 = scmp.eq.s32.totalorder %s18, 0
    %p176 = por %p174, %p175
    %p177 = scmp.le.s32.totalorder 1, %s12
    %p178 = scmp.lt.s32.totalorder %s12, 3
    %p179 = pnand %p177, %p178
    %p180 = pneg %p179
    // Predicated region
    $region9: #{tpu_custom_call.1} parent=5 // pred_check
      _
    $region10: #{tpu_custom_call.1} parent=5 // pred_check_branch
      %182 = sbr.rel (%p179) target = $region12
    $region11: #{tpu_custom_call.1} parent=5 // pred_region
      %s183 = ssub.s32 %s12, 1
      // Predicated region
      $region13: #{tpu_custom_call.1} parent=11 // pred_check
        %p184 = pneg %p59
      $region14: #{tpu_custom_call.1} parent=11 // pred_check_branch
        %186 = sbr.rel (%p184) target = $region16
      $region15: #{tpu_custom_call.1} parent=11 // pred_region
        _
      $region16: #{tpu_custom_call.1} parent=11 // pred_fallthru
        _
      // Predicated region
      $region17: #{tpu_custom_call.1} parent=11 // pred_check
        %p187 = pneg %p80
      $region18: #{tpu_custom_call.1} parent=11 // pred_check_branch
        %189 = sbr.rel (%p187) target = $region20
      $region19: #{tpu_custom_call.1} parent=11 // pred_region
        _
      $region20: #{tpu_custom_call.1} parent=11 // pred_fallthru
        _
      // Predicated region
      $region21: #{tpu_custom_call.1} parent=11 // pred_check
        %p190 = pneg %p101
      $region22: #{tpu_custom_call.1} parent=11 // pred_check_branch
        %192 = sbr.rel (%p190) target = $region24
      $region23: #{tpu_custom_call.1} parent=11 // pred_region
        _
      $region24: #{tpu_custom_call.1} parent=11 // pred_fallthru
        _
      // Predicated region
      $region25: #{tpu_custom_call.1} parent=11 // pred_check
        %p193 = pneg %p122
      $region26: #{tpu_custom_call.1} parent=11 // pred_check_branch
        %195 = sbr.rel (%p193) target = $region28
      $region27: #{tpu_custom_call.1} parent=11 // pred_region
        _
      $region28: #{tpu_custom_call.1} parent=11 // pred_fallthru
        _
      // Predicated region
      $region29: #{tpu_custom_call.1} parent=11 // pred_check
        %p196 = pneg %p143
      $region30: #{tpu_custom_call.1} parent=11 // pred_check_branch
        %198 = sbr.rel (%p196) target = $region32
      $region31: #{tpu_custom_call.1} parent=11 // pred_region
        _
      $region32: #{tpu_custom_call.1} parent=11 // pred_fallthru
        _
    $region12: #{tpu_custom_call.1} parent=5 // pred_fallthru
      _
    %p199 = scmp.lt.s32.totalorder %s12, 2
    // Predicated region
    $region33: #{tpu_custom_call.1} parent=5 // pred_check
      %p200 = pneg %p199
    $region34: #{tpu_custom_call.1} parent=5 // pred_check_branch
      %202 = sbr.rel (%p200) target = $region36
    $region35: #{tpu_custom_call.1} parent=5 // pred_region
      // Predicated region
      $region37: #{tpu_custom_call.1} parent=35 // pred_check
        %p203 = pneg %p32
      $region38: #{tpu_custom_call.1} parent=35 // pred_check_branch
        %205 = sbr.rel (%p203) target = $region40
      $region39: #{tpu_custom_call.1} parent=35 // pred_region
        %p206 = scmp.lt.s32.totalorder %s12, 1
        %s207 = scalar_select %p206, %s12, 1
        %s208 = smul.addr %s207, 32
        %s209 = smul.addr %s208, 4
        %s210 = scalar_lea.vmem %s0, %s209
      $region40: #{tpu_custom_call.1} parent=35 // pred_fallthru
        _
    $region36: #{tpu_custom_call.1} parent=5 // pred_fallthru
      _
    %p211 = scmp.le.s32.totalorder 1, %s12
    %p212 = scmp.lt.s32.totalorder %s12, 3
    %p213 = pnand %p211, %p212
    %p214 = pneg %p213
    // Predicated region
    $region41: #{tpu_custom_call.1} parent=5 // pred_check
      _
    $region42: #{tpu_custom_call.1} parent=5 // pred_check_branch
      %216 = sbr.rel (%p213) target = $region44
    $region43: #{tpu_custom_call.1} parent=5 // pred_region
      %s217 = ssub.s32 %s12, 1
      %p218 = scmp.lt.s32.totalorder %s17, 1
      %s219 = scalar_select %p218, %s17, 1
      %s220 = smul.addr %s219, 32
      %s221 = smul.addr %s220, 4
      %s222 = scalar_lea.vmem %s0, %s221
      %p223 = pneg %p38
      %p224 = pneg %p35
      %p225 = pneg %p59
      %p226 = pneg %p56
      %p227 = pneg %p80
      %p228 = pneg %p77
      %p229 = pneg %p101
      %p230 = pneg %p98
      %p231 = pneg %p122
      %p232 = pneg %p119
      %p233 = pneg %p143
      %p234 = pneg %p140
      %p235 = pneg %p169
      %p236 = pneg %p166
      %p237 = scmp.lt.s32.totalorder %s17, 1
      %s238 = scalar_select %p237, %s17, 1
      %s239 = smul.addr %s238, 32
      %s240 = smul.addr %s239, 8
      %s241 = scalar_lea.vmem %s6, %s240
      %p242 = scmp.lt.s32.totalorder %s17, 1
      %s243 = scalar_select %p242, %s17, 1
      %s244 = smul.addr %s243, 32
      %s245 = smul.addr %s244, 4
      %s246 = scalar_lea.vmem %s0, %s245
      %p247 = scmp.lt.s32.totalorder %s17, 1
      %s248 = scalar_select %p247, %s17, 1
      %s249 = smul.addr %s248, 32
      %s250 = smul.addr %s249, 8
      %s251 = scalar_lea.vmem %s6, %s250
      %v253 = vld [vmem:[%s246] sm:$0xf]
      %v254 = vld [vmem:[%s246 + $0x4] sm:$0xf]
      %v255 = vld [vmem:[%s246 + $0x8] sm:$0xf]
      %v256 = vld [vmem:[%s246 + $0xc] sm:$0xf]
      %v257 = vld [vmem:[%s246 + $0x10] sm:$0xf]
      %v258 = vld [vmem:[%s246 + $0x14] sm:$0xf]
      %v259 = vld [vmem:[%s246 + $0x18] sm:$0xf]
      %v260 = vld [vmem:[%s246 + $0x1c] sm:$0xf]
      %v261 = vld [vmem:[%s246 + $0x20] sm:$0xf]
      %v262 = vld [vmem:[%s246 + $0x24] sm:$0xf]
      %v263 = vld [vmem:[%s246 + $0x28] sm:$0xf]
      %v264 = vld [vmem:[%s246 + $0x2c] sm:$0xf]
      %v265 = vld [vmem:[%s246 + $0x30] sm:$0xf]
      %v266 = vld [vmem:[%s246 + $0x34] sm:$0xf]
      %v267 = vld [vmem:[%s246 + $0x38] sm:$0xf]
      %v268 = vld [vmem:[%s246 + $0x3c] sm:$0xf]
      %v269 = vld [vmem:[%s246 + $0x40] sm:$0xf]
      %v270 = vld [vmem:[%s246 + $0x44] sm:$0xf]
      %v271 = vld [vmem:[%s246 + $0x48] sm:$0xf]
      %v272 = vld [vmem:[%s246 + $0x4c] sm:$0xf]
      %v273 = vld [vmem:[%s246 + $0x50] sm:$0xf]
      %v274 = vld [vmem:[%s246 + $0x54] sm:$0xf]
      %v275 = vld [vmem:[%s246 + $0x58] sm:$0xf]
      %v276 = vld [vmem:[%s246 + $0x5c] sm:$0xf]
      %v277 = vld [vmem:[%s246 + $0x60] sm:$0xf]
      %v278 = vld [vmem:[%s246 + $0x64] sm:$0xf]
      %v279 = vld [vmem:[%s246 + $0x68] sm:$0xf]
      %v280 = vld [vmem:[%s246 + $0x6c] sm:$0xf]
      %v281 = vld [vmem:[%s246 + $0x70] sm:$0xf]
      %v282 = vld [vmem:[%s246 + $0x74] sm:$0xf]
      %v283 = vld [vmem:[%s246 + $0x78] sm:$0xf]
      %v284 = vld [vmem:[%s246 + $0x7c] sm:$0xf]
      %v285 = vld [vmem:[%s1] sm:$0x3]
      %v286 = vld [vmem:[%s2] sm:$0x1]
      %v288 = vlaneseq
      %v289 = vshrl.u32 %v288, 7
      %v290 = vsub.s32 0, %v289
      %v291 = vrot.slane %v286, %v290
      %v325 = vunpack.c.l.b16 %v253
      %v326 = vunpack.c.l.b16 %v254
      %v327 = vunpack.c.l.b16 %v255
      %v328 = vunpack.c.l.b16 %v256
      %v329 = vunpack.c.l.b16 %v257
      %v330 = vunpack.c.l.b16 %v258
      %v331 = vunpack.c.l.b16 %v259
      %v332 = vunpack.c.l.b16 %v260
      %v333 = vunpack.c.l.b16 %v261
      %v334 = vunpack.c.l.b16 %v262
      %v335 = vunpack.c.l.b16 %v263
      %v336 = vunpack.c.l.b16 %v264
      %v337 = vunpack.c.l.b16 %v265
      %v338 = vunpack.c.l.b16 %v266
      %v339 = vunpack.c.l.b16 %v267
      %v340 = vunpack.c.l.b16 %v268
      %v341 = vunpack.c.l.b16 %v269
      %v342 = vunpack.c.l.b16 %v270
      %v343 = vunpack.c.l.b16 %v271
      %v344 = vunpack.c.l.b16 %v272
      %v345 = vunpack.c.l.b16 %v273
      %v346 = vunpack.c.l.b16 %v274
      %v347 = vunpack.c.l.b16 %v275
      %v348 = vunpack.c.l.b16 %v276
      %v349 = vunpack.c.l.b16 %v277
      %v350 = vunpack.c.l.b16 %v278
      %v351 = vunpack.c.l.b16 %v279
      %v352 = vunpack.c.l.b16 %v280
      %v353 = vunpack.c.l.b16 %v281
      %v354 = vunpack.c.l.b16 %v282
      %v355 = vunpack.c.l.b16 %v283
      %v356 = vunpack.c.l.b16 %v284
      %v357 = vpack.c.b16 %v326, %v325
      %v358 = vpack.c.b16 %v328, %v327
      %v359 = vpack.c.b16 %v330, %v329
      %v360 = vpack.c.b16 %v332, %v331
      %v361 = vpack.c.b16 %v334, %v333
      %v362 = vpack.c.b16 %v336, %v335
      %v363 = vpack.c.b16 %v338, %v337
      %v364 = vpack.c.b16 %v340, %v339
      %v365 = vpack.c.b16 %v342, %v341
      %v366 = vpack.c.b16 %v344, %v343
      %v367 = vpack.c.b16 %v346, %v345
      %v368 = vpack.c.b16 %v348, %v347
      %v369 = vpack.c.b16 %v350, %v349
      %v370 = vpack.c.b16 %v352, %v351
      %v371 = vpack.c.b16 %v354, %v353
      %v372 = vpack.c.b16 %v356, %v355
      %vm373 = vcmask 31744
      %v375 = vsel %vm373, %v357, 0
      %v378 = vsel %vm373, %v358, 0
      %v381 = vsel %vm373, %v359, 0
      %v384 = vsel %vm373, %v360, 0
      %v387 = vsel %vm373, %v361, 0
      %v390 = vsel %vm373, %v362, 0
      %v393 = vsel %vm373, %v363, 0
      %v396 = vsel %vm373, %v364, 0
      %v399 = vsel %vm373, %v365, 0
      %v402 = vsel %vm373, %v366, 0
      %v405 = vsel %vm373, %v367, 0
      %v408 = vsel %vm373, %v368, 0
      %v411 = vsel %vm373, %v369, 0
      %v414 = vsel %vm373, %v370, 0
      %v417 = vsel %vm373, %v371, 0
      %v420 = vsel %vm373, %v372, 0
      %vm422 = vcmask 1041408
      %v424 = vsel %vm422, %v285, 0
      %426 = vmatprep.subr.bf16.mxu0 0
      %427 = vmatpush1.bf16.msra.mxu0 %v424
      %428 = vmatprep.subr.bf16.mxu0 0
      %429 = vmatpush1.bf16.msra.mxu0 0
      %430 = vmatprep.subr.bf16.mxu0 0
      %431 = vmatpush1.bf16.msra.mxu0 0
      %432 = vmatprep.subr.bf16.mxu0 0
      %433 = vmatpush1.bf16.msra.mxu0 0
      %434 = vmatprep.subr.bf16.mxu0 0
      %435 = vmatpush1.bf16.msra.mxu0 0
      %436 = vmatprep.subr.bf16.mxu0 0
      %437 = vmatpush1.bf16.msra.mxu0 0
      %438 = vmatprep.subr.bf16.mxu0 0
      %439 = vmatpush1.bf16.msra.mxu0 0
      %440 = vmatprep.subr.bf16.mxu0 0
      %441 = vmatpush1.bf16.msra.mxu0 0
      %442 = vmatprep.subr.bf16.mxu0 0
      %443 = vmatpush1.bf16.msra.mxu0 0
      %444 = vmatprep.subr.bf16.mxu0 0
      %445 = vmatpush1.bf16.msra.mxu0 0
      %446 = vmatprep.subr.bf16.mxu0 0
      %447 = vmatpush1.bf16.msra.mxu0 0
      %448 = vmatprep.subr.bf16.mxu0 0
      %449 = vmatpush1.bf16.msra.mxu0 0
      %450 = vmatprep.subr.bf16.mxu0 0
      %451 = vmatpush1.bf16.msra.mxu0 0
      %452 = vmatprep.subr.bf16.mxu0 0
      %453 = vmatpush1.bf16.msra.mxu0 0
      %454 = vmatprep.subr.bf16.mxu0 0
      %455 = vmatpush1.bf16.msra.mxu0 0
      %456 = vmatprep.subr.bf16.mxu0 0
      %457 = vmatpush1.bf16.msra.mxu0 0
      %458 = vmatprep.mubr.bf16.mxu0 0
      %459 = vmatmul.mubr.bf16.gmra.mrb[0].mxu0 %v375
      %v460 = vpop.f32.mrb[0].mxu0
      %v461 = vadd.f32 %v291, %v460
      %v462 = vpop.f32.mrb[0].mxu0
      %v463 = vpop.f32.mrb[0].mxu0
      %v464 = vadd.f32 %v291, %v463
      %v465 = vpop.f32.mrb[0].mxu0
      %466 = vmatprep.mubr.bf16.mxu0 0
      %467 = vmatmul.mubr.bf16.gmra.mrb[0].mxu0 %v378
      %v468 = vpop.f32.mrb[0].mxu0
      %v469 = vadd.f32 %v291, %v468
      %v470 = vpop.f32.mrb[0].mxu0
      %v471 = vpop.f32.mrb[0].mxu0
      %v472 = vadd.f32 %v291, %v471
      %v473 = vpop.f32.mrb[0].mxu0
      %474 = vmatprep.mubr.bf16.mxu0 0
      %475 = vmatmul.mubr.bf16.gmra.mrb[0].mxu0 %v381
      %v476 = vpop.f32.mrb[0].mxu0
      %v477 = vadd.f32 %v291, %v476
      %v478 = vpop.f32.mrb[0].mxu0
      %v479 = vpop.f32.mrb[0].mxu0
      %v480 = vadd.f32 %v291, %v479
      %v481 = vpop.f32.mrb[0].mxu0
      %482 = vmatprep.mubr.bf16.mxu0 0
      %483 = vmatmul.mubr.bf16.gmra.mrb[0].mxu0 %v384
      %v484 = vpop.f32.mrb[0].mxu0
      %v485 = vadd.f32 %v291, %v484
      %v486 = vpop.f32.mrb[0].mxu0
      %v487 = vpop.f32.mrb[0].mxu0
      %v488 = vadd.f32 %v291, %v487
      %v489 = vpop.f32.mrb[0].mxu0
      %490 = vmatprep.mubr.bf16.mxu0 0
      %491 = vmatmul.mubr.bf16.gmra.mrb[0].mxu0 %v387
      %v492 = vpop.f32.mrb[0].mxu0
      %v493 = vadd.f32 %v291, %v492
      %v494 = vpop.f32.mrb[0].mxu0
      %v495 = vpop.f32.mrb[0].mxu0
      %v496 = vadd.f32 %v291, %v495
      %v497 = vpop.f32.mrb[0].mxu0
      %498 = vmatprep.mubr.bf16.mxu0 0
      %499 = vmatmul.mubr.bf16.gmra.mrb[0].mxu0 %v390
      %v500 = vpop.f32.mrb[0].mxu0
      %v501 = vadd.f32 %v291, %v500
      %v502 = vpop.f32.mrb[0].mxu0
      %v503 = vpop.f32.mrb[0].mxu0
      %v504 = vadd.f32 %v291, %v503
      %v505 = vpop.f32.mrb[0].mxu0
      %506 = vmatprep.mubr.bf16.mxu0 0
      %507 = vmatmul.mubr.bf16.gmra.mrb[0].mxu0 %v393
      %v508 = vpop.f32.mrb[0].mxu0
      %v509 = vadd.f32 %v291, %v508
      %v510 = vpop.f32.mrb[0].mxu0
      %v511 = vpop.f32.mrb[0].mxu0
      %v512 = vadd.f32 %v291, %v511
      %v513 = vpop.f32.mrb[0].mxu0
      %514 = vmatprep.mubr.bf16.mxu0 0
      %515 = vmatmul.mubr.bf16.gmra.mrb[0].mxu0 %v396
      %v516 = vpop.f32.mrb[0].mxu0
      %v517 = vadd.f32 %v291, %v516
      %v518 = vpop.f32.mrb[0].mxu0
      %v519 = vpop.f32.mrb[0].mxu0
      %v520 = vadd.f32 %v291, %v519
      %v521 = vpop.f32.mrb[0].mxu0
      %522 = vmatprep.mubr.bf16.mxu0 0
      %523 = vmatmul.mubr.bf16.gmra.mrb[0].mxu0 %v399
      %v524 = vpop.f32.mrb[0].mxu0
      %v525 = vadd.f32 %v291, %v524
      %v526 = vpop.f32.mrb[0].mxu0
      %v527 = vpop.f32.mrb[0].mxu0
      %v528 = vadd.f32 %v291, %v527
      %v529 = vpop.f32.mrb[0].mxu0
      %530 = vmatprep.mubr.bf16.mxu0 0
      %531 = vmatmul.mubr.bf16.gmra.mrb[0].mxu0 %v402
      %v532 = vpop.f32.mrb[0].mxu0
      %v533 = vadd.f32 %v291, %v532
      %v534 = vpop.f32.mrb[0].mxu0
      %v535 = vpop.f32.mrb[0].mxu0
      %v536 = vadd.f32 %v291, %v535
      %v537 = vpop.f32.mrb[0].mxu0
      %538 = vmatprep.mubr.bf16.mxu0 0
      %539 = vmatmul.mubr.bf16.gmra.mrb[0].mxu0 %v405
      %v540 = vpop.f32.mrb[0].mxu0
      %v541 = vadd.f32 %v291, %v540
      %v542 = vpop.f32.mrb[0].mxu0
      %v543 = vpop.f32.mrb[0].mxu0
      %v544 = vadd.f32 %v291, %v543
      %v545 = vpop.f32.mrb[0].mxu0
      %546 = vmatprep.mubr.bf16.mxu0 0
      %547 = vmatmul.mubr.bf16.gmra.mrb[0].mxu0 %v408
      %v548 = vpop.f32.mrb[0].mxu0
      %v549 = vadd.f32 %v291, %v548
      %v550 = vpop.f32.mrb[0].mxu0
      %v551 = vpop.f32.mrb[0].mxu0
      %v552 = vadd.f32 %v291, %v551
      %v553 = vpop.f32.mrb[0].mxu0
      %554 = vmatprep.mubr.bf16.mxu0 0
      %555 = vmatmul.mubr.bf16.gmra.mrb[0].mxu0 %v411
      %v556 = vpop.f32.mrb[0].mxu0
      %v557 = vadd.f32 %v291, %v556
      %v558 = vpop.f32.mrb[0].mxu0
      %v559 = vpop.f32.mrb[0].mxu0
      %v560 = vadd.f32 %v291, %v559
      %v561 = vpop.f32.mrb[0].mxu0
      %562 = vmatprep.mubr.bf16.mxu0 0
      %563 = vmatmul.mubr.bf16.gmra.mrb[0].mxu0 %v414
      %v564 = vpop.f32.mrb[0].mxu0
      %v565 = vadd.f32 %v291, %v564
      %v566 = vpop.f32.mrb[0].mxu0
      %v567 = vpop.f32.mrb[0].mxu0
      %v568 = vadd.f32 %v291, %v567
      %v569 = vpop.f32.mrb[0].mxu0
      %570 = vmatprep.mubr.bf16.mxu0 0
      %571 = vmatmul.mubr.bf16.gmra.mrb[0].mxu0 %v417
      %v572 = vpop.f32.mrb[0].mxu0
      %v573 = vadd.f32 %v291, %v572
      %v574 = vpop.f32.mrb[0].mxu0
      %v575 = vpop.f32.mrb[0].mxu0
      %v576 = vadd.f32 %v291, %v575
      %v577 = vpop.f32.mrb[0].mxu0
      %578 = vmatprep.mubr.bf16.mxu0 0
      %579 = vmatmul.mubr.bf16.gmra.mrb[0].mxu0 %v420
      %v580 = vpop.f32.mrb[0].mxu0
      %v581 = vadd.f32 %v291, %v580
      %v582 = vpop.f32.mrb[0].mxu0
      %v583 = vpop.f32.mrb[0].mxu0
      %v584 = vadd.f32 %v291, %v583
      %v585 = vpop.f32.mrb[0].mxu0
      %586 = vdwg.mxu0
      %v587 = vmax.f32 %v461, 0.0
      %v588 = vmax.f32 %v464, 0.0
      %v589 = vmax.f32 %v469, 0.0
      %v590 = vmax.f32 %v472, 0.0
      %v591 = vmax.f32 %v477, 0.0
      %v592 = vmax.f32 %v480, 0.0
      %v593 = vmax.f32 %v485, 0.0
      %v594 = vmax.f32 %v488, 0.0
      %v595 = vmax.f32 %v493, 0.0
      %v596 = vmax.f32 %v496, 0.0
      %v597 = vmax.f32 %v501, 0.0
      %v598 = vmax.f32 %v504, 0.0
      %v599 = vmax.f32 %v509, 0.0
      %v600 = vmax.f32 %v512, 0.0
      %v601 = vmax.f32 %v517, 0.0
      %v602 = vmax.f32 %v520, 0.0
      %v603 = vmax.f32 %v525, 0.0
      %v604 = vmax.f32 %v528, 0.0
      %v605 = vmax.f32 %v533, 0.0
      %v606 = vmax.f32 %v536, 0.0
      %v607 = vmax.f32 %v541, 0.0
      %v608 = vmax.f32 %v544, 0.0
      %v609 = vmax.f32 %v549, 0.0
      %v610 = vmax.f32 %v552, 0.0
      %v611 = vmax.f32 %v557, 0.0
      %v612 = vmax.f32 %v560, 0.0
      %v613 = vmax.f32 %v565, 0.0
      %v614 = vmax.f32 %v568, 0.0
      %v615 = vmax.f32 %v573, 0.0
      %v616 = vmax.f32 %v576, 0.0
      %v617 = vmax.f32 %v581, 0.0
      %v618 = vmax.f32 %v584, 0.0
      %v619 = vrot.slane %v587, 7
      %v620 = vrot.slane %v588, 7
      %v621 = vrot.slane %v589, 7
      %v622 = vrot.slane %v590, 7
      %v623 = vrot.slane %v591, 7
      %v624 = vrot.slane %v592, 7
      %v625 = vrot.slane %v593, 7
      %v626 = vrot.slane %v594, 7
      %v627 = vrot.slane %v595, 7
      %v628 = vrot.slane %v596, 7
      %v629 = vrot.slane %v597, 7
      %v630 = vrot.slane %v598, 7
      %v631 = vrot.slane %v599, 7
      %v632 = vrot.slane %v600, 7
      %v633 = vrot.slane %v601, 7
      %v634 = vrot.slane %v602, 7
      %v635 = vrot.slane %v603, 7
      %v636 = vrot.slane %v604, 7
      %v637 = vrot.slane %v605, 7
      %v638 = vrot.slane %v606, 7
      %v639 = vrot.slane %v607, 7
      %v640 = vrot.slane %v608, 7
      %v641 = vrot.slane %v609, 7
      %v642 = vrot.slane %v610, 7
      %v643 = vrot.slane %v611, 7
      %v644 = vrot.slane %v612, 7
      %v645 = vrot.slane %v613, 7
      %v646 = vrot.slane %v614, 7
      %v647 = vrot.slane %v615, 7
      %v648 = vrot.slane %v616, 7
      %v649 = vrot.slane %v617, 7
      %v650 = vrot.slane %v618, 7
      %v651 = vlaneseq
      %v652 = vshrl.u32 %v651, 7
      %vm653 = vcmp.lt.s32.totalorder %v652, 1
      %v654 = vsel %vm653, %v649, %v650
      %v655 = vsel %vm653, %v648, %v649
      %v656 = vsel %vm653, %v647, %v648
      %v657 = vsel %vm653, %v646, %v647
      %v658 = vsel %vm653, %v645, %v646
      %v659 = vsel %vm653, %v644, %v645
      %v660 = vsel %vm653, %v643, %v644
      %v661 = vsel %vm653, %v642, %v643
      %v662 = vsel %vm653, %v641, %v642
      %v663 = vsel %vm653, %v640, %v641
      %v664 = vsel %vm653, %v639, %v640
      %v665 = vsel %vm653, %v638, %v639
      %v666 = vsel %vm653, %v637, %v638
      %v667 = vsel %vm653, %v636, %v637
      %v668 = vsel %vm653, %v635, %v636
      %v669 = vsel %vm653, %v634, %v635
      %v670 = vsel %vm653, %v633, %v634
      %v671 = vsel %vm653, %v632, %v633
      %v672 = vsel %vm653, %v631, %v632
      %v673 = vsel %vm653, %v630, %v631
      %v674 = vsel %vm653, %v629, %v630
      %v675 = vsel %vm653, %v628, %v629
      %v676 = vsel %vm653, %v627, %v628
      %v677 = vsel %vm653, %v626, %v627
      %v678 = vsel %vm653, %v625, %v626
      %v679 = vsel %vm653, %v624, %v625
      %v680 = vsel %vm653, %v623, %v624
      %v681 = vsel %vm653, %v622, %v623
      %v682 = vsel %vm653, %v621, %v622
      %v683 = vsel %vm653, %v620, %v621
      %v684 = vsel %vm653, %v619, %v620
      %v685 = vsel %vm653, %v650, %v619
      %v686 = vld [vmem:[%s5] sm:$0xff]
      %v687 = vld [vmem:[%s5 + $0x8] sm:$0xff]
      %v688 = vld [vmem:[%s5 + $0x10] sm:$0xff]
      %v689 = vld [vmem:[%s5 + $0x18] sm:$0xff]
      %v690 = vld [vmem:[%s5 + $0x20] sm:$0xff]
      %v691 = vld [vmem:[%s5 + $0x28] sm:$0xff]
      %v692 = vld [vmem:[%s5 + $0x30] sm:$0xff]
      %v693 = vld [vmem:[%s5 + $0x38] sm:$0xff]
      %v694 = vld [vmem:[%s5 + $0x40] sm:$0xff]
      %v695 = vld [vmem:[%s5 + $0x48] sm:$0xff]
      %v696 = vld [vmem:[%s5 + $0x50] sm:$0xff]
      %v697 = vld [vmem:[%s5 + $0x58] sm:$0xff]
      %v698 = vld [vmem:[%s5 + $0x60] sm:$0xff]
      %v699 = vld [vmem:[%s5 + $0x68] sm:$0xff]
      %v700 = vld [vmem:[%s5 + $0x70] sm:$0xff]
      %v701 = vld [vmem:[%s5 + $0x78] sm:$0xff]
      %v702 = vld [vmem:[%s5 + $0x80] sm:$0xff]
      %v703 = vld [vmem:[%s5 + $0x88] sm:$0xff]
      %v704 = vld [vmem:[%s5 + $0x90] sm:$0xff]
      %v705 = vld [vmem:[%s5 + $0x98] sm:$0xff]
      %v706 = vld [vmem:[%s5 + $0xa0] sm:$0xff]
      %v707 = vld [vmem:[%s5 + $0xa8] sm:$0xff]
      %v708 = vld [vmem:[%s5 + $0xb0] sm:$0xff]
      %v709 = vld [vmem:[%s5 + $0xb8] sm:$0xff]
      %v710 = vld [vmem:[%s5 + $0xc0] sm:$0xff]
      %v711 = vld [vmem:[%s5 + $0xc8] sm:$0xff]
      %v712 = vld [vmem:[%s5 + $0xd0] sm:$0xff]
      %v713 = vld [vmem:[%s5 + $0xd8] sm:$0xff]
      %v714 = vld [vmem:[%s5 + $0xe0] sm:$0xff]
      %v715 = vld [vmem:[%s5 + $0xe8] sm:$0xff]
      %v716 = vld [vmem:[%s5 + $0xf0] sm:$0xff]
      %v717 = vld [vmem:[%s5 + $0xf8] sm:$0xff]
      %719 = vset.pattern.permute.xlu0 0
      %720 = vperm.xlu0 %719, %v686
      %v721 = vpop.permute.xlu0 %720
      %724 = vset.pattern.permute.xlu0 0
      %725 = vperm.xlu0 %724, %v687
      %v726 = vpop.permute.xlu0 %725
      %729 = vset.pattern.permute.xlu0 0
      %730 = vperm.xlu0 %729, %v688
      %v731 = vpop.permute.xlu0 %730
      %734 = vset.pattern.permute.xlu0 0
      %735 = vperm.xlu0 %734, %v689
      %v736 = vpop.permute.xlu0 %735
      %739 = vset.pattern.permute.xlu0 0
      %740 = vperm.xlu0 %739, %v690
      %v741 = vpop.permute.xlu0 %740
      %744 = vset.pattern.permute.xlu0 0
      %745 = vperm.xlu0 %744, %v691
      %v746 = vpop.permute.xlu0 %745
      %749 = vset.pattern.permute.xlu0 0
      %750 = vperm.xlu0 %749, %v692
      %v751 = vpop.permute.xlu0 %750
      %754 = vset.pattern.permute.xlu0 0
      %755 = vperm.xlu0 %754, %v693
      %v756 = vpop.permute.xlu0 %755
      %759 = vset.pattern.permute.xlu0 0
      %760 = vperm.xlu0 %759, %v694
      %v761 = vpop.permute.xlu0 %760
      %764 = vset.pattern.permute.xlu0 0
      %765 = vperm.xlu0 %764, %v695
      %v766 = vpop.permute.xlu0 %765
      %769 = vset.pattern.permute.xlu0 0
      %770 = vperm.xlu0 %769, %v696
      %v771 = vpop.permute.xlu0 %770
      %774 = vset.pattern.permute.xlu0 0
      %775 = vperm.xlu0 %774, %v697
      %v776 = vpop.permute.xlu0 %775
      %779 = vset.pattern.permute.xlu0 0
      %780 = vperm.xlu0 %779, %v698
      %v781 = vpop.permute.xlu0 %780
      %784 = vset.pattern.permute.xlu0 0
      %785 = vperm.xlu0 %784, %v699
      %v786 = vpop.permute.xlu0 %785
      %789 = vset.pattern.permute.xlu0 0
      %790 = vperm.xlu0 %789, %v700
      %v791 = vpop.permute.xlu0 %790
      %794 = vset.pattern.permute.xlu0 0
      %795 = vperm.xlu0 %794, %v701
      %v796 = vpop.permute.xlu0 %795
      %799 = vset.pattern.permute.xlu0 0
      %800 = vperm.xlu0 %799, %v702
      %v801 = vpop.permute.xlu0 %800
      %804 = vset.pattern.permute.xlu0 0
      %805 = vperm.xlu0 %804, %v703
      %v806 = vpop.permute.xlu0 %805
      %809 = vset.pattern.permute.xlu0 0
      %810 = vperm.xlu0 %809, %v704
      %v811 = vpop.permute.xlu0 %810
      %814 = vset.pattern.permute.xlu0 0
      %815 = vperm.xlu0 %814, %v705
      %v816 = vpop.permute.xlu0 %815
      %819 = vset.pattern.permute.xlu0 0
      %820 = vperm.xlu0 %819, %v706
      %v821 = vpop.permute.xlu0 %820
      %824 = vset.pattern.permute.xlu0 0
      %825 = vperm.xlu0 %824, %v707
      %v826 = vpop.permute.xlu0 %825
      %829 = vset.pattern.permute.xlu0 0
      %830 = vperm.xlu0 %829, %v708
      %v831 = vpop.permute.xlu0 %830
      %834 = vset.pattern.permute.xlu0 0
      %835 = vperm.xlu0 %834, %v709
      %v836 = vpop.permute.xlu0 %835
      %839 = vset.pattern.permute.xlu0 0
      %840 = vperm.xlu0 %839, %v710
      %v841 = vpop.permute.xlu0 %840
      %844 = vset.pattern.permute.xlu0 0
      %845 = vperm.xlu0 %844, %v711
      %v846 = vpop.permute.xlu0 %845
      %849 = vset.pattern.permute.xlu0 0
      %850 = vperm.xlu0 %849, %v712
      %v851 = vpop.permute.xlu0 %850
      %854 = vset.pattern.permute.xlu0 0
      %855 = vperm.xlu0 %854, %v713
      %v856 = vpop.permute.xlu0 %855
      %859 = vset.pattern.permute.xlu0 0
      %860 = vperm.xlu0 %859, %v714
      %v861 = vpop.permute.xlu0 %860
      %864 = vset.pattern.permute.xlu0 0
      %865 = vperm.xlu0 %864, %v715
      %v866 = vpop.permute.xlu0 %865
      %869 = vset.pattern.permute.xlu0 0
      %870 = vperm.xlu0 %869, %v716
      %v871 = vpop.permute.xlu0 %870
      %874 = vset.pattern.permute.xlu0 0
      %875 = vperm.xlu0 %874, %v717
      %v876 = vpop.permute.xlu0 %875
      %v878 = vmul.f32 %v655, %v721
      %v879 = vmul.f32 %v654, %v726
      %v880 = vmul.f32 %v685, %v731
      %v881 = vmul.f32 %v684, %v736
      %v882 = vmul.f32 %v683, %v741
      %v883 = vmul.f32 %v682, %v746
      %v884 = vmul.f32 %v681, %v751
      %v885 = vmul.f32 %v680, %v756
      %v886 = vmul.f32 %v679, %v761
      %v887 = vmul.f32 %v678, %v766
      %v888 = vmul.f32 %v677, %v771
      %v889 = vmul.f32 %v676, %v776
      %v890 = vmul.f32 %v675, %v781
      %v891 = vmul.f32 %v674, %v786
      %v892 = vmul.f32 %v673, %v791
      %v893 = vmul.f32 %v672, %v796
      %v894 = vmul.f32 %v671, %v801
      %v895 = vmul.f32 %v670, %v806
      %v896 = vmul.f32 %v669, %v811
      %v897 = vmul.f32 %v668, %v816
      %v898 = vmul.f32 %v667, %v821
      %v899 = vmul.f32 %v666, %v826
      %v900 = vmul.f32 %v665, %v831
      %v901 = vmul.f32 %v664, %v836
      %v902 = vmul.f32 %v663, %v841
      %v903 = vmul.f32 %v662, %v846
      %v904 = vmul.f32 %v661, %v851
      %v905 = vmul.f32 %v660, %v856
      %v906 = vmul.f32 %v659, %v861
      %v907 = vmul.f32 %v658, %v866
      %v908 = vmul.f32 %v657, %v871
      %v909 = vmul.f32 %v656, %v876
      %v910 = vpack.c.bf16 %v879, %v878
      %v911 = vpack.c.bf16 %v881, %v880
      %v912 = vpack.c.bf16 %v883, %v882
      %v913 = vpack.c.bf16 %v885, %v884
      %v914 = vpack.c.bf16 %v887, %v886
      %v915 = vpack.c.bf16 %v889, %v888
      %v916 = vpack.c.bf16 %v891, %v890
      %v917 = vpack.c.bf16 %v893, %v892
      %v918 = vpack.c.bf16 %v895, %v894
      %v919 = vpack.c.bf16 %v897, %v896
      %v920 = vpack.c.bf16 %v899, %v898
      %v921 = vpack.c.bf16 %v901, %v900
      %v922 = vpack.c.bf16 %v903, %v902
      %v923 = vpack.c.bf16 %v905, %v904
      %v924 = vpack.c.bf16 %v907, %v906
      %v925 = vpack.c.bf16 %v909, %v908
      %vm926 = vcmask 64512
      %927 = vst.msk [vmem:[#allocation2] sm:$0xff] %vm926, %v910
      %928 = vst.msk [vmem:[#allocation2 + $0x8] sm:$0xff] %vm926, %v911
      %929 = vst.msk [vmem:[#allocation2 + $0x10] sm:$0xff] %vm926, %v912
      %930 = vst.msk [vmem:[#allocation2 + $0x18] sm:$0xff] %vm926, %v913
      %931 = vst.msk [vmem:[#allocation2 + $0x20] sm:$0xff] %vm926, %v914
      %932 = vst.msk [vmem:[#allocation2 + $0x28] sm:$0xff] %vm926, %v915
      %933 = vst.msk [vmem:[#allocation2 + $0x30] sm:$0xff] %vm926, %v916
      %934 = vst.msk [vmem:[#allocation2 + $0x38] sm:$0xff] %vm926, %v917
      %935 = vst.msk [vmem:[#allocation2 + $0x40] sm:$0xff] %vm926, %v918
      %936 = vst.msk [vmem:[#allocation2 + $0x48] sm:$0xff] %vm926, %v919
      %937 = vst.msk [vmem:[#allocation2 + $0x50] sm:$0xff] %vm926, %v920
      %938 = vst.msk [vmem:[#allocation2 + $0x58] sm:$0xff] %vm926, %v921
      %939 = vst.msk [vmem:[#allocation2 + $0x60] sm:$0xff] %vm926, %v922
      %940 = vst.msk [vmem:[#allocation2 + $0x68] sm:$0xff] %vm926, %v923
      %941 = vst.msk [vmem:[#allocation2 + $0x70] sm:$0xff] %vm926, %v924
      %942 = vst.msk [vmem:[#allocation2 + $0x78] sm:$0xff] %vm926, %v925
      %s943 = scalar_lea.vmem %s5, 256
      %v944 = vld [vmem:[%s943] sm:$0xff]
      %v945 = vld [vmem:[%s943 + $0x8] sm:$0xff]
      %v946 = vld [vmem:[%s943 + $0x10] sm:$0xff]
      %v947 = vld [vmem:[%s943 + $0x18] sm:$0xff]
      %v948 = vld [vmem:[%s943 + $0x20] sm:$0xff]
      %v949 = vld [vmem:[%s943 + $0x28] sm:$0xff]
      %v950 = vld [vmem:[%s943 + $0x30] sm:$0xff]
      %v951 = vld [vmem:[%s943 + $0x38] sm:$0xff]
      %v952 = vld [vmem:[%s943 + $0x40] sm:$0xff]
      %v953 = vld [vmem:[%s943 + $0x48] sm:$0xff]
      %v954 = vld [vmem:[%s943 + $0x50] sm:$0xff]
      %v955 = vld [vmem:[%s943 + $0x58] sm:$0xff]
      %v956 = vld [vmem:[%s943 + $0x60] sm:$0xff]
      %v957 = vld [vmem:[%s943 + $0x68] sm:$0xff]
      %v958 = vld [vmem:[%s943 + $0x70] sm:$0xff]
      %v959 = vld [vmem:[%s943 + $0x78] sm:$0xff]
      %v960 = vld [vmem:[%s943 + $0x80] sm:$0xff]
      %v961 = vld [vmem:[%s943 + $0x88] sm:$0xff]
      %v962 = vld [vmem:[%s943 + $0x90] sm:$0xff]
      %v963 = vld [vmem:[%s943 + $0x98] sm:$0xff]
      %v964 = vld [vmem:[%s943 + $0xa0] sm:$0xff]
      %v965 = vld [vmem:[%s943 + $0xa8] sm:$0xff]
      %v966 = vld [vmem:[%s943 + $0xb0] sm:$0xff]
      %v967 = vld [vmem:[%s943 + $0xb8] sm:$0xff]
      %v968 = vld [vmem:[%s943 + $0xc0] sm:$0xff]
      %v969 = vld [vmem:[%s943 + $0xc8] sm:$0xff]
      %v970 = vld [vmem:[%s943 + $0xd0] sm:$0xff]
      %v971 = vld [vmem:[%s943 + $0xd8] sm:$0xff]
      %v972 = vld [vmem:[%s943 + $0xe0] sm:$0xff]
      %v973 = vld [vmem:[%s943 + $0xe8] sm:$0xff]
      %v974 = vld [vmem:[%s943 + $0xf0] sm:$0xff]
      %v975 = vld [vmem:[%s943 + $0xf8] sm:$0xff]
      %977 = vset.pattern.permute.xlu0 0
      %978 = vperm.xlu0 %977, %v944
      %v979 = vpop.permute.xlu0 %978
      %982 = vset.pattern.permute.xlu0 0
      %983 = vperm.xlu0 %982, %v945
      %v984 = vpop.permute.xlu0 %983
      %987 = vset.pattern.permute.xlu0 0
      %988 = vperm.xlu0 %987, %v946
      %v989 = vpop.permute.xlu0 %988
      %992 = vset.pattern.permute.xlu0 0
      %993 = vperm.xlu0 %992, %v947
      %v994 = vpop.permute.xlu0 %993
      %997 = vset.pattern.permute.xlu0 0
      %998 = vperm.xlu0 %997, %v948
      %v999 = vpop.permute.xlu0 %998
      %1002 = vset.pattern.permute.xlu0 0
      %1003 = vperm.xlu0 %1002, %v949
      %v1004 = vpop.permute.xlu0 %1003
      %1007 = vset.pattern.permute.xlu0 0
      %1008 = vperm.xlu0 %1007, %v950
      %v1009 = vpop.permute.xlu0 %1008
      %1012 = vset.pattern.permute.xlu0 0
      %1013 = vperm.xlu0 %1012, %v951
      %v1014 = vpop.permute.xlu0 %1013
      %1017 = vset.pattern.permute.xlu0 0
      %1018 = vperm.xlu0 %1017, %v952
      %v1019 = vpop.permute.xlu0 %1018
      %1022 = vset.pattern.permute.xlu0 0
      %1023 = vperm.xlu0 %1022, %v953
      %v1024 = vpop.permute.xlu0 %1023
      %1027 = vset.pattern.permute.xlu0 0
      %1028 = vperm.xlu0 %1027, %v954
      %v1029 = vpop.permute.xlu0 %1028
      %1032 = vset.pattern.permute.xlu0 0
      %1033 = vperm.xlu0 %1032, %v955
      %v1034 = vpop.permute.xlu0 %1033
      %1037 = vset.pattern.permute.xlu0 0
      %1038 = vperm.xlu0 %1037, %v956
      %v1039 = vpop.permute.xlu0 %1038
      %1042 = vset.pattern.permute.xlu0 0
      %1043 = vperm.xlu0 %1042, %v957
      %v1044 = vpop.permute.xlu0 %1043
      %1047 = vset.pattern.permute.xlu0 0
      %1048 = vperm.xlu0 %1047, %v958
      %v1049 = vpop.permute.xlu0 %1048
      %1052 = vset.pattern.permute.xlu0 0
      %1053 = vperm.xlu0 %1052, %v959
      %v1054 = vpop.permute.xlu0 %1053
      %1057 = vset.pattern.permute.xlu0 0
      %1058 = vperm.xlu0 %1057, %v960
      %v1059 = vpop.permute.xlu0 %1058
      %1062 = vset.pattern.permute.xlu0 0
      %1063 = vperm.xlu0 %1062, %v961
      %v1064 = vpop.permute.xlu0 %1063
      %1067 = vset.pattern.permute.xlu0 0
      %1068 = vperm.xlu0 %1067, %v962
      %v1069 = vpop.permute.xlu0 %1068
      %1072 = vset.pattern.permute.xlu0 0
      %1073 = vperm.xlu0 %1072, %v963
      %v1074 = vpop.permute.xlu0 %1073
      %1077 = vset.pattern.permute.xlu0 0
      %1078 = vperm.xlu0 %1077, %v964
      %v1079 = vpop.permute.xlu0 %1078
      %1082 = vset.pattern.permute.xlu0 0
      %1083 = vperm.xlu0 %1082, %v965
      %v1084 = vpop.permute.xlu0 %1083
      %1087 = vset.pattern.permute.xlu0 0
      %1088 = vperm.xlu0 %1087, %v966
      %v1089 = vpop.permute.xlu0 %1088
      %1092 = vset.pattern.permute.xlu0 0
      %1093 = vperm.xlu0 %1092, %v967
      %v1094 = vpop.permute.xlu0 %1093
      %1097 = vset.pattern.permute.xlu0 0
      %1098 = vperm.xlu0 %1097, %v968
      %v1099 = vpop.permute.xlu0 %1098
      %1102 = vset.pattern.permute.xlu0 0
      %1103 = vperm.xlu0 %1102, %v969
      %v1104 = vpop.permute.xlu0 %1103
      %1107 = vset.pattern.permute.xlu0 0
      %1108 = vperm.xlu0 %1107, %v970
      %v1109 = vpop.permute.xlu0 %1108
      %1112 = vset.pattern.permute.xlu0 0
      %1113 = vperm.xlu0 %1112, %v971
      %v1114 = vpop.permute.xlu0 %1113
      %1117 = vset.pattern.permute.xlu0 0
      %1118 = vperm.xlu0 %1117, %v972
      %v1119 = vpop.permute.xlu0 %1118
      %1122 = vset.pattern.permute.xlu0 0
      %1123 = vperm.xlu0 %1122, %v973
      %v1124 = vpop.permute.xlu0 %1123
      %1127 = vset.pattern.permute.xlu0 0
      %1128 = vperm.xlu0 %1127, %v974
      %v1129 = vpop.permute.xlu0 %1128
      %1132 = vset.pattern.permute.xlu0 0
      %1133 = vperm.xlu0 %1132, %v975
      %v1134 = vpop.permute.xlu0 %1133
      %v1136 = vmul.f32 %v617, %v979
      %v1137 = vmul.f32 %v618, %v984
      %v1138 = vmul.f32 %v587, %v989
      %v1139 = vmul.f32 %v588, %v994
      %v1140 = vmul.f32 %v589, %v999
      %v1141 = vmul.f32 %v590, %v1004
      %v1142 = vmul.f32 %v591, %v1009
      %v1143 = vmul.f32 %v592, %v1014
      %v1144 = vmul.f32 %v593, %v1019
      %v1145 = vmul.f32 %v594, %v1024
      %v1146 = vmul.f32 %v595, %v1029
      %v1147 = vmul.f32 %v596, %v1034
      %v1148 = vmul.f32 %v597, %v1039
      %v1149 = vmul.f32 %v598, %v1044
      %v1150 = vmul.f32 %v599, %v1049
      %v1151 = vmul.f32 %v600, %v1054
      %v1152 = vmul.f32 %v601, %v1059
      %v1153 = vmul.f32 %v602, %v1064
      %v1154 = vmul.f32 %v603, %v1069
      %v1155 = vmul.f32 %v604, %v1074
      %v1156 = vmul.f32 %v605, %v1079
      %v1157 = vmul.f32 %v606, %v1084
      %v1158 = vmul.f32 %v607, %v1089
      %v1159 = vmul.f32 %v608, %v1094
      %v1160 = vmul.f32 %v609, %v1099
      %v1161 = vmul.f32 %v610, %v1104
      %v1162 = vmul.f32 %v611, %v1109
      %v1163 = vmul.f32 %v612, %v1114
      %v1164 = vmul.f32 %v613, %v1119
      %v1165 = vmul.f32 %v614, %v1124
      %v1166 = vmul.f32 %v615, %v1129
      %v1167 = vmul.f32 %v616, %v1134
      %v1168 = vpack.c.bf16 %v1137, %v1136
      %v1169 = vpack.c.bf16 %v1139, %v1138
      %v1170 = vpack.c.bf16 %v1141, %v1140
      %v1171 = vpack.c.bf16 %v1143, %v1142
      %v1172 = vpack.c.bf16 %v1145, %v1144
      %v1173 = vpack.c.bf16 %v1147, %v1146
      %v1174 = vpack.c.bf16 %v1149, %v1148
      %v1175 = vpack.c.bf16 %v1151, %v1150
      %v1176 = vpack.c.bf16 %v1153, %v1152
      %v1177 = vpack.c.bf16 %v1155, %v1154
      %v1178 = vpack.c.bf16 %v1157, %v1156
      %v1179 = vpack.c.bf16 %v1159, %v1158
      %v1180 = vpack.c.bf16 %v1161, %v1160
      %v1181 = vpack.c.bf16 %v1163, %v1162
      %v1182 = vpack.c.bf16 %v1165, %v1164
      %v1183 = vpack.c.bf16 %v1167, %v1166
      %1200 = vrot.lane.b32.xlu0 %v1168, 8
      %v1201 = vpop.permute.xlu0 %1200
      %1202 = vrot.lane.b32.xlu0 %v1169, 8
      %v1203 = vpop.permute.xlu0 %1202
      %1204 = vrot.lane.b32.xlu0 %v1170, 8
      %v1205 = vpop.permute.xlu0 %1204
      %1206 = vrot.lane.b32.xlu0 %v1171, 8
      %v1207 = vpop.permute.xlu0 %1206
      %1208 = vrot.lane.b32.xlu0 %v1172, 8
      %v1209 = vpop.permute.xlu0 %1208
      %1210 = vrot.lane.b32.xlu0 %v1173, 8
      %v1211 = vpop.permute.xlu0 %1210
      %1212 = vrot.lane.b32.xlu0 %v1174, 8
      %v1213 = vpop.permute.xlu0 %1212
      %1214 = vrot.lane.b32.xlu0 %v1175, 8
      %v1215 = vpop.permute.xlu0 %1214
      %1216 = vrot.lane.b32.xlu0 %v1176, 8
      %v1217 = vpop.permute.xlu0 %1216
      %1218 = vrot.lane.b32.xlu0 %v1177, 8
      %v1219 = vpop.permute.xlu0 %1218
      %1220 = vrot.lane.b32.xlu0 %v1178, 8
      %v1221 = vpop.permute.xlu0 %1220
      %1222 = vrot.lane.b32.xlu0 %v1179, 8
      %v1223 = vpop.permute.xlu0 %1222
      %1224 = vrot.lane.b32.xlu0 %v1180, 8
      %v1225 = vpop.permute.xlu0 %1224
      %1226 = vrot.lane.b32.xlu0 %v1181, 8
      %v1227 = vpop.permute.xlu0 %1226
      %1228 = vrot.lane.b32.xlu0 %v1182, 8
      %v1229 = vpop.permute.xlu0 %1228
      %1230 = vrot.lane.b32.xlu0 %v1183, 8
      %v1231 = vpop.permute.xlu0 %1230
      %vm1248 = vcmask 130112
      %1249 = vst.msk [vmem:[#allocation2] sm:$0xff] %vm1248, %v1201
      %1250 = vst.msk [vmem:[#allocation2 + $0x8] sm:$0xff] %vm1248, %v1203
      %1251 = vst.msk [vmem:[#allocation2 + $0x10] sm:$0xff] %vm1248, %v1205
      %1252 = vst.msk [vmem:[#allocation2 + $0x18] sm:$0xff] %vm1248, %v1207
      %1253 = vst.msk [vmem:[#allocation2 + $0x20] sm:$0xff] %vm1248, %v1209
      %1254 = vst.msk [vmem:[#allocation2 + $0x28] sm:$0xff] %vm1248, %v1211
      %1255 = vst.msk [vmem:[#allocation2 + $0x30] sm:$0xff] %vm1248, %v1213
      %1256 = vst.msk [vmem:[#allocation2 + $0x38] sm:$0xff] %vm1248, %v1215
      %1257 = vst.msk [vmem:[#allocation2 + $0x40] sm:$0xff] %vm1248, %v1217
      %1258 = vst.msk [vmem:[#allocation2 + $0x48] sm:$0xff] %vm1248, %v1219
      %1259 = vst.msk [vmem:[#allocation2 + $0x50] sm:$0xff] %vm1248, %v1221
      %1260 = vst.msk [vmem:[#allocation2 + $0x58] sm:$0xff] %vm1248, %v1223
      %1261 = vst.msk [vmem:[#allocation2 + $0x60] sm:$0xff] %vm1248, %v1225
      %1262 = vst.msk [vmem:[#allocation2 + $0x68] sm:$0xff] %vm1248, %v1227
      %1263 = vst.msk [vmem:[#allocation2 + $0x70] sm:$0xff] %vm1248, %v1229
      %1264 = vst.msk [vmem:[#allocation2 + $0x78] sm:$0xff] %vm1248, %v1231
      %v1265 = vrot.slane %v587, 1
      %v1266 = vrot.slane %v588, 1
      %v1267 = vrot.slane %v589, 1
      %v1268 = vrot.slane %v590, 1
      %v1269 = vrot.slane %v591, 1
      %v1270 = vrot.slane %v592, 1
      %v1271 = vrot.slane %v593, 1
      %v1272 = vrot.slane %v594, 1
      %v1273 = vrot.slane %v595, 1
      %v1274 = vrot.slane %v596, 1
      %v1275 = vrot.slane %v597, 1
      %v1276 = vrot.slane %v598, 1
      %v1277 = vrot.slane %v599, 1
      %v1278 = vrot.slane %v600, 1
      %v1279 = vrot.slane %v601, 1
      %v1280 = vrot.slane %v602, 1
      %v1281 = vrot.slane %v603, 1
      %v1282 = vrot.slane %v604, 1
      %v1283 = vrot.slane %v605, 1
      %v1284 = vrot.slane %v606, 1
      %v1285 = vrot.slane %v607, 1
      %v1286 = vrot.slane %v608, 1
      %v1287 = vrot.slane %v609, 1
      %v1288 = vrot.slane %v610, 1
      %v1289 = vrot.slane %v611, 1
      %v1290 = vrot.slane %v612, 1
      %v1291 = vrot.slane %v613, 1
      %v1292 = vrot.slane %v614, 1
      %v1293 = vrot.slane %v615, 1
      %v1294 = vrot.slane %v616, 1
      %v1295 = vrot.slane %v617, 1
      %v1296 = vrot.slane %v618, 1
      %vm1297 = vcmp.lt.s32.totalorder %v652, 7
      %v1298 = vsel %vm1297, %v1295, %v1296
      %v1299 = vsel %vm1297, %v1294, %v1295
      %v1300 = vsel %vm1297, %v1293, %v1294
      %v1301 = vsel %vm1297, %v1292, %v1293
      %v1302 = vsel %vm1297, %v1291, %v1292
      %v1303 = vsel %vm1297, %v1290, %v1291
      %v1304 = vsel %vm1297, %v1289, %v1290
      %v1305 = vsel %vm1297, %v1288, %v1289
      %v1306 = vsel %vm1297, %v1287, %v1288
      %v1307 = vsel %vm1297, %v1286, %v1287
      %v1308 = vsel %vm1297, %v1285, %v1286
      %v1309 = vsel %vm1297, %v1284, %v1285
      %v1310 = vsel %vm1297, %v1283, %v1284
      %v1311 = vsel %vm1297, %v1282, %v1283
      %v1312 = vsel %vm1297, %v1281, %v1282
      %v1313 = vsel %vm1297, %v1280, %v1281
      %v1314 = vsel %vm1297, %v1279, %v1280
      %v1315 = vsel %vm1297, %v1278, %v1279
      %v1316 = vsel %vm1297, %v1277, %v1278
      %v1317 = vsel %vm1297, %v1276, %v1277
      %v1318 = vsel %vm1297, %v1275, %v1276
      %v1319 = vsel %vm1297, %v1274, %v1275
      %v1320 = vsel %vm1297, %v1273, %v1274
      %v1321 = vsel %vm1297, %v1272, %v1273
      %v1322 = vsel %vm1297, %v1271, %v1272
      %v1323 = vsel %vm1297, %v1270, %v1271
      %v1324 = vsel %vm1297, %v1269, %v1270
      %v1325 = vsel %vm1297, %v1268, %v1269
      %v1326 = vsel %vm1297, %v1267, %v1268
      %v1327 = vsel %vm1297, %v1266, %v1267
      %v1328 = vsel %vm1297, %v1265, %v1266
      %v1329 = vsel %vm1297, %v1296, %v1265
      %s1330 = scalar_lea.vmem %s5, 512
      %v1331 = vld [vmem:[%s1330] sm:$0xff]
      %v1332 = vld [vmem:[%s1330 + $0x8] sm:$0xff]
      %v1333 = vld [vmem:[%s1330 + $0x10] sm:$0xff]
      %v1334 = vld [vmem:[%s1330 + $0x18] sm:$0xff]
      %v1335 = vld [vmem:[%s1330 + $0x20] sm:$0xff]
      %v1336 = vld [vmem:[%s1330 + $0x28] sm:$0xff]
      %v1337 = vld [vmem:[%s1330 + $0x30] sm:$0xff]
      %v1338 = vld [vmem:[%s1330 + $0x38] sm:$0xff]
      %v1339 = vld [vmem:[%s1330 + $0x40] sm:$0xff]
      %v1340 = vld [vmem:[%s1330 + $0x48] sm:$0xff]
      %v1341 = vld [vmem:[%s1330 + $0x50] sm:$0xff]
      %v1342 = vld [vmem:[%s1330 + $0x58] sm:$0xff]
      %v1343 = vld [vmem:[%s1330 + $0x60] sm:$0xff]
      %v1344 = vld [vmem:[%s1330 + $0x68] sm:$0xff]
      %v1345 = vld [vmem:[%s1330 + $0x70] sm:$0xff]
      %v1346 = vld [vmem:[%s1330 + $0x78] sm:$0xff]
      %v1347 = vld [vmem:[%s1330 + $0x80] sm:$0xff]
      %v1348 = vld [vmem:[%s1330 + $0x88] sm:$0xff]
      %v1349 = vld [vmem:[%s1330 + $0x90] sm:$0xff]
      %v1350 = vld [vmem:[%s1330 + $0x98] sm:$0xff]
      %v1351 = vld [vmem:[%s1330 + $0xa0] sm:$0xff]
      %v1352 = vld [vmem:[%s1330 + $0xa8] sm:$0xff]
      %v1353 = vld [vmem:[%s1330 + $0xb0] sm:$0xff]
      %v1354 = vld [vmem:[%s1330 + $0xb8] sm:$0xff]
      %v1355 = vld [vmem:[%s1330 + $0xc0] sm:$0xff]
      %v1356 = vld [vmem:[%s1330 + $0xc8] sm:$0xff]
      %v1357 = vld [vmem:[%s1330 + $0xd0] sm:$0xff]
      %v1358 = vld [vmem:[%s1330 + $0xd8] sm:$0xff]
      %v1359 = vld [vmem:[%s1330 + $0xe0] sm:$0xff]
      %v1360 = vld [vmem:[%s1330 + $0xe8] sm:$0xff]
      %v1361 = vld [vmem:[%s1330 + $0xf0] sm:$0xff]
      %v1362 = vld [vmem:[%s1330 + $0xf8] sm:$0xff]
      %1364 = vset.pattern.permute.xlu0 0
      %1365 = vperm.xlu0 %1364, %v1331
      %v1366 = vpop.permute.xlu0 %1365
      %1369 = vset.pattern.permute.xlu0 0
      %1370 = vperm.xlu0 %1369, %v1332
      %v1371 = vpop.permute.xlu0 %1370
      %1374 = vset.pattern.permute.xlu0 0
      %1375 = vperm.xlu0 %1374, %v1333
      %v1376 = vpop.permute.xlu0 %1375
      %1379 = vset.pattern.permute.xlu0 0
      %1380 = vperm.xlu0 %1379, %v1334
      %v1381 = vpop.permute.xlu0 %1380
      %1384 = vset.pattern.permute.xlu0 0
      %1385 = vperm.xlu0 %1384, %v1335
      %v1386 = vpop.permute.xlu0 %1385
      %1389 = vset.pattern.permute.xlu0 0
      %1390 = vperm.xlu0 %1389, %v1336
      %v1391 = vpop.permute.xlu0 %1390
      %1394 = vset.pattern.permute.xlu0 0
      %1395 = vperm.xlu0 %1394, %v1337
      %v1396 = vpop.permute.xlu0 %1395
      %1399 = vset.pattern.permute.xlu0 0
      %1400 = vperm.xlu0 %1399, %v1338
      %v1401 = vpop.permute.xlu0 %1400
      %1404 = vset.pattern.permute.xlu0 0
      %1405 = vperm.xlu0 %1404, %v1339
      %v1406 = vpop.permute.xlu0 %1405
      %1409 = vset.pattern.permute.xlu0 0
      %1410 = vperm.xlu0 %1409, %v1340
      %v1411 = vpop.permute.xlu0 %1410
      %1414 = vset.pattern.permute.xlu0 0
      %1415 = vperm.xlu0 %1414, %v1341
      %v1416 = vpop.permute.xlu0 %1415
      %1419 = vset.pattern.permute.xlu0 0
      %1420 = vperm.xlu0 %1419, %v1342
      %v1421 = vpop.permute.xlu0 %1420
      %1424 = vset.pattern.permute.xlu0 0
      %1425 = vperm.xlu0 %1424, %v1343
      %v1426 = vpop.permute.xlu0 %1425
      %1429 = vset.pattern.permute.xlu0 0
      %1430 = vperm.xlu0 %1429, %v1344
      %v1431 = vpop.permute.xlu0 %1430
      %1434 = vset.pattern.permute.xlu0 0
      %1435 = vperm.xlu0 %1434, %v1345
      %v1436 = vpop.permute.xlu0 %1435
      %1439 = vset.pattern.permute.xlu0 0
      %1440 = vperm.xlu0 %1439, %v1346
      %v1441 = vpop.permute.xlu0 %1440
      %1444 = vset.pattern.permute.xlu0 0
      %1445 = vperm.xlu0 %1444, %v1347
      %v1446 = vpop.permute.xlu0 %1445
      %1449 = vset.pattern.permute.xlu0 0
      %1450 = vperm.xlu0 %1449, %v1348
      %v1451 = vpop.permute.xlu0 %1450
      %1454 = vset.pattern.permute.xlu0 0
      %1455 = vperm.xlu0 %1454, %v1349
      %v1456 = vpop.permute.xlu0 %1455
      %1459 = vset.pattern.permute.xlu0 0
      %1460 = vperm.xlu0 %1459, %v1350
      %v1461 = vpop.permute.xlu0 %1460
      %1464 = vset.pattern.permute.xlu0 0
      %1465 = vperm.xlu0 %1464, %v1351
      %v1466 = vpop.permute.xlu0 %1465
      %1469 = vset.pattern.permute.xlu0 0
      %1470 = vperm.xlu0 %1469, %v1352
      %v1471 = vpop.permute.xlu0 %1470
      %1474 = vset.pattern.permute.xlu0 0
      %1475 = vperm.xlu0 %1474, %v1353
      %v1476 = vpop.permute.xlu0 %1475
      %1479 = vset.pattern.permute.xlu0 0
      %1480 = vperm.xlu0 %1479, %v1354
      %v1481 = vpop.permute.xlu0 %1480
      %1484 = vset.pattern.permute.xlu0 0
      %1485 = vperm.xlu0 %1484, %v1355
      %v1486 = vpop.permute.xlu0 %1485
      %1489 = vset.pattern.permute.xlu0 0
      %1490 = vperm.xlu0 %1489, %v1356
      %v1491 = vpop.permute.xlu0 %1490
      %1494 = vset.pattern.permute.xlu0 0
      %1495 = vperm.xlu0 %1494, %v1357
      %v1496 = vpop.permute.xlu0 %1495
      %1499 = vset.pattern.permute.xlu0 0
      %1500 = vperm.xlu0 %1499, %v1358
      %v1501 = vpop.permute.xlu0 %1500
      %1504 = vset.pattern.permute.xlu0 0
      %1505 = vperm.xlu0 %1504, %v1359
      %v1506 = vpop.permute.xlu0 %1505
      %1509 = vset.pattern.permute.xlu0 0
      %1510 = vperm.xlu0 %1509, %v1360
      %v1511 = vpop.permute.xlu0 %1510
      %1514 = vset.pattern.permute.xlu0 0
      %1515 = vperm.xlu0 %1514, %v1361
      %v1516 = vpop.permute.xlu0 %1515
      %1519 = vset.pattern.permute.xlu0 0
      %1520 = vperm.xlu0 %1519, %v1362
      %v1521 = vpop.permute.xlu0 %1520
      %v1523 = vmul.f32 %v1298, %v1366
      %v1524 = vmul.f32 %v1329, %v1371
      %v1525 = vmul.f32 %v1328, %v1376
      %v1526 = vmul.f32 %v1327, %v1381
      %v1527 = vmul.f32 %v1326, %v1386
      %v1528 = vmul.f32 %v1325, %v1391
      %v1529 = vmul.f32 %v1324, %v1396
      %v1530 = vmul.f32 %v1323, %v1401
      %v1531 = vmul.f32 %v1322, %v1406
      %v1532 = vmul.f32 %v1321, %v1411
      %v1533 = vmul.f32 %v1320, %v1416
      %v1534 = vmul.f32 %v1319, %v1421
      %v1535 = vmul.f32 %v1318, %v1426
      %v1536 = vmul.f32 %v1317, %v1431
      %v1537 = vmul.f32 %v1316, %v1436
      %v1538 = vmul.f32 %v1315, %v1441
      %v1539 = vmul.f32 %v1314, %v1446
      %v1540 = vmul.f32 %v1313, %v1451
      %v1541 = vmul.f32 %v1312, %v1456
      %v1542 = vmul.f32 %v1311, %v1461
      %v1543 = vmul.f32 %v1310, %v1466
      %v1544 = vmul.f32 %v1309, %v1471
      %v1545 = vmul.f32 %v1308, %v1476
      %v1546 = vmul.f32 %v1307, %v1481
      %v1547 = vmul.f32 %v1306, %v1486
      %v1548 = vmul.f32 %v1305, %v1491
      %v1549 = vmul.f32 %v1304, %v1496
      %v1550 = vmul.f32 %v1303, %v1501
      %v1551 = vmul.f32 %v1302, %v1506
      %v1552 = vmul.f32 %v1301, %v1511
      %v1553 = vmul.f32 %v1300, %v1516
      %v1554 = vmul.f32 %v1299, %v1521
      %v1555 = vpack.c.bf16 %v1524, %v1523
      %v1556 = vpack.c.bf16 %v1526, %v1525
      %v1557 = vpack.c.bf16 %v1528, %v1527
      %v1558 = vpack.c.bf16 %v1530, %v1529
      %v1559 = vpack.c.bf16 %v1532, %v1531
      %v1560 = vpack.c.bf16 %v1534, %v1533
      %v1561 = vpack.c.bf16 %v1536, %v1535
      %v1562 = vpack.c.bf16 %v1538, %v1537
      %v1563 = vpack.c.bf16 %v1540, %v1539
      %v1564 = vpack.c.bf16 %v1542, %v1541
      %v1565 = vpack.c.bf16 %v1544, %v1543
      %v1566 = vpack.c.bf16 %v1546, %v1545
      %v1567 = vpack.c.bf16 %v1548, %v1547
      %v1568 = vpack.c.bf16 %v1550, %v1549
      %v1569 = vpack.c.bf16 %v1552, %v1551
      %v1570 = vpack.c.bf16 %v1554, %v1553
      %1587 = vrot.lane.b32.xlu0 %v1555, 16
      %v1588 = vpop.permute.xlu0 %1587
      %1589 = vrot.lane.b32.xlu0 %v1556, 16
      %v1590 = vpop.permute.xlu0 %1589
      %1591 = vrot.lane.b32.xlu0 %v1557, 16
      %v1592 = vpop.permute.xlu0 %1591
      %1593 = vrot.lane.b32.xlu0 %v1558, 16
      %v1594 = vpop.permute.xlu0 %1593
      %1595 = vrot.lane.b32.xlu0 %v1559, 16
      %v1596 = vpop.permute.xlu0 %1595
      %1597 = vrot.lane.b32.xlu0 %v1560, 16
      %v1598 = vpop.permute.xlu0 %1597
      %1599 = vrot.lane.b32.xlu0 %v1561, 16
      %v1600 = vpop.permute.xlu0 %1599
      %1601 = vrot.lane.b32.xlu0 %v1562, 16
      %v1602 = vpop.permute.xlu0 %1601
      %1603 = vrot.lane.b32.xlu0 %v1563, 16
      %v1604 = vpop.permute.xlu0 %1603
      %1605 = vrot.lane.b32.xlu0 %v1564, 16
      %v1606 = vpop.permute.xlu0 %1605
      %1607 = vrot.lane.b32.xlu0 %v1565, 16
      %v1608 = vpop.permute.xlu0 %1607
      %1609 = vrot.lane.b32.xlu0 %v1566, 16
      %v1610 = vpop.permute.xlu0 %1609
      %1611 = vrot.lane.b32.xlu0 %v1567, 16
      %v1612 = vpop.permute.xlu0 %1611
      %1613 = vrot.lane.b32.xlu0 %v1568, 16
      %v1614 = vpop.permute.xlu0 %1613
      %1615 = vrot.lane.b32.xlu0 %v1569, 16
      %v1616 = vpop.permute.xlu0 %1615
      %1617 = vrot.lane.b32.xlu0 %v1570, 16
      %v1618 = vpop.permute.xlu0 %1617
      %vm1635 = vcmask 195712
      %1636 = vst.msk [vmem:[#allocation2] sm:$0xff] %vm1635, %v1588
      %1637 = vst.msk [vmem:[#allocation2 + $0x8] sm:$0xff] %vm1635, %v1590
      %1638 = vst.msk [vmem:[#allocation2 + $0x10] sm:$0xff] %vm1635, %v1592
      %1639 = vst.msk [vmem:[#allocation2 + $0x18] sm:$0xff] %vm1635, %v1594
      %1640 = vst.msk [vmem:[#allocation2 + $0x20] sm:$0xff] %vm1635, %v1596
      %1641 = vst.msk [vmem:[#allocation2 + $0x28] sm:$0xff] %vm1635, %v1598
      %1642 = vst.msk [vmem:[#allocation2 + $0x30] sm:$0xff] %vm1635, %v1600
      %1643 = vst.msk [vmem:[#allocation2 + $0x38] sm:$0xff] %vm1635, %v1602
      %1644 = vst.msk [vmem:[#allocation2 + $0x40] sm:$0xff] %vm1635, %v1604
      %1645 = vst.msk [vmem:[#allocation2 + $0x48] sm:$0xff] %vm1635, %v1606
      %1646 = vst.msk [vmem:[#allocation2 + $0x50] sm:$0xff] %vm1635, %v1608
      %1647 = vst.msk [vmem:[#allocation2 + $0x58] sm:$0xff] %vm1635, %v1610
      %1648 = vst.msk [vmem:[#allocation2 + $0x60] sm:$0xff] %vm1635, %v1612
      %1649 = vst.msk [vmem:[#allocation2 + $0x68] sm:$0xff] %vm1635, %v1614
      %1650 = vst.msk [vmem:[#allocation2 + $0x70] sm:$0xff] %vm1635, %v1616
      %1651 = vst.msk [vmem:[#allocation2 + $0x78] sm:$0xff] %vm1635, %v1618
      %s1652 = scalar_lea.vmem %s5, 768
      %v1653 = vld [vmem:[%s1652] sm:$0xff]
      %v1654 = vld [vmem:[%s1652 + $0x8] sm:$0xff]
      %v1655 = vld [vmem:[%s1652 + $0x10] sm:$0xff]
      %v1656 = vld [vmem:[%s1652 + $0x18] sm:$0xff]
      %v1657 = vld [vmem:[%s1652 + $0x20] sm:$0xff]
      %v1658 = vld [vmem:[%s1652 + $0x28] sm:$0xff]
      %v1659 = vld [vmem:[%s1652 + $0x30] sm:$0xff]
      %v1660 = vld [vmem:[%s1652 + $0x38] sm:$0xff]
      %v1661 = vld [vmem:[%s1652 + $0x40] sm:$0xff]
      %v1662 = vld [vmem:[%s1652 + $0x48] sm:$0xff]
      %v1663 = vld [vmem:[%s1652 + $0x50] sm:$0xff]
      %v1664 = vld [vmem:[%s1652 + $0x58] sm:$0xff]
      %v1665 = vld [vmem:[%s1652 + $0x60] sm:$0xff]
      %v1666 = vld [vmem:[%s1652 + $0x68] sm:$0xff]
      %v1667 = vld [vmem:[%s1652 + $0x70] sm:$0xff]
      %v1668 = vld [vmem:[%s1652 + $0x78] sm:$0xff]
      %v1669 = vld [vmem:[%s1652 + $0x80] sm:$0xff]
      %v1670 = vld [vmem:[%s1652 + $0x88] sm:$0xff]
      %v1671 = vld [vmem:[%s1652 + $0x90] sm:$0xff]
      %v1672 = vld [vmem:[%s1652 + $0x98] sm:$0xff]
      %v1673 = vld [vmem:[%s1652 + $0xa0] sm:$0xff]
      %v1674 = vld [vmem:[%s1652 + $0xa8] sm:$0xff]
      %v1675 = vld [vmem:[%s1652 + $0xb0] sm:$0xff]
      %v1676 = vld [vmem:[%s1652 + $0xb8] sm:$0xff]
      %v1677 = vld [vmem:[%s1652 + $0xc0] sm:$0xff]
      %v1678 = vld [vmem:[%s1652 + $0xc8] sm:$0xff]
      %v1679 = vld [vmem:[%s1652 + $0xd0] sm:$0xff]
      %v1680 = vld [vmem:[%s1652 + $0xd8] sm:$0xff]
      %v1681 = vld [vmem:[%s1652 + $0xe0] sm:$0xff]
      %v1682 = vld [vmem:[%s1652 + $0xe8] sm:$0xff]
      %v1683 = vld [vmem:[%s1652 + $0xf0] sm:$0xff]
      %v1684 = vld [vmem:[%s1652 + $0xf8] sm:$0xff]
      %1686 = vset.pattern.permute.xlu0 0
      %1687 = vperm.xlu0 %1686, %v1653
      %v1688 = vpop.permute.xlu0 %1687
      %1691 = vset.pattern.permute.xlu0 0
      %1692 = vperm.xlu0 %1691, %v1654
      %v1693 = vpop.permute.xlu0 %1692
      %1696 = vset.pattern.permute.xlu0 0
      %1697 = vperm.xlu0 %1696, %v1655
      %v1698 = vpop.permute.xlu0 %1697
      %1701 = vset.pattern.permute.xlu0 0
      %1702 = vperm.xlu0 %1701, %v1656
      %v1703 = vpop.permute.xlu0 %1702
      %1706 = vset.pattern.permute.xlu0 0
      %1707 = vperm.xlu0 %1706, %v1657
      %v1708 = vpop.permute.xlu0 %1707
      %1711 = vset.pattern.permute.xlu0 0
      %1712 = vperm.xlu0 %1711, %v1658
      %v1713 = vpop.permute.xlu0 %1712
      %1716 = vset.pattern.permute.xlu0 0
      %1717 = vperm.xlu0 %1716, %v1659
      %v1718 = vpop.permute.xlu0 %1717
      %1721 = vset.pattern.permute.xlu0 0
      %1722 = vperm.xlu0 %1721, %v1660
      %v1723 = vpop.permute.xlu0 %1722
      %1726 = vset.pattern.permute.xlu0 0
      %1727 = vperm.xlu0 %1726, %v1661
      %v1728 = vpop.permute.xlu0 %1727
      %1731 = vset.pattern.permute.xlu0 0
      %1732 = vperm.xlu0 %1731, %v1662
      %v1733 = vpop.permute.xlu0 %1732
      %1736 = vset.pattern.permute.xlu0 0
      %1737 = vperm.xlu0 %1736, %v1663
      %v1738 = vpop.permute.xlu0 %1737
      %1741 = vset.pattern.permute.xlu0 0
      %1742 = vperm.xlu0 %1741, %v1664
      %v1743 = vpop.permute.xlu0 %1742
      %1746 = vset.pattern.permute.xlu0 0
      %1747 = vperm.xlu0 %1746, %v1665
      %v1748 = vpop.permute.xlu0 %1747
      %1751 = vset.pattern.permute.xlu0 0
      %1752 = vperm.xlu0 %1751, %v1666
      %v1753 = vpop.permute.xlu0 %1752
      %1756 = vset.pattern.permute.xlu0 0
      %1757 = vperm.xlu0 %1756, %v1667
      %v1758 = vpop.permute.xlu0 %1757
      %1761 = vset.pattern.permute.xlu0 0
      %1762 = vperm.xlu0 %1761, %v1668
      %v1763 = vpop.permute.xlu0 %1762
      %1766 = vset.pattern.permute.xlu0 0
      %1767 = vperm.xlu0 %1766, %v1669
      %v1768 = vpop.permute.xlu0 %1767
      %1771 = vset.pattern.permute.xlu0 0
      %1772 = vperm.xlu0 %1771, %v1670
      %v1773 = vpop.permute.xlu0 %1772
      %1776 = vset.pattern.permute.xlu0 0
      %1777 = vperm.xlu0 %1776, %v1671
      %v1778 = vpop.permute.xlu0 %1777
      %1781 = vset.pattern.permute.xlu0 0
      %1782 = vperm.xlu0 %1781, %v1672
      %v1783 = vpop.permute.xlu0 %1782
      %1786 = vset.pattern.permute.xlu0 0
      %1787 = vperm.xlu0 %1786, %v1673
      %v1788 = vpop.permute.xlu0 %1787
      %1791 = vset.pattern.permute.xlu0 0
      %1792 = vperm.xlu0 %1791, %v1674
      %v1793 = vpop.permute.xlu0 %1792
      %1796 = vset.pattern.permute.xlu0 0
      %1797 = vperm.xlu0 %1796, %v1675
      %v1798 = vpop.permute.xlu0 %1797
      %1801 = vset.pattern.permute.xlu0 0
      %1802 = vperm.xlu0 %1801, %v1676
      %v1803 = vpop.permute.xlu0 %1802
      %1806 = vset.pattern.permute.xlu0 0
      %1807 = vperm.xlu0 %1806, %v1677
      %v1808 = vpop.permute.xlu0 %1807
      %1811 = vset.pattern.permute.xlu0 0
      %1812 = vperm.xlu0 %1811, %v1678
      %v1813 = vpop.permute.xlu0 %1812
      %1816 = vset.pattern.permute.xlu0 0
      %1817 = vperm.xlu0 %1816, %v1679
      %v1818 = vpop.permute.xlu0 %1817
      %1821 = vset.pattern.permute.xlu0 0
      %1822 = vperm.xlu0 %1821, %v1680
      %v1823 = vpop.permute.xlu0 %1822
      %1826 = vset.pattern.permute.xlu0 0
      %1827 = vperm.xlu0 %1826, %v1681
      %v1828 = vpop.permute.xlu0 %1827
      %1831 = vset.pattern.permute.xlu0 0
      %1832 = vperm.xlu0 %1831, %v1682
      %v1833 = vpop.permute.xlu0 %1832
      %1836 = vset.pattern.permute.xlu0 0
      %1837 = vperm.xlu0 %1836, %v1683
      %v1838 = vpop.permute.xlu0 %1837
      %1841 = vset.pattern.permute.xlu0 0
      %1842 = vperm.xlu0 %1841, %v1684
      %v1843 = vpop.permute.xlu0 %1842
      %v1845 = vmul.f32 %v685, %v1688
      %v1846 = vmul.f32 %v684, %v1693
      %v1847 = vmul.f32 %v683, %v1698
      %v1848 = vmul.f32 %v682, %v1703
      %v1849 = vmul.f32 %v681, %v1708
      %v1850 = vmul.f32 %v680, %v1713
      %v1851 = vmul.f32 %v679, %v1718
      %v1852 = vmul.f32 %v678, %v1723
      %v1853 = vmul.f32 %v677, %v1728
      %v1854 = vmul.f32 %v676, %v1733
      %v1855 = vmul.f32 %v675, %v1738
      %v1856 = vmul.f32 %v674, %v1743
      %v1857 = vmul.f32 %v673, %v1748
      %v1858 = vmul.f32 %v672, %v1753
      %v1859 = vmul.f32 %v671, %v1758
      %v1860 = vmul.f32 %v670, %v1763
      %v1861 = vmul.f32 %v669, %v1768
      %v1862 = vmul.f32 %v668, %v1773
      %v1863 = vmul.f32 %v667, %v1778
      %v1864 = vmul.f32 %v666, %v1783
      %v1865 = vmul.f32 %v665, %v1788
      %v1866 = vmul.f32 %v664, %v1793
      %v1867 = vmul.f32 %v663, %v1798
      %v1868 = vmul.f32 %v662, %v1803
      %v1869 = vmul.f32 %v661, %v1808
      %v1870 = vmul.f32 %v660, %v1813
      %v1871 = vmul.f32 %v659, %v1818
      %v1872 = vmul.f32 %v658, %v1823
      %v1873 = vmul.f32 %v657, %v1828
      %v1874 = vmul.f32 %v656, %v1833
      %v1875 = vmul.f32 %v655, %v1838
      %v1876 = vmul.f32 %v654, %v1843
      %v1877 = vpack.c.bf16 %v1846, %v1845
      %v1878 = vpack.c.bf16 %v1848, %v1847
      %v1879 = vpack.c.bf16 %v1850, %v1849
      %v1880 = vpack.c.bf16 %v1852, %v1851
      %v1881 = vpack.c.bf16 %v1854, %v1853
      %v1882 = vpack.c.bf16 %v1856, %v1855
      %v1883 = vpack.c.bf16 %v1858, %v1857
      %v1884 = vpack.c.bf16 %v1860, %v1859
      %v1885 = vpack.c.bf16 %v1862, %v1861
      %v1886 = vpack.c.bf16 %v1864, %v1863
      %v1887 = vpack.c.bf16 %v1866, %v1865
      %v1888 = vpack.c.bf16 %v1868, %v1867
      %v1889 = vpack.c.bf16 %v1870, %v1869
      %v1890 = vpack.c.bf16 %v1872, %v1871
      %v1891 = vpack.c.bf16 %v1874, %v1873
      %v1892 = vpack.c.bf16 %v1876, %v1875
      %1909 = vrot.lane.b32.xlu0 %v1877, 24
      %v1910 = vpop.permute.xlu0 %1909
      %1911 = vrot.lane.b32.xlu0 %v1878, 24
      %v1912 = vpop.permute.xlu0 %1911
      %1913 = vrot.lane.b32.xlu0 %v1879, 24
      %v1914 = vpop.permute.xlu0 %1913
      %1915 = vrot.lane.b32.xlu0 %v1880, 24
      %v1916 = vpop.permute.xlu0 %1915
      %1917 = vrot.lane.b32.xlu0 %v1881, 24
      %v1918 = vpop.permute.xlu0 %1917
      %1919 = vrot.lane.b32.xlu0 %v1882, 24
      %v1920 = vpop.permute.xlu0 %1919
      %1921 = vrot.lane.b32.xlu0 %v1883, 24
      %v1922 = vpop.permute.xlu0 %1921
      %1923 = vrot.lane.b32.xlu0 %v1884, 24
      %v1924 = vpop.permute.xlu0 %1923
      %1925 = vrot.lane.b32.xlu0 %v1885, 24
      %v1926 = vpop.permute.xlu0 %1925
      %1927 = vrot.lane.b32.xlu0 %v1886, 24
      %v1928 = vpop.permute.xlu0 %1927
      %1929 = vrot.lane.b32.xlu0 %v1887, 24
      %v1930 = vpop.permute.xlu0 %1929
      %1931 = vrot.lane.b32.xlu0 %v1888, 24
      %v1932 = vpop.permute.xlu0 %1931
      %1933 = vrot.lane.b32.xlu0 %v1889, 24
      %v1934 = vpop.permute.xlu0 %1933
      %1935 = vrot.lane.b32.xlu0 %v1890, 24
      %v1936 = vpop.permute.xlu0 %1935
      %1937 = vrot.lane.b32.xlu0 %v1891, 24
      %v1938 = vpop.permute.xlu0 %1937
      %1939 = vrot.lane.b32.xlu0 %v1892, 24
      %v1940 = vpop.permute.xlu0 %1939
      %vm1957 = vcmask 261312
      %1958 = vst.msk [vmem:[#allocation2] sm:$0xff] %vm1957, %v1910
      %1959 = vst.msk [vmem:[#allocation2 + $0x8] sm:$0xff] %vm1957, %v1912
      %1960 = vst.msk [vmem:[#allocation2 + $0x10] sm:$0xff] %vm1957, %v1914
      %1961 = vst.msk [vmem:[#allocation2 + $0x18] sm:$0xff] %vm1957, %v1916
      %1962 = vst.msk [vmem:[#allocation2 + $0x20] sm:$0xff] %vm1957, %v1918
      %1963 = vst.msk [vmem:[#allocation2 + $0x28] sm:$0xff] %vm1957, %v1920
      %1964 = vst.msk [vmem:[#allocation2 + $0x30] sm:$0xff] %vm1957, %v1922
      %1965 = vst.msk [vmem:[#allocation2 + $0x38] sm:$0xff] %vm1957, %v1924
      %1966 = vst.msk [vmem:[#allocation2 + $0x40] sm:$0xff] %vm1957, %v1926
      %1967 = vst.msk [vmem:[#allocation2 + $0x48] sm:$0xff] %vm1957, %v1928
      %1968 = vst.msk [vmem:[#allocation2 + $0x50] sm:$0xff] %vm1957, %v1930
      %1969 = vst.msk [vmem:[#allocation2 + $0x58] sm:$0xff] %vm1957, %v1932
      %1970 = vst.msk [vmem:[#allocation2 + $0x60] sm:$0xff] %vm1957, %v1934
      %1971 = vst.msk [vmem:[#allocation2 + $0x68] sm:$0xff] %vm1957, %v1936
      %1972 = vst.msk [vmem:[#allocation2 + $0x70] sm:$0xff] %vm1957, %v1938
      %1973 = vst.msk [vmem:[#allocation2 + $0x78] sm:$0xff] %vm1957, %v1940
      %v1974 = vpack.c.bf16 %v588, %v587
      %v1975 = vpack.c.bf16 %v590, %v589
      %v1976 = vpack.c.bf16 %v592, %v591
      %v1977 = vpack.c.bf16 %v594, %v593
      %v1978 = vpack.c.bf16 %v596, %v595
      %v1979 = vpack.c.bf16 %v598, %v597
      %v1980 = vpack.c.bf16 %v600, %v599
      %v1981 = vpack.c.bf16 %v602, %v601
      %v1982 = vpack.c.bf16 %v604, %v603
      %v1983 = vpack.c.bf16 %v606, %v605
      %v1984 = vpack.c.bf16 %v608, %v607
      %v1985 = vpack.c.bf16 %v610, %v609
      %v1986 = vpack.c.bf16 %v612, %v611
      %v1987 = vpack.c.bf16 %v614, %v613
      %v1988 = vpack.c.bf16 %v616, %v615
      %v1989 = vpack.c.bf16 %v618, %v617
      %2006 = vrot.lane.b32.xlu0 %v1974, 32
      %v2007 = vpop.permute.xlu0 %2006
      %2008 = vrot.lane.b32.xlu0 %v1975, 32
      %v2009 = vpop.permute.xlu0 %2008
      %2010 = vrot.lane.b32.xlu0 %v1976, 32
      %v2011 = vpop.permute.xlu0 %2010
      %2012 = vrot.lane.b32.xlu0 %v1977, 32
      %v2013 = vpop.permute.xlu0 %2012
      %2014 = vrot.lane.b32.xlu0 %v1978, 32
      %v2015 = vpop.permute.xlu0 %2014
      %2016 = vrot.lane.b32.xlu0 %v1979, 32
      %v2017 = vpop.permute.xlu0 %2016
      %2018 = vrot.lane.b32.xlu0 %v1980, 32
      %v2019 = vpop.permute.xlu0 %2018
      %2020 = vrot.lane.b32.xlu0 %v1981, 32
      %v2021 = vpop.permute.xlu0 %2020
      %2022 = vrot.lane.b32.xlu0 %v1982, 32
      %v2023 = vpop.permute.xlu0 %2022
      %2024 = vrot.lane.b32.xlu0 %v1983, 32
      %v2025 = vpop.permute.xlu0 %2024
      %2026 = vrot.lane.b32.xlu0 %v1984, 32
      %v2027 = vpop.permute.xlu0 %2026
      %2028 = vrot.lane.b32.xlu0 %v1985, 32
      %v2029 = vpop.permute.xlu0 %2028
      %2030 = vrot.lane.b32.xlu0 %v1986, 32
      %v2031 = vpop.permute.xlu0 %2030
      %2032 = vrot.lane.b32.xlu0 %v1987, 32
      %v2033 = vpop.permute.xlu0 %2032
      %2034 = vrot.lane.b32.xlu0 %v1988, 32
      %v2035 = vpop.permute.xlu0 %2034
      %2036 = vrot.lane.b32.xlu0 %v1989, 32
      %v2037 = vpop.permute.xlu0 %2036
      %vm2054 = vcmask 326912
      %2055 = vst.msk [vmem:[#allocation2] sm:$0xff] %vm2054, %v2007
      %2056 = vst.msk [vmem:[#allocation2 + $0x8] sm:$0xff] %vm2054, %v2009
      %2057 = vst.msk [vmem:[#allocation2 + $0x10] sm:$0xff] %vm2054, %v2011
      %2058 = vst.msk [vmem:[#allocation2 + $0x18] sm:$0xff] %vm2054, %v2013
      %2059 = vst.msk [vmem:[#allocation2 + $0x20] sm:$0xff] %vm2054, %v2015
      %2060 = vst.msk [vmem:[#allocation2 + $0x28] sm:$0xff] %vm2054, %v2017
      %2061 = vst.msk [vmem:[#allocation2 + $0x30] sm:$0xff] %vm2054, %v2019
      %2062 = vst.msk [vmem:[#allocation2 + $0x38] sm:$0xff] %vm2054, %v2021
      %2063 = vst.msk [vmem:[#allocation2 + $0x40] sm:$0xff] %vm2054, %v2023
      %2064 = vst.msk [vmem:[#allocation2 + $0x48] sm:$0xff] %vm2054, %v2025
      %2065 = vst.msk [vmem:[#allocation2 + $0x50] sm:$0xff] %vm2054, %v2027
      %2066 = vst.msk [vmem:[#allocation2 + $0x58] sm:$0xff] %vm2054, %v2029
      %2067 = vst.msk [vmem:[#allocation2 + $0x60] sm:$0xff] %vm2054, %v2031
      %2068 = vst.msk [vmem:[#allocation2 + $0x68] sm:$0xff] %vm2054, %v2033
      %2069 = vst.msk [vmem:[#allocation2 + $0x70] sm:$0xff] %vm2054, %v2035
      %2070 = vst.msk [vmem:[#allocation2 + $0x78] sm:$0xff] %vm2054, %v2037
      %s2071 = scalar_lea.vmem %s5, 1024
      %v2072 = vld [vmem:[%s2071] sm:$0xff]
      %v2073 = vld [vmem:[%s2071 + $0x8] sm:$0xff]
      %v2074 = vld [vmem:[%s2071 + $0x10] sm:$0xff]
      %v2075 = vld [vmem:[%s2071 + $0x18] sm:$0xff]
      %v2076 = vld [vmem:[%s2071 + $0x20] sm:$0xff]
      %v2077 = vld [vmem:[%s2071 + $0x28] sm:$0xff]
      %v2078 = vld [vmem:[%s2071 + $0x30] sm:$0xff]
      %v2079 = vld [vmem:[%s2071 + $0x38] sm:$0xff]
      %v2080 = vld [vmem:[%s2071 + $0x40] sm:$0xff]
      %v2081 = vld [vmem:[%s2071 + $0x48] sm:$0xff]
      %v2082 = vld [vmem:[%s2071 + $0x50] sm:$0xff]
      %v2083 = vld [vmem:[%s2071 + $0x58] sm:$0xff]
      %v2084 = vld [vmem:[%s2071 + $0x60] sm:$0xff]
      %v2085 = vld [vmem:[%s2071 + $0x68] sm:$0xff]
      %v2086 = vld [vmem:[%s2071 + $0x70] sm:$0xff]
      %v2087 = vld [vmem:[%s2071 + $0x78] sm:$0xff]
      %v2088 = vld [vmem:[%s2071 + $0x80] sm:$0xff]
      %v2089 = vld [vmem:[%s2071 + $0x88] sm:$0xff]
      %v2090 = vld [vmem:[%s2071 + $0x90] sm:$0xff]
      %v2091 = vld [vmem:[%s2071 + $0x98] sm:$0xff]
      %v2092 = vld [vmem:[%s2071 + $0xa0] sm:$0xff]
      %v2093 = vld [vmem:[%s2071 + $0xa8] sm:$0xff]
      %v2094 = vld [vmem:[%s2071 + $0xb0] sm:$0xff]
      %v2095 = vld [vmem:[%s2071 + $0xb8] sm:$0xff]
      %v2096 = vld [vmem:[%s2071 + $0xc0] sm:$0xff]
      %v2097 = vld [vmem:[%s2071 + $0xc8] sm:$0xff]
      %v2098 = vld [vmem:[%s2071 + $0xd0] sm:$0xff]
      %v2099 = vld [vmem:[%s2071 + $0xd8] sm:$0xff]
      %v2100 = vld [vmem:[%s2071 + $0xe0] sm:$0xff]
      %v2101 = vld [vmem:[%s2071 + $0xe8] sm:$0xff]
      %v2102 = vld [vmem:[%s2071 + $0xf0] sm:$0xff]
      %v2103 = vld [vmem:[%s2071 + $0xf8] sm:$0xff]
      %2105 = vset.pattern.permute.xlu0 0
      %2106 = vperm.xlu0 %2105, %v2072
      %v2107 = vpop.permute.xlu0 %2106
      %2110 = vset.pattern.permute.xlu0 0
      %2111 = vperm.xlu0 %2110, %v2073
      %v2112 = vpop.permute.xlu0 %2111
      %2115 = vset.pattern.permute.xlu0 0
      %2116 = vperm.xlu0 %2115, %v2074
      %v2117 = vpop.permute.xlu0 %2116
      %2120 = vset.pattern.permute.xlu0 0
      %2121 = vperm.xlu0 %2120, %v2075
      %v2122 = vpop.permute.xlu0 %2121
      %2125 = vset.pattern.permute.xlu0 0
      %2126 = vperm.xlu0 %2125, %v2076
      %v2127 = vpop.permute.xlu0 %2126
      %2130 = vset.pattern.permute.xlu0 0
      %2131 = vperm.xlu0 %2130, %v2077
      %v2132 = vpop.permute.xlu0 %2131
      %2135 = vset.pattern.permute.xlu0 0
      %2136 = vperm.xlu0 %2135, %v2078
      %v2137 = vpop.permute.xlu0 %2136
      %2140 = vset.pattern.permute.xlu0 0
      %2141 = vperm.xlu0 %2140, %v2079
      %v2142 = vpop.permute.xlu0 %2141
      %2145 = vset.pattern.permute.xlu0 0
      %2146 = vperm.xlu0 %2145, %v2080
      %v2147 = vpop.permute.xlu0 %2146
      %2150 = vset.pattern.permute.xlu0 0
      %2151 = vperm.xlu0 %2150, %v2081
      %v2152 = vpop.permute.xlu0 %2151
      %2155 = vset.pattern.permute.xlu0 0
      %2156 = vperm.xlu0 %2155, %v2082
      %v2157 = vpop.permute.xlu0 %2156
      %2160 = vset.pattern.permute.xlu0 0
      %2161 = vperm.xlu0 %2160, %v2083
      %v2162 = vpop.permute.xlu0 %2161
      %2165 = vset.pattern.permute.xlu0 0
      %2166 = vperm.xlu0 %2165, %v2084
      %v2167 = vpop.permute.xlu0 %2166
      %2170 = vset.pattern.permute.xlu0 0
      %2171 = vperm.xlu0 %2170, %v2085
      %v2172 = vpop.permute.xlu0 %2171
      %2175 = vset.pattern.permute.xlu0 0
      %2176 = vperm.xlu0 %2175, %v2086
      %v2177 = vpop.permute.xlu0 %2176
      %2180 = vset.pattern.permute.xlu0 0
      %2181 = vperm.xlu0 %2180, %v2087
      %v2182 = vpop.permute.xlu0 %2181
      %2185 = vset.pattern.permute.xlu0 0
      %2186 = vperm.xlu0 %2185, %v2088
      %v2187 = vpop.permute.xlu0 %2186
      %2190 = vset.pattern.permute.xlu0 0
      %2191 = vperm.xlu0 %2190, %v2089
      %v2192 = vpop.permute.xlu0 %2191
      %2195 = vset.pattern.permute.xlu0 0
      %2196 = vperm.xlu0 %2195, %v2090
      %v2197 = vpop.permute.xlu0 %2196
      %2200 = vset.pattern.permute.xlu0 0
      %2201 = vperm.xlu0 %2200, %v2091
      %v2202 = vpop.permute.xlu0 %2201
      %2205 = vset.pattern.permute.xlu0 0
      %2206 = vperm.xlu0 %2205, %v2092
      %v2207 = vpop.permute.xlu0 %2206
      %2210 = vset.pattern.permute.xlu0 0
      %2211 = vperm.xlu0 %2210, %v2093
      %v2212 = vpop.permute.xlu0 %2211
      %2215 = vset.pattern.permute.xlu0 0
      %2216 = vperm.xlu0 %2215, %v2094
      %v2217 = vpop.permute.xlu0 %2216
      %2220 = vset.pattern.permute.xlu0 0
      %2221 = vperm.xlu0 %2220, %v2095
      %v2222 = vpop.permute.xlu0 %2221
      %2225 = vset.pattern.permute.xlu0 0
      %2226 = vperm.xlu0 %2225, %v2096
      %v2227 = vpop.permute.xlu0 %2226
      %2230 = vset.pattern.permute.xlu0 0
      %2231 = vperm.xlu0 %2230, %v2097
      %v2232 = vpop.permute.xlu0 %2231
      %2235 = vset.pattern.permute.xlu0 0
      %2236 = vperm.xlu0 %2235, %v2098
      %v2237 = vpop.permute.xlu0 %2236
      %2240 = vset.pattern.permute.xlu0 0
      %2241 = vperm.xlu0 %2240, %v2099
      %v2242 = vpop.permute.xlu0 %2241
      %2245 = vset.pattern.permute.xlu0 0
      %2246 = vperm.xlu0 %2245, %v2100
      %v2247 = vpop.permute.xlu0 %2246
      %2250 = vset.pattern.permute.xlu0 0
      %2251 = vperm.xlu0 %2250, %v2101
      %v2252 = vpop.permute.xlu0 %2251
      %2255 = vset.pattern.permute.xlu0 0
      %2256 = vperm.xlu0 %2255, %v2102
      %v2257 = vpop.permute.xlu0 %2256
      %2260 = vset.pattern.permute.xlu0 0
      %2261 = vperm.xlu0 %2260, %v2103
      %v2262 = vpop.permute.xlu0 %2261
      %v2264 = vmul.f32 %v1328, %v2107
      %v2265 = vmul.f32 %v1327, %v2112
      %v2266 = vmul.f32 %v1326, %v2117
      %v2267 = vmul.f32 %v1325, %v2122
      %v2268 = vmul.f32 %v1324, %v2127
      %v2269 = vmul.f32 %v1323, %v2132
      %v2270 = vmul.f32 %v1322, %v2137
      %v2271 = vmul.f32 %v1321, %v2142
      %v2272 = vmul.f32 %v1320, %v2147
      %v2273 = vmul.f32 %v1319, %v2152
      %v2274 = vmul.f32 %v1318, %v2157
      %v2275 = vmul.f32 %v1317, %v2162
      %v2276 = vmul.f32 %v1316, %v2167
      %v2277 = vmul.f32 %v1315, %v2172
      %v2278 = vmul.f32 %v1314, %v2177
      %v2279 = vmul.f32 %v1313, %v2182
      %v2280 = vmul.f32 %v1312, %v2187
      %v2281 = vmul.f32 %v1311, %v2192
      %v2282 = vmul.f32 %v1310, %v2197
      %v2283 = vmul.f32 %v1309, %v2202
      %v2284 = vmul.f32 %v1308, %v2207
      %v2285 = vmul.f32 %v1307, %v2212
      %v2286 = vmul.f32 %v1306, %v2217
      %v2287 = vmul.f32 %v1305, %v2222
      %v2288 = vmul.f32 %v1304, %v2227
      %v2289 = vmul.f32 %v1303, %v2232
      %v2290 = vmul.f32 %v1302, %v2237
      %v2291 = vmul.f32 %v1301, %v2242
      %v2292 = vmul.f32 %v1300, %v2247
      %v2293 = vmul.f32 %v1299, %v2252
      %v2294 = vmul.f32 %v1298, %v2257
      %v2295 = vmul.f32 %v1329, %v2262
      %v2296 = vpack.c.bf16 %v2265, %v2264
      %v2297 = vpack.c.bf16 %v2267, %v2266
      %v2298 = vpack.c.bf16 %v2269, %v2268
      %v2299 = vpack.c.bf16 %v2271, %v2270
      %v2300 = vpack.c.bf16 %v2273, %v2272
      %v2301 = vpack.c.bf16 %v2275, %v2274
      %v2302 = vpack.c.bf16 %v2277, %v2276
      %v2303 = vpack.c.bf16 %v2279, %v2278
      %v2304 = vpack.c.bf16 %v2281, %v2280
      %v2305 = vpack.c.bf16 %v2283, %v2282
      %v2306 = vpack.c.bf16 %v2285, %v2284
      %v2307 = vpack.c.bf16 %v2287, %v2286
      %v2308 = vpack.c.bf16 %v2289, %v2288
      %v2309 = vpack.c.bf16 %v2291, %v2290
      %v2310 = vpack.c.bf16 %v2293, %v2292
      %v2311 = vpack.c.bf16 %v2295, %v2294
      %2328 = vrot.lane.b32.xlu0 %v2296, 40
      %v2329 = vpop.permute.xlu0 %2328
      %2330 = vrot.lane.b32.xlu0 %v2297, 40
      %v2331 = vpop.permute.xlu0 %2330
      %2332 = vrot.lane.b32.xlu0 %v2298, 40
      %v2333 = vpop.permute.xlu0 %2332
      %2334 = vrot.lane.b32.xlu0 %v2299, 40
      %v2335 = vpop.permute.xlu0 %2334
      %2336 = vrot.lane.b32.xlu0 %v2300, 40
      %v2337 = vpop.permute.xlu0 %2336
      %2338 = vrot.lane.b32.xlu0 %v2301, 40
      %v2339 = vpop.permute.xlu0 %2338
      %2340 = vrot.lane.b32.xlu0 %v2302, 40
      %v2341 = vpop.permute.xlu0 %2340
      %2342 = vrot.lane.b32.xlu0 %v2303, 40
      %v2343 = vpop.permute.xlu0 %2342
      %2344 = vrot.lane.b32.xlu0 %v2304, 40
      %v2345 = vpop.permute.xlu0 %2344
      %2346 = vrot.lane.b32.xlu0 %v2305, 40
      %v2347 = vpop.permute.xlu0 %2346
      %2348 = vrot.lane.b32.xlu0 %v2306, 40
      %v2349 = vpop.permute.xlu0 %2348
      %2350 = vrot.lane.b32.xlu0 %v2307, 40
      %v2351 = vpop.permute.xlu0 %2350
      %2352 = vrot.lane.b32.xlu0 %v2308, 40
      %v2353 = vpop.permute.xlu0 %2352
      %2354 = vrot.lane.b32.xlu0 %v2309, 40
      %v2355 = vpop.permute.xlu0 %2354
      %2356 = vrot.lane.b32.xlu0 %v2310, 40
      %v2357 = vpop.permute.xlu0 %2356
      %2358 = vrot.lane.b32.xlu0 %v2311, 40
      %v2359 = vpop.permute.xlu0 %2358
      %vm2376 = vcmask 392512
      %2377 = vst.msk [vmem:[#allocation2] sm:$0xff] %vm2376, %v2329
      %2378 = vst.msk [vmem:[#allocation2 + $0x8] sm:$0xff] %vm2376, %v2331
      %2379 = vst.msk [vmem:[#allocation2 + $0x10] sm:$0xff] %vm2376, %v2333
      %2380 = vst.msk [vmem:[#allocation2 + $0x18] sm:$0xff] %vm2376, %v2335
      %2381 = vst.msk [vmem:[#allocation2 + $0x20] sm:$0xff] %vm2376, %v2337
      %2382 = vst.msk [vmem:[#allocation2 + $0x28] sm:$0xff] %vm2376, %v2339
      %2383 = vst.msk [vmem:[#allocation2 + $0x30] sm:$0xff] %vm2376, %v2341
      %2384 = vst.msk [vmem:[#allocation2 + $0x38] sm:$0xff] %vm2376, %v2343
      %2385 = vst.msk [vmem:[#allocation2 + $0x40] sm:$0xff] %vm2376, %v2345
      %2386 = vst.msk [vmem:[#allocation2 + $0x48] sm:$0xff] %vm2376, %v2347
      %2387 = vst.msk [vmem:[#allocation2 + $0x50] sm:$0xff] %vm2376, %v2349
      %2388 = vst.msk [vmem:[#allocation2 + $0x58] sm:$0xff] %vm2376, %v2351
      %2389 = vst.msk [vmem:[#allocation2 + $0x60] sm:$0xff] %vm2376, %v2353
      %2390 = vst.msk [vmem:[#allocation2 + $0x68] sm:$0xff] %vm2376, %v2355
      %2391 = vst.msk [vmem:[#allocation2 + $0x70] sm:$0xff] %vm2376, %v2357
      %2392 = vst.msk [vmem:[#allocation2 + $0x78] sm:$0xff] %vm2376, %v2359
      %s2393 = scalar_lea.vmem %s5, 1280
      %v2394 = vld [vmem:[%s2393] sm:$0xff]
      %v2395 = vld [vmem:[%s2393 + $0x8] sm:$0xff]
      %v2396 = vld [vmem:[%s2393 + $0x10] sm:$0xff]
      %v2397 = vld [vmem:[%s2393 + $0x18] sm:$0xff]
      %v2398 = vld [vmem:[%s2393 + $0x20] sm:$0xff]
      %v2399 = vld [vmem:[%s2393 + $0x28] sm:$0xff]
      %v2400 = vld [vmem:[%s2393 + $0x30] sm:$0xff]
      %v2401 = vld [vmem:[%s2393 + $0x38] sm:$0xff]
      %v2402 = vld [vmem:[%s2393 + $0x40] sm:$0xff]
      %v2403 = vld [vmem:[%s2393 + $0x48] sm:$0xff]
      %v2404 = vld [vmem:[%s2393 + $0x50] sm:$0xff]
      %v2405 = vld [vmem:[%s2393 + $0x58] sm:$0xff]
      %v2406 = vld [vmem:[%s2393 + $0x60] sm:$0xff]
      %v2407 = vld [vmem:[%s2393 + $0x68] sm:$0xff]
      %v2408 = vld [vmem:[%s2393 + $0x70] sm:$0xff]
      %v2409 = vld [vmem:[%s2393 + $0x78] sm:$0xff]
      %v2410 = vld [vmem:[%s2393 + $0x80] sm:$0xff]
      %v2411 = vld [vmem:[%s2393 + $0x88] sm:$0xff]
      %v2412 = vld [vmem:[%s2393 + $0x90] sm:$0xff]
      %v2413 = vld [vmem:[%s2393 + $0x98] sm:$0xff]
      %v2414 = vld [vmem:[%s2393 + $0xa0] sm:$0xff]
      %v2415 = vld [vmem:[%s2393 + $0xa8] sm:$0xff]
      %v2416 = vld [vmem:[%s2393 + $0xb0] sm:$0xff]
      %v2417 = vld [vmem:[%s2393 + $0xb8] sm:$0xff]
      %v2418 = vld [vmem:[%s2393 + $0xc0] sm:$0xff]
      %v2419 = vld [vmem:[%s2393 + $0xc8] sm:$0xff]
      %v2420 = vld [vmem:[%s2393 + $0xd0] sm:$0xff]
      %v2421 = vld [vmem:[%s2393 + $0xd8] sm:$0xff]
      %v2422 = vld [vmem:[%s2393 + $0xe0] sm:$0xff]
      %v2423 = vld [vmem:[%s2393 + $0xe8] sm:$0xff]
      %v2424 = vld [vmem:[%s2393 + $0xf0] sm:$0xff]
      %v2425 = vld [vmem:[%s2393 + $0xf8] sm:$0xff]
      %2427 = vset.pattern.permute.xlu0 0
      %2428 = vperm.xlu0 %2427, %v2394
      %v2429 = vpop.permute.xlu0 %2428
      %2432 = vset.pattern.permute.xlu0 0
      %2433 = vperm.xlu0 %2432, %v2395
      %v2434 = vpop.permute.xlu0 %2433
      %2437 = vset.pattern.permute.xlu0 0
      %2438 = vperm.xlu0 %2437, %v2396
      %v2439 = vpop.permute.xlu0 %2438
      %2442 = vset.pattern.permute.xlu0 0
      %2443 = vperm.xlu0 %2442, %v2397
      %v2444 = vpop.permute.xlu0 %2443
      %2447 = vset.pattern.permute.xlu0 0
      %2448 = vperm.xlu0 %2447, %v2398
      %v2449 = vpop.permute.xlu0 %2448
      %2452 = vset.pattern.permute.xlu0 0
      %2453 = vperm.xlu0 %2452, %v2399
      %v2454 = vpop.permute.xlu0 %2453
      %2457 = vset.pattern.permute.xlu0 0
      %2458 = vperm.xlu0 %2457, %v2400
      %v2459 = vpop.permute.xlu0 %2458
      %2462 = vset.pattern.permute.xlu0 0
      %2463 = vperm.xlu0 %2462, %v2401
      %v2464 = vpop.permute.xlu0 %2463
      %2467 = vset.pattern.permute.xlu0 0
      %2468 = vperm.xlu0 %2467, %v2402
      %v2469 = vpop.permute.xlu0 %2468
      %2472 = vset.pattern.permute.xlu0 0
      %2473 = vperm.xlu0 %2472, %v2403
      %v2474 = vpop.permute.xlu0 %2473
      %2477 = vset.pattern.permute.xlu0 0
      %2478 = vperm.xlu0 %2477, %v2404
      %v2479 = vpop.permute.xlu0 %2478
      %2482 = vset.pattern.permute.xlu0 0
      %2483 = vperm.xlu0 %2482, %v2405
      %v2484 = vpop.permute.xlu0 %2483
      %2487 = vset.pattern.permute.xlu0 0
      %2488 = vperm.xlu0 %2487, %v2406
      %v2489 = vpop.permute.xlu0 %2488
      %2492 = vset.pattern.permute.xlu0 0
      %2493 = vperm.xlu0 %2492, %v2407
      %v2494 = vpop.permute.xlu0 %2493
      %2497 = vset.pattern.permute.xlu0 0
      %2498 = vperm.xlu0 %2497, %v2408
      %v2499 = vpop.permute.xlu0 %2498
      %2502 = vset.pattern.permute.xlu0 0
      %2503 = vperm.xlu0 %2502, %v2409
      %v2504 = vpop.permute.xlu0 %2503
      %2507 = vset.pattern.permute.xlu0 0
      %2508 = vperm.xlu0 %2507, %v2410
      %v2509 = vpop.permute.xlu0 %2508
      %2512 = vset.pattern.permute.xlu0 0
      %2513 = vperm.xlu0 %2512, %v2411
      %v2514 = vpop.permute.xlu0 %2513
      %2517 = vset.pattern.permute.xlu0 0
      %2518 = vperm.xlu0 %2517, %v2412
      %v2519 = vpop.permute.xlu0 %2518
      %2522 = vset.pattern.permute.xlu0 0
      %2523 = vperm.xlu0 %2522, %v2413
      %v2524 = vpop.permute.xlu0 %2523
      %2527 = vset.pattern.permute.xlu0 0
      %2528 = vperm.xlu0 %2527, %v2414
      %v2529 = vpop.permute.xlu0 %2528
      %2532 = vset.pattern.permute.xlu0 0
      %2533 = vperm.xlu0 %2532, %v2415
      %v2534 = vpop.permute.xlu0 %2533
      %2537 = vset.pattern.permute.xlu0 0
      %2538 = vperm.xlu0 %2537, %v2416
      %v2539 = vpop.permute.xlu0 %2538
      %2542 = vset.pattern.permute.xlu0 0
      %2543 = vperm.xlu0 %2542, %v2417
      %v2544 = vpop.permute.xlu0 %2543
      %2547 = vset.pattern.permute.xlu0 0
      %2548 = vperm.xlu0 %2547, %v2418
      %v2549 = vpop.permute.xlu0 %2548
      %2552 = vset.pattern.permute.xlu0 0
      %2553 = vperm.xlu0 %2552, %v2419
      %v2554 = vpop.permute.xlu0 %2553
      %2557 = vset.pattern.permute.xlu0 0
      %2558 = vperm.xlu0 %2557, %v2420
      %v2559 = vpop.permute.xlu0 %2558
      %2562 = vset.pattern.permute.xlu0 0
      %2563 = vperm.xlu0 %2562, %v2421
      %v2564 = vpop.permute.xlu0 %2563
      %2567 = vset.pattern.permute.xlu0 0
      %2568 = vperm.xlu0 %2567, %v2422
      %v2569 = vpop.permute.xlu0 %2568
      %2572 = vset.pattern.permute.xlu0 0
      %2573 = vperm.xlu0 %2572, %v2423
      %v2574 = vpop.permute.xlu0 %2573
      %2577 = vset.pattern.permute.xlu0 0
      %2578 = vperm.xlu0 %2577, %v2424
      %v2579 = vpop.permute.xlu0 %2578
      %2582 = vset.pattern.permute.xlu0 0
      %2583 = vperm.xlu0 %2582, %v2425
      %v2584 = vpop.permute.xlu0 %2583
      %v2586 = vmul.f32 %v683, %v2429
      %v2587 = vmul.f32 %v682, %v2434
      %v2588 = vmul.f32 %v681, %v2439
      %v2589 = vmul.f32 %v680, %v2444
      %v2590 = vmul.f32 %v679, %v2449
      %v2591 = vmul.f32 %v678, %v2454
      %v2592 = vmul.f32 %v677, %v2459
      %v2593 = vmul.f32 %v676, %v2464
      %v2594 = vmul.f32 %v675, %v2469
      %v2595 = vmul.f32 %v674, %v2474
      %v2596 = vmul.f32 %v673, %v2479
      %v2597 = vmul.f32 %v672, %v2484
      %v2598 = vmul.f32 %v671, %v2489
      %v2599 = vmul.f32 %v670, %v2494
      %v2600 = vmul.f32 %v669, %v2499
      %v2601 = vmul.f32 %v668, %v2504
      %v2602 = vmul.f32 %v667, %v2509
      %v2603 = vmul.f32 %v666, %v2514
      %v2604 = vmul.f32 %v665, %v2519
      %v2605 = vmul.f32 %v664, %v2524
      %v2606 = vmul.f32 %v663, %v2529
      %v2607 = vmul.f32 %v662, %v2534
      %v2608 = vmul.f32 %v661, %v2539
      %v2609 = vmul.f32 %v660, %v2544
      %v2610 = vmul.f32 %v659, %v2549
      %v2611 = vmul.f32 %v658, %v2554
      %v2612 = vmul.f32 %v657, %v2559
      %v2613 = vmul.f32 %v656, %v2564
      %v2614 = vmul.f32 %v655, %v2569
      %v2615 = vmul.f32 %v654, %v2574
      %v2616 = vmul.f32 %v685, %v2579
      %v2617 = vmul.f32 %v684, %v2584
      %v2618 = vpack.c.bf16 %v2587, %v2586
      %v2619 = vpack.c.bf16 %v2589, %v2588
      %v2620 = vpack.c.bf16 %v2591, %v2590
      %v2621 = vpack.c.bf16 %v2593, %v2592
      %v2622 = vpack.c.bf16 %v2595, %v2594
      %v2623 = vpack.c.bf16 %v2597, %v2596
      %v2624 = vpack.c.bf16 %v2599, %v2598
      %v2625 = vpack.c.bf16 %v2601, %v2600
      %v2626 = vpack.c.bf16 %v2603, %v2602
      %v2627 = vpack.c.bf16 %v2605, %v2604
      %v2628 = vpack.c.bf16 %v2607, %v2606
      %v2629 = vpack.c.bf16 %v2609, %v2608
      %v2630 = vpack.c.bf16 %v2611, %v2610
      %v2631 = vpack.c.bf16 %v2613, %v2612
      %v2632 = vpack.c.bf16 %v2615, %v2614
      %v2633 = vpack.c.bf16 %v2617, %v2616
      %2650 = vrot.lane.b32.xlu0 %v2618, 48
      %v2651 = vpop.permute.xlu0 %2650
      %2652 = vrot.lane.b32.xlu0 %v2619, 48
      %v2653 = vpop.permute.xlu0 %2652
      %2654 = vrot.lane.b32.xlu0 %v2620, 48
      %v2655 = vpop.permute.xlu0 %2654
      %2656 = vrot.lane.b32.xlu0 %v2621, 48
      %v2657 = vpop.permute.xlu0 %2656
      %2658 = vrot.lane.b32.xlu0 %v2622, 48
      %v2659 = vpop.permute.xlu0 %2658
      %2660 = vrot.lane.b32.xlu0 %v2623, 48
      %v2661 = vpop.permute.xlu0 %2660
      %2662 = vrot.lane.b32.xlu0 %v2624, 48
      %v2663 = vpop.permute.xlu0 %2662
      %2664 = vrot.lane.b32.xlu0 %v2625, 48
      %v2665 = vpop.permute.xlu0 %2664
      %2666 = vrot.lane.b32.xlu0 %v2626, 48
      %v2667 = vpop.permute.xlu0 %2666
      %2668 = vrot.lane.b32.xlu0 %v2627, 48
      %v2669 = vpop.permute.xlu0 %2668
      %2670 = vrot.lane.b32.xlu0 %v2628, 48
      %v2671 = vpop.permute.xlu0 %2670
      %2672 = vrot.lane.b32.xlu0 %v2629, 48
      %v2673 = vpop.permute.xlu0 %2672
      %2674 = vrot.lane.b32.xlu0 %v2630, 48
      %v2675 = vpop.permute.xlu0 %2674
      %2676 = vrot.lane.b32.xlu0 %v2631, 48
      %v2677 = vpop.permute.xlu0 %2676
      %2678 = vrot.lane.b32.xlu0 %v2632, 48
      %v2679 = vpop.permute.xlu0 %2678
      %2680 = vrot.lane.b32.xlu0 %v2633, 48
      %v2681 = vpop.permute.xlu0 %2680
      %vm2698 = vcmask 458112
      %2699 = vst.msk [vmem:[#allocation2] sm:$0xff] %vm2698, %v2651
      %2700 = vst.msk [vmem:[#allocation2 + $0x8] sm:$0xff] %vm2698, %v2653
      %2701 = vst.msk [vmem:[#allocation2 + $0x10] sm:$0xff] %vm2698, %v2655
      %2702 = vst.msk [vmem:[#allocation2 + $0x18] sm:$0xff] %vm2698, %v2657
      %2703 = vst.msk [vmem:[#allocation2 + $0x20] sm:$0xff] %vm2698, %v2659
      %2704 = vst.msk [vmem:[#allocation2 + $0x28] sm:$0xff] %vm2698, %v2661
      %2705 = vst.msk [vmem:[#allocation2 + $0x30] sm:$0xff] %vm2698, %v2663
      %2706 = vst.msk [vmem:[#allocation2 + $0x38] sm:$0xff] %vm2698, %v2665
      %2707 = vst.msk [vmem:[#allocation2 + $0x40] sm:$0xff] %vm2698, %v2667
      %2708 = vst.msk [vmem:[#allocation2 + $0x48] sm:$0xff] %vm2698, %v2669
      %2709 = vst.msk [vmem:[#allocation2 + $0x50] sm:$0xff] %vm2698, %v2671
      %2710 = vst.msk [vmem:[#allocation2 + $0x58] sm:$0xff] %vm2698, %v2673
      %2711 = vst.msk [vmem:[#allocation2 + $0x60] sm:$0xff] %vm2698, %v2675
      %2712 = vst.msk [vmem:[#allocation2 + $0x68] sm:$0xff] %vm2698, %v2677
      %2713 = vst.msk [vmem:[#allocation2 + $0x70] sm:$0xff] %vm2698, %v2679
      %2714 = vst.msk [vmem:[#allocation2 + $0x78] sm:$0xff] %vm2698, %v2681
      %s2715 = scalar_lea.vmem %s5, 1536
      %v2716 = vld [vmem:[%s2715] sm:$0xff]
      %v2717 = vld [vmem:[%s2715 + $0x8] sm:$0xff]
      %v2718 = vld [vmem:[%s2715 + $0x10] sm:$0xff]
      %v2719 = vld [vmem:[%s2715 + $0x18] sm:$0xff]
      %v2720 = vld [vmem:[%s2715 + $0x20] sm:$0xff]
      %v2721 = vld [vmem:[%s2715 + $0x28] sm:$0xff]
      %v2722 = vld [vmem:[%s2715 + $0x30] sm:$0xff]
      %v2723 = vld [vmem:[%s2715 + $0x38] sm:$0xff]
      %v2724 = vld [vmem:[%s2715 + $0x40] sm:$0xff]
      %v2725 = vld [vmem:[%s2715 + $0x48] sm:$0xff]
      %v2726 = vld [vmem:[%s2715 + $0x50] sm:$0xff]
      %v2727 = vld [vmem:[%s2715 + $0x58] sm:$0xff]
      %v2728 = vld [vmem:[%s2715 + $0x60] sm:$0xff]
      %v2729 = vld [vmem:[%s2715 + $0x68] sm:$0xff]
      %v2730 = vld [vmem:[%s2715 + $0x70] sm:$0xff]
      %v2731 = vld [vmem:[%s2715 + $0x78] sm:$0xff]
      %v2732 = vld [vmem:[%s2715 + $0x80] sm:$0xff]
      %v2733 = vld [vmem:[%s2715 + $0x88] sm:$0xff]
      %v2734 = vld [vmem:[%s2715 + $0x90] sm:$0xff]
      %v2735 = vld [vmem:[%s2715 + $0x98] sm:$0xff]
      %v2736 = vld [vmem:[%s2715 + $0xa0] sm:$0xff]
      %v2737 = vld [vmem:[%s2715 + $0xa8] sm:$0xff]
      %v2738 = vld [vmem:[%s2715 + $0xb0] sm:$0xff]
      %v2739 = vld [vmem:[%s2715 + $0xb8] sm:$0xff]
      %v2740 = vld [vmem:[%s2715 + $0xc0] sm:$0xff]
      %v2741 = vld [vmem:[%s2715 + $0xc8] sm:$0xff]
      %v2742 = vld [vmem:[%s2715 + $0xd0] sm:$0xff]
      %v2743 = vld [vmem:[%s2715 + $0xd8] sm:$0xff]
      %v2744 = vld [vmem:[%s2715 + $0xe0] sm:$0xff]
      %v2745 = vld [vmem:[%s2715 + $0xe8] sm:$0xff]
      %v2746 = vld [vmem:[%s2715 + $0xf0] sm:$0xff]
      %v2747 = vld [vmem:[%s2715 + $0xf8] sm:$0xff]
      %2749 = vset.pattern.permute.xlu0 0
      %2750 = vperm.xlu0 %2749, %v2716
      %v2751 = vpop.permute.xlu0 %2750
      %2754 = vset.pattern.permute.xlu0 0
      %2755 = vperm.xlu0 %2754, %v2717
      %v2756 = vpop.permute.xlu0 %2755
      %2759 = vset.pattern.permute.xlu0 0
      %2760 = vperm.xlu0 %2759, %v2718
      %v2761 = vpop.permute.xlu0 %2760
      %2764 = vset.pattern.permute.xlu0 0
      %2765 = vperm.xlu0 %2764, %v2719
      %v2766 = vpop.permute.xlu0 %2765
      %2769 = vset.pattern.permute.xlu0 0
      %2770 = vperm.xlu0 %2769, %v2720
      %v2771 = vpop.permute.xlu0 %2770
      %2774 = vset.pattern.permute.xlu0 0
      %2775 = vperm.xlu0 %2774, %v2721
      %v2776 = vpop.permute.xlu0 %2775
      %2779 = vset.pattern.permute.xlu0 0
      %2780 = vperm.xlu0 %2779, %v2722
      %v2781 = vpop.permute.xlu0 %2780
      %2784 = vset.pattern.permute.xlu0 0
      %2785 = vperm.xlu0 %2784, %v2723
      %v2786 = vpop.permute.xlu0 %2785
      %2789 = vset.pattern.permute.xlu0 0
      %2790 = vperm.xlu0 %2789, %v2724
      %v2791 = vpop.permute.xlu0 %2790
      %2794 = vset.pattern.permute.xlu0 0
      %2795 = vperm.xlu0 %2794, %v2725
      %v2796 = vpop.permute.xlu0 %2795
      %2799 = vset.pattern.permute.xlu0 0
      %2800 = vperm.xlu0 %2799, %v2726
      %v2801 = vpop.permute.xlu0 %2800
      %2804 = vset.pattern.permute.xlu0 0
      %2805 = vperm.xlu0 %2804, %v2727
      %v2806 = vpop.permute.xlu0 %2805
      %2809 = vset.pattern.permute.xlu0 0
      %2810 = vperm.xlu0 %2809, %v2728
      %v2811 = vpop.permute.xlu0 %2810
      %2814 = vset.pattern.permute.xlu0 0
      %2815 = vperm.xlu0 %2814, %v2729
      %v2816 = vpop.permute.xlu0 %2815
      %2819 = vset.pattern.permute.xlu0 0
      %2820 = vperm.xlu0 %2819, %v2730
      %v2821 = vpop.permute.xlu0 %2820
      %2824 = vset.pattern.permute.xlu0 0
      %2825 = vperm.xlu0 %2824, %v2731
      %v2826 = vpop.permute.xlu0 %2825
      %2829 = vset.pattern.permute.xlu0 0
      %2830 = vperm.xlu0 %2829, %v2732
      %v2831 = vpop.permute.xlu0 %2830
      %2834 = vset.pattern.permute.xlu0 0
      %2835 = vperm.xlu0 %2834, %v2733
      %v2836 = vpop.permute.xlu0 %2835
      %2839 = vset.pattern.permute.xlu0 0
      %2840 = vperm.xlu0 %2839, %v2734
      %v2841 = vpop.permute.xlu0 %2840
      %2844 = vset.pattern.permute.xlu0 0
      %2845 = vperm.xlu0 %2844, %v2735
      %v2846 = vpop.permute.xlu0 %2845
      %2849 = vset.pattern.permute.xlu0 0
      %2850 = vperm.xlu0 %2849, %v2736
      %v2851 = vpop.permute.xlu0 %2850
      %2854 = vset.pattern.permute.xlu0 0
      %2855 = vperm.xlu0 %2854, %v2737
      %v2856 = vpop.permute.xlu0 %2855
      %2859 = vset.pattern.permute.xlu0 0
      %2860 = vperm.xlu0 %2859, %v2738
      %v2861 = vpop.permute.xlu0 %2860
      %2864 = vset.pattern.permute.xlu0 0
      %2865 = vperm.xlu0 %2864, %v2739
      %v2866 = vpop.permute.xlu0 %2865
      %2869 = vset.pattern.permute.xlu0 0
      %2870 = vperm.xlu0 %2869, %v2740
      %v2871 = vpop.permute.xlu0 %2870
      %2874 = vset.pattern.permute.xlu0 0
      %2875 = vperm.xlu0 %2874, %v2741
      %v2876 = vpop.permute.xlu0 %2875
      %2879 = vset.pattern.permute.xlu0 0
      %2880 = vperm.xlu0 %2879, %v2742
      %v2881 = vpop.permute.xlu0 %2880
      %2884 = vset.pattern.permute.xlu0 0
      %2885 = vperm.xlu0 %2884, %v2743
      %v2886 = vpop.permute.xlu0 %2885
      %2889 = vset.pattern.permute.xlu0 0
      %2890 = vperm.xlu0 %2889, %v2744
      %v2891 = vpop.permute.xlu0 %2890
      %2894 = vset.pattern.permute.xlu0 0
      %2895 = vperm.xlu0 %2894, %v2745
      %v2896 = vpop.permute.xlu0 %2895
      %2899 = vset.pattern.permute.xlu0 0
      %2900 = vperm.xlu0 %2899, %v2746
      %v2901 = vpop.permute.xlu0 %2900
      %2904 = vset.pattern.permute.xlu0 0
      %2905 = vperm.xlu0 %2904, %v2747
      %v2906 = vpop.permute.xlu0 %2905
      %v2908 = vmul.f32 %v589, %v2751
      %v2909 = vmul.f32 %v590, %v2756
      %v2910 = vmul.f32 %v591, %v2761
      %v2911 = vmul.f32 %v592, %v2766
      %v2912 = vmul.f32 %v593, %v2771
      %v2913 = vmul.f32 %v594, %v2776
      %v2914 = vmul.f32 %v595, %v2781
      %v2915 = vmul.f32 %v596, %v2786
      %v2916 = vmul.f32 %v597, %v2791
      %v2917 = vmul.f32 %v598, %v2796
      %v2918 = vmul.f32 %v599, %v2801
      %v2919 = vmul.f32 %v600, %v2806
      %v2920 = vmul.f32 %v601, %v2811
      %v2921 = vmul.f32 %v602, %v2816
      %v2922 = vmul.f32 %v603, %v2821
      %v2923 = vmul.f32 %v604, %v2826
      %v2924 = vmul.f32 %v605, %v2831
      %v2925 = vmul.f32 %v606, %v2836
      %v2926 = vmul.f32 %v607, %v2841
      %v2927 = vmul.f32 %v608, %v2846
      %v2928 = vmul.f32 %v609, %v2851
      %v2929 = vmul.f32 %v610, %v2856
      %v2930 = vmul.f32 %v611, %v2861
      %v2931 = vmul.f32 %v612, %v2866
      %v2932 = vmul.f32 %v613, %v2871
      %v2933 = vmul.f32 %v614, %v2876
      %v2934 = vmul.f32 %v615, %v2881
      %v2935 = vmul.f32 %v616, %v2886
      %v2936 = vmul.f32 %v617, %v2891
      %v2937 = vmul.f32 %v618, %v2896
      %v2938 = vmul.f32 %v587, %v2901
      %v2939 = vmul.f32 %v588, %v2906
      %v2940 = vpack.c.bf16 %v2909, %v2908
      %v2941 = vpack.c.bf16 %v2911, %v2910
      %v2942 = vpack.c.bf16 %v2913, %v2912
      %v2943 = vpack.c.bf16 %v2915, %v2914
      %v2944 = vpack.c.bf16 %v2917, %v2916
      %v2945 = vpack.c.bf16 %v2919, %v2918
      %v2946 = vpack.c.bf16 %v2921, %v2920
      %v2947 = vpack.c.bf16 %v2923, %v2922
      %v2948 = vpack.c.bf16 %v2925, %v2924
      %v2949 = vpack.c.bf16 %v2927, %v2926
      %v2950 = vpack.c.bf16 %v2929, %v2928
      %v2951 = vpack.c.bf16 %v2931, %v2930
      %v2952 = vpack.c.bf16 %v2933, %v2932
      %v2953 = vpack.c.bf16 %v2935, %v2934
      %v2954 = vpack.c.bf16 %v2937, %v2936
      %v2955 = vpack.c.bf16 %v2939, %v2938
      %2972 = vrot.lane.b32.xlu0 %v2940, 56
      %v2973 = vpop.permute.xlu0 %2972
      %2974 = vrot.lane.b32.xlu0 %v2941, 56
      %v2975 = vpop.permute.xlu0 %2974
      %2976 = vrot.lane.b32.xlu0 %v2942, 56
      %v2977 = vpop.permute.xlu0 %2976
      %2978 = vrot.lane.b32.xlu0 %v2943, 56
      %v2979 = vpop.permute.xlu0 %2978
      %2980 = vrot.lane.b32.xlu0 %v2944, 56
      %v2981 = vpop.permute.xlu0 %2980
      %2982 = vrot.lane.b32.xlu0 %v2945, 56
      %v2983 = vpop.permute.xlu0 %2982
      %2984 = vrot.lane.b32.xlu0 %v2946, 56
      %v2985 = vpop.permute.xlu0 %2984
      %2986 = vrot.lane.b32.xlu0 %v2947, 56
      %v2987 = vpop.permute.xlu0 %2986
      %2988 = vrot.lane.b32.xlu0 %v2948, 56
      %v2989 = vpop.permute.xlu0 %2988
      %2990 = vrot.lane.b32.xlu0 %v2949, 56
      %v2991 = vpop.permute.xlu0 %2990
      %2992 = vrot.lane.b32.xlu0 %v2950, 56
      %v2993 = vpop.permute.xlu0 %2992
      %2994 = vrot.lane.b32.xlu0 %v2951, 56
      %v2995 = vpop.permute.xlu0 %2994
      %2996 = vrot.lane.b32.xlu0 %v2952, 56
      %v2997 = vpop.permute.xlu0 %2996
      %2998 = vrot.lane.b32.xlu0 %v2953, 56
      %v2999 = vpop.permute.xlu0 %2998
      %3000 = vrot.lane.b32.xlu0 %v2954, 56
      %v3001 = vpop.permute.xlu0 %3000
      %3002 = vrot.lane.b32.xlu0 %v2955, 56
      %v3003 = vpop.permute.xlu0 %3002
      %vm3020 = vcmask 523712
      %3021 = vst.msk [vmem:[#allocation2] sm:$0xff] %vm3020, %v2973
      %3022 = vst.msk [vmem:[#allocation2 + $0x8] sm:$0xff] %vm3020, %v2975
      %3023 = vst.msk [vmem:[#allocation2 + $0x10] sm:$0xff] %vm3020, %v2977
      %3024 = vst.msk [vmem:[#allocation2 + $0x18] sm:$0xff] %vm3020, %v2979
      %3025 = vst.msk [vmem:[#allocation2 + $0x20] sm:$0xff] %vm3020, %v2981
      %3026 = vst.msk [vmem:[#allocation2 + $0x28] sm:$0xff] %vm3020, %v2983
      %3027 = vst.msk [vmem:[#allocation2 + $0x30] sm:$0xff] %vm3020, %v2985
      %3028 = vst.msk [vmem:[#allocation2 + $0x38] sm:$0xff] %vm3020, %v2987
      %3029 = vst.msk [vmem:[#allocation2 + $0x40] sm:$0xff] %vm3020, %v2989
      %3030 = vst.msk [vmem:[#allocation2 + $0x48] sm:$0xff] %vm3020, %v2991
      %3031 = vst.msk [vmem:[#allocation2 + $0x50] sm:$0xff] %vm3020, %v2993
      %3032 = vst.msk [vmem:[#allocation2 + $0x58] sm:$0xff] %vm3020, %v2995
      %3033 = vst.msk [vmem:[#allocation2 + $0x60] sm:$0xff] %vm3020, %v2997
      %3034 = vst.msk [vmem:[#allocation2 + $0x68] sm:$0xff] %vm3020, %v2999
      %3035 = vst.msk [vmem:[#allocation2 + $0x70] sm:$0xff] %vm3020, %v3001
      %3036 = vst.msk [vmem:[#allocation2 + $0x78] sm:$0xff] %vm3020, %v3003
      %s3037 = scalar_lea.vmem %s5, 1792
      %v3038 = vld [vmem:[%s3037] sm:$0xff]
      %v3039 = vld [vmem:[%s3037 + $0x8] sm:$0xff]
      %v3040 = vld [vmem:[%s3037 + $0x10] sm:$0xff]
      %v3041 = vld [vmem:[%s3037 + $0x18] sm:$0xff]
      %v3042 = vld [vmem:[%s3037 + $0x20] sm:$0xff]
      %v3043 = vld [vmem:[%s3037 + $0x28] sm:$0xff]
      %v3044 = vld [vmem:[%s3037 + $0x30] sm:$0xff]
      %v3045 = vld [vmem:[%s3037 + $0x38] sm:$0xff]
      %v3046 = vld [vmem:[%s3037 + $0x40] sm:$0xff]
      %v3047 = vld [vmem:[%s3037 + $0x48] sm:$0xff]
      %v3048 = vld [vmem:[%s3037 + $0x50] sm:$0xff]
      %v3049 = vld [vmem:[%s3037 + $0x58] sm:$0xff]
      %v3050 = vld [vmem:[%s3037 + $0x60] sm:$0xff]
      %v3051 = vld [vmem:[%s3037 + $0x68] sm:$0xff]
      %v3052 = vld [vmem:[%s3037 + $0x70] sm:$0xff]
      %v3053 = vld [vmem:[%s3037 + $0x78] sm:$0xff]
      %v3054 = vld [vmem:[%s3037 + $0x80] sm:$0xff]
      %v3055 = vld [vmem:[%s3037 + $0x88] sm:$0xff]
      %v3056 = vld [vmem:[%s3037 + $0x90] sm:$0xff]
      %v3057 = vld [vmem:[%s3037 + $0x98] sm:$0xff]
      %v3058 = vld [vmem:[%s3037 + $0xa0] sm:$0xff]
      %v3059 = vld [vmem:[%s3037 + $0xa8] sm:$0xff]
      %v3060 = vld [vmem:[%s3037 + $0xb0] sm:$0xff]
      %v3061 = vld [vmem:[%s3037 + $0xb8] sm:$0xff]
      %v3062 = vld [vmem:[%s3037 + $0xc0] sm:$0xff]
      %v3063 = vld [vmem:[%s3037 + $0xc8] sm:$0xff]
      %v3064 = vld [vmem:[%s3037 + $0xd0] sm:$0xff]
      %v3065 = vld [vmem:[%s3037 + $0xd8] sm:$0xff]
      %v3066 = vld [vmem:[%s3037 + $0xe0] sm:$0xff]
      %v3067 = vld [vmem:[%s3037 + $0xe8] sm:$0xff]
      %v3068 = vld [vmem:[%s3037 + $0xf0] sm:$0xff]
      %v3069 = vld [vmem:[%s3037 + $0xf8] sm:$0xff]
      %3071 = vset.pattern.permute.xlu0 0
      %3072 = vperm.xlu0 %3071, %v3038
      %v3073 = vpop.permute.xlu0 %3072
      %3076 = vset.pattern.permute.xlu0 0
      %3077 = vperm.xlu0 %3076, %v3039
      %v3078 = vpop.permute.xlu0 %3077
      %3081 = vset.pattern.permute.xlu0 0
      %3082 = vperm.xlu0 %3081, %v3040
      %v3083 = vpop.permute.xlu0 %3082
      %3086 = vset.pattern.permute.xlu0 0
      %3087 = vperm.xlu0 %3086, %v3041
      %v3088 = vpop.permute.xlu0 %3087
      %3091 = vset.pattern.permute.xlu0 0
      %3092 = vperm.xlu0 %3091, %v3042
      %v3093 = vpop.permute.xlu0 %3092
      %3096 = vset.pattern.permute.xlu0 0
      %3097 = vperm.xlu0 %3096, %v3043
      %v3098 = vpop.permute.xlu0 %3097
      %3101 = vset.pattern.permute.xlu0 0
      %3102 = vperm.xlu0 %3101, %v3044
      %v3103 = vpop.permute.xlu0 %3102
      %3106 = vset.pattern.permute.xlu0 0
      %3107 = vperm.xlu0 %3106, %v3045
      %v3108 = vpop.permute.xlu0 %3107
      %3111 = vset.pattern.permute.xlu0 0
      %3112 = vperm.xlu0 %3111, %v3046
      %v3113 = vpop.permute.xlu0 %3112
      %3116 = vset.pattern.permute.xlu0 0
      %3117 = vperm.xlu0 %3116, %v3047
      %v3118 = vpop.permute.xlu0 %3117
      %3121 = vset.pattern.permute.xlu0 0
      %3122 = vperm.xlu0 %3121, %v3048
      %v3123 = vpop.permute.xlu0 %3122
      %3126 = vset.pattern.permute.xlu0 0
      %3127 = vperm.xlu0 %3126, %v3049
      %v3128 = vpop.permute.xlu0 %3127
      %3131 = vset.pattern.permute.xlu0 0
      %3132 = vperm.xlu0 %3131, %v3050
      %v3133 = vpop.permute.xlu0 %3132
      %3136 = vset.pattern.permute.xlu0 0
      %3137 = vperm.xlu0 %3136, %v3051
      %v3138 = vpop.permute.xlu0 %3137
      %3141 = vset.pattern.permute.xlu0 0
      %3142 = vperm.xlu0 %3141, %v3052
      %v3143 = vpop.permute.xlu0 %3142
      %3146 = vset.pattern.permute.xlu0 0
      %3147 = vperm.xlu0 %3146, %v3053
      %v3148 = vpop.permute.xlu0 %3147
      %3151 = vset.pattern.permute.xlu0 0
      %3152 = vperm.xlu0 %3151, %v3054
      %v3153 = vpop.permute.xlu0 %3152
      %3156 = vset.pattern.permute.xlu0 0
      %3157 = vperm.xlu0 %3156, %v3055
      %v3158 = vpop.permute.xlu0 %3157
      %3161 = vset.pattern.permute.xlu0 0
      %3162 = vperm.xlu0 %3161, %v3056
      %v3163 = vpop.permute.xlu0 %3162
      %3166 = vset.pattern.permute.xlu0 0
      %3167 = vperm.xlu0 %3166, %v3057
      %v3168 = vpop.permute.xlu0 %3167
      %3171 = vset.pattern.permute.xlu0 0
      %3172 = vperm.xlu0 %3171, %v3058
      %v3173 = vpop.permute.xlu0 %3172
      %3176 = vset.pattern.permute.xlu0 0
      %3177 = vperm.xlu0 %3176, %v3059
      %v3178 = vpop.permute.xlu0 %3177
      %3181 = vset.pattern.permute.xlu0 0
      %3182 = vperm.xlu0 %3181, %v3060
      %v3183 = vpop.permute.xlu0 %3182
      %3186 = vset.pattern.permute.xlu0 0
      %3187 = vperm.xlu0 %3186, %v3061
      %v3188 = vpop.permute.xlu0 %3187
      %3191 = vset.pattern.permute.xlu0 0
      %3192 = vperm.xlu0 %3191, %v3062
      %v3193 = vpop.permute.xlu0 %3192
      %3196 = vset.pattern.permute.xlu0 0
      %3197 = vperm.xlu0 %3196, %v3063
      %v3198 = vpop.permute.xlu0 %3197
      %3201 = vset.pattern.permute.xlu0 0
      %3202 = vperm.xlu0 %3201, %v3064
      %v3203 = vpop.permute.xlu0 %3202
      %3206 = vset.pattern.permute.xlu0 0
      %3207 = vperm.xlu0 %3206, %v3065
      %v3208 = vpop.permute.xlu0 %3207
      %3211 = vset.pattern.permute.xlu0 0
      %3212 = vperm.xlu0 %3211, %v3066
      %v3213 = vpop.permute.xlu0 %3212
      %3216 = vset.pattern.permute.xlu0 0
      %3217 = vperm.xlu0 %3216, %v3067
      %v3218 = vpop.permute.xlu0 %3217
      %3221 = vset.pattern.permute.xlu0 0
      %3222 = vperm.xlu0 %3221, %v3068
      %v3223 = vpop.permute.xlu0 %3222
      %3226 = vset.pattern.permute.xlu0 0
      %3227 = vperm.xlu0 %3226, %v3069
      %v3228 = vpop.permute.xlu0 %3227
      %v3230 = vmul.f32 %v1326, %v3073
      %v3231 = vmul.f32 %v1325, %v3078
      %v3232 = vmul.f32 %v1324, %v3083
      %v3233 = vmul.f32 %v1323, %v3088
      %v3234 = vmul.f32 %v1322, %v3093
      %v3235 = vmul.f32 %v1321, %v3098
      %v3236 = vmul.f32 %v1320, %v3103
      %v3237 = vmul.f32 %v1319, %v3108
      %v3238 = vmul.f32 %v1318, %v3113
      %v3239 = vmul.f32 %v1317, %v3118
      %v3240 = vmul.f32 %v1316, %v3123
      %v3241 = vmul.f32 %v1315, %v3128
      %v3242 = vmul.f32 %v1314, %v3133
      %v3243 = vmul.f32 %v1313, %v3138
      %v3244 = vmul.f32 %v1312, %v3143
      %v3245 = vmul.f32 %v1311, %v3148
      %v3246 = vmul.f32 %v1310, %v3153
      %v3247 = vmul.f32 %v1309, %v3158
      %v3248 = vmul.f32 %v1308, %v3163
      %v3249 = vmul.f32 %v1307, %v3168
      %v3250 = vmul.f32 %v1306, %v3173
      %v3251 = vmul.f32 %v1305, %v3178
      %v3252 = vmul.f32 %v1304, %v3183
      %v3253 = vmul.f32 %v1303, %v3188
      %v3254 = vmul.f32 %v1302, %v3193
      %v3255 = vmul.f32 %v1301, %v3198
      %v3256 = vmul.f32 %v1300, %v3203
      %v3257 = vmul.f32 %v1299, %v3208
      %v3258 = vmul.f32 %v1298, %v3213
      %v3259 = vmul.f32 %v1329, %v3218
      %v3260 = vmul.f32 %v1328, %v3223
      %v3261 = vmul.f32 %v1327, %v3228
      %v3262 = vpack.c.bf16 %v3231, %v3230
      %v3263 = vpack.c.bf16 %v3233, %v3232
      %v3264 = vpack.c.bf16 %v3235, %v3234
      %v3265 = vpack.c.bf16 %v3237, %v3236
      %v3266 = vpack.c.bf16 %v3239, %v3238
      %v3267 = vpack.c.bf16 %v3241, %v3240
      %v3268 = vpack.c.bf16 %v3243, %v3242
      %v3269 = vpack.c.bf16 %v3245, %v3244
      %v3270 = vpack.c.bf16 %v3247, %v3246
      %v3271 = vpack.c.bf16 %v3249, %v3248
      %v3272 = vpack.c.bf16 %v3251, %v3250
      %v3273 = vpack.c.bf16 %v3253, %v3252
      %v3274 = vpack.c.bf16 %v3255, %v3254
      %v3275 = vpack.c.bf16 %v3257, %v3256
      %v3276 = vpack.c.bf16 %v3259, %v3258
      %v3277 = vpack.c.bf16 %v3261, %v3260
      %3294 = vrot.lane.b32.xlu0 %v3262, 64
      %v3295 = vpop.permute.xlu0 %3294
      %3296 = vrot.lane.b32.xlu0 %v3263, 64
      %v3297 = vpop.permute.xlu0 %3296
      %3298 = vrot.lane.b32.xlu0 %v3264, 64
      %v3299 = vpop.permute.xlu0 %3298
      %3300 = vrot.lane.b32.xlu0 %v3265, 64
      %v3301 = vpop.permute.xlu0 %3300
      %3302 = vrot.lane.b32.xlu0 %v3266, 64
      %v3303 = vpop.permute.xlu0 %3302
      %3304 = vrot.lane.b32.xlu0 %v3267, 64
      %v3305 = vpop.permute.xlu0 %3304
      %3306 = vrot.lane.b32.xlu0 %v3268, 64
      %v3307 = vpop.permute.xlu0 %3306
      %3308 = vrot.lane.b32.xlu0 %v3269, 64
      %v3309 = vpop.permute.xlu0 %3308
      %3310 = vrot.lane.b32.xlu0 %v3270, 64
      %v3311 = vpop.permute.xlu0 %3310
      %3312 = vrot.lane.b32.xlu0 %v3271, 64
      %v3313 = vpop.permute.xlu0 %3312
      %3314 = vrot.lane.b32.xlu0 %v3272, 64
      %v3315 = vpop.permute.xlu0 %3314
      %3316 = vrot.lane.b32.xlu0 %v3273, 64
      %v3317 = vpop.permute.xlu0 %3316
      %3318 = vrot.lane.b32.xlu0 %v3274, 64
      %v3319 = vpop.permute.xlu0 %3318
      %3320 = vrot.lane.b32.xlu0 %v3275, 64
      %v3321 = vpop.permute.xlu0 %3320
      %3322 = vrot.lane.b32.xlu0 %v3276, 64
      %v3323 = vpop.permute.xlu0 %3322
      %3324 = vrot.lane.b32.xlu0 %v3277, 64
      %v3325 = vpop.permute.xlu0 %3324
      %vm3342 = vcmask 589312
      %3343 = vst.msk [vmem:[#allocation2] sm:$0xff] %vm3342, %v3295
      %3344 = vst.msk [vmem:[#allocation2 + $0x8] sm:$0xff] %vm3342, %v3297
      %3345 = vst.msk [vmem:[#allocation2 + $0x10] sm:$0xff] %vm3342, %v3299
      %3346 = vst.msk [vmem:[#allocation2 + $0x18] sm:$0xff] %vm3342, %v3301
      %3347 = vst.msk [vmem:[#allocation2 + $0x20] sm:$0xff] %vm3342, %v3303
      %3348 = vst.msk [vmem:[#allocation2 + $0x28] sm:$0xff] %vm3342, %v3305
      %3349 = vst.msk [vmem:[#allocation2 + $0x30] sm:$0xff] %vm3342, %v3307
      %3350 = vst.msk [vmem:[#allocation2 + $0x38] sm:$0xff] %vm3342, %v3309
      %3351 = vst.msk [vmem:[#allocation2 + $0x40] sm:$0xff] %vm3342, %v3311
      %3352 = vst.msk [vmem:[#allocation2 + $0x48] sm:$0xff] %vm3342, %v3313
      %3353 = vst.msk [vmem:[#allocation2 + $0x50] sm:$0xff] %vm3342, %v3315
      %3354 = vst.msk [vmem:[#allocation2 + $0x58] sm:$0xff] %vm3342, %v3317
      %3355 = vst.msk [vmem:[#allocation2 + $0x60] sm:$0xff] %vm3342, %v3319
      %3356 = vst.msk [vmem:[#allocation2 + $0x68] sm:$0xff] %vm3342, %v3321
      %3357 = vst.msk [vmem:[#allocation2 + $0x70] sm:$0xff] %vm3342, %v3323
      %3358 = vst.msk [vmem:[#allocation2 + $0x78] sm:$0xff] %vm3342, %v3325
      %v3359 = vld [vmem:[#allocation2] sm:$0xff]
      %v3360 = vld [vmem:[#allocation2 + $0x8] sm:$0xff]
      %v3361 = vld [vmem:[#allocation2 + $0x10] sm:$0xff]
      %v3362 = vld [vmem:[#allocation2 + $0x18] sm:$0xff]
      %v3363 = vld [vmem:[#allocation2 + $0x20] sm:$0xff]
      %v3364 = vld [vmem:[#allocation2 + $0x28] sm:$0xff]
      %v3365 = vld [vmem:[#allocation2 + $0x30] sm:$0xff]
      %v3366 = vld [vmem:[#allocation2 + $0x38] sm:$0xff]
      %v3367 = vld [vmem:[#allocation2 + $0x40] sm:$0xff]
      %v3368 = vld [vmem:[#allocation2 + $0x48] sm:$0xff]
      %v3369 = vld [vmem:[#allocation2 + $0x50] sm:$0xff]
      %v3370 = vld [vmem:[#allocation2 + $0x58] sm:$0xff]
      %v3371 = vld [vmem:[#allocation2 + $0x60] sm:$0xff]
      %v3372 = vld [vmem:[#allocation2 + $0x68] sm:$0xff]
      %v3373 = vld [vmem:[#allocation2 + $0x70] sm:$0xff]
      %v3374 = vld [vmem:[#allocation2 + $0x78] sm:$0xff]
      %v3375 = vld [vmem:[%s3] sm:$0xf]
      %v3376 = vld [vmem:[%s3 + $0x4] sm:$0xf]
      %v3377 = vld [vmem:[%s3 + $0x8] sm:$0xf]
      %v3378 = vld [vmem:[%s3 + $0xc] sm:$0xf]
      %v3379 = vld [vmem:[%s3 + $0x10] sm:$0xf]
      %v3380 = vld [vmem:[%s3 + $0x14] sm:$0xf]
      %v3381 = vld [vmem:[%s3 + $0x18] sm:$0xf]
      %v3382 = vld [vmem:[%s3 + $0x1c] sm:$0xf]
      %v3383 = vld [vmem:[%s3 + $0x20] sm:$0xf]
      %v3384 = vld [vmem:[%s4] sm:$0x1]
      %v3386 = vlaneseq
      %v3387 = vshrl.u32 %v3386, 7
      %v3388 = vsub.s32 0, %v3387
      %v3389 = vrot.slane %v3384, %v3388
      %v3400 = vunpack.c.l.b16 %v3375
      %v3401 = vunpack.c.l.b16 %v3376
      %v3402 = vunpack.c.l.b16 %v3377
      %v3403 = vunpack.c.l.b16 %v3378
      %v3404 = vunpack.c.l.b16 %v3379
      %v3405 = vunpack.c.l.b16 %v3380
      %v3406 = vunpack.c.l.b16 %v3381
      %v3407 = vunpack.c.l.b16 %v3382
      %v3408 = vunpack.c.l.b16 %v3383
      %v3409 = vpack.c.b16 %v3401, %v3400
      %v3410 = vpack.c.b16 %v3403, %v3402
      %v3411 = vpack.c.b16 %v3405, %v3404
      %v3412 = vpack.c.b16 %v3407, %v3406
      %v3413 = vpack.c.b16 %v3408, %v3408
      %vm3418 = vcmask 588800
      %v3420 = vsel %vm3418, %v3359, 0
      %v3423 = vsel %vm3418, %v3360, 0
      %v3426 = vsel %vm3418, %v3361, 0
      %v3429 = vsel %vm3418, %v3362, 0
      %v3432 = vsel %vm3418, %v3363, 0
      %v3435 = vsel %vm3418, %v3364, 0
      %v3438 = vsel %vm3418, %v3365, 0
      %v3441 = vsel %vm3418, %v3366, 0
      %v3444 = vsel %vm3418, %v3367, 0
      %v3447 = vsel %vm3418, %v3368, 0
      %v3450 = vsel %vm3418, %v3369, 0
      %v3453 = vsel %vm3418, %v3370, 0
      %v3456 = vsel %vm3418, %v3371, 0
      %v3459 = vsel %vm3418, %v3372, 0
      %v3462 = vsel %vm3418, %v3373, 0
      %v3465 = vsel %vm3418, %v3374, 0
      %vm3467 = vcmask 1043456
      %v3469 = vsel %vm3467, %v3413, 0
      %3471 = vmatprep.subr.bf16.mxu0 0
      %3472 = vmatpush1.bf16.msra.mxu0 %v3409
      %3473 = vmatprep.subr.bf16.mxu0 0
      %3474 = vmatpush1.bf16.msra.mxu0 %v3410
      %3475 = vmatprep.subr.bf16.mxu0 0
      %3476 = vmatpush1.bf16.msra.mxu0 %v3411
      %3477 = vmatprep.subr.bf16.mxu0 0
      %3478 = vmatpush1.bf16.msra.mxu0 %v3412
      %3479 = vmatprep.subr.bf16.mxu0 0
      %3480 = vmatpush1.bf16.msra.mxu0 %v3469
      %3481 = vmatprep.subr.bf16.mxu0 0
      %3482 = vmatpush1.bf16.msra.mxu0 0
      %3483 = vmatprep.subr.bf16.mxu0 0
      %3484 = vmatpush1.bf16.msra.mxu0 0
      %3485 = vmatprep.subr.bf16.mxu0 0
      %3486 = vmatpush1.bf16.msra.mxu0 0
      %3487 = vmatprep.subr.bf16.mxu0 0
      %3488 = vmatpush1.bf16.msra.mxu0 0
      %3489 = vmatprep.subr.bf16.mxu0 0
      %3490 = vmatpush1.bf16.msra.mxu0 0
      %3491 = vmatprep.subr.bf16.mxu0 0
      %3492 = vmatpush1.bf16.msra.mxu0 0
      %3493 = vmatprep.subr.bf16.mxu0 0
      %3494 = vmatpush1.bf16.msra.mxu0 0
      %3495 = vmatprep.subr.bf16.mxu0 0
      %3496 = vmatpush1.bf16.msra.mxu0 0
      %3497 = vmatprep.subr.bf16.mxu0 0
      %3498 = vmatpush1.bf16.msra.mxu0 0
      %3499 = vmatprep.subr.bf16.mxu0 0
      %3500 = vmatpush1.bf16.msra.mxu0 0
      %3501 = vmatprep.subr.bf16.mxu0 0
      %3502 = vmatpush1.bf16.msra.mxu0 0
      %3503 = vmatprep.mubr.bf16.mxu0 0
      %3504 = vmatmul.mubr.bf16.gmra.mrb[0].mxu0 %v3420
      %v3505 = vpop.f32.mrb[0].mxu0
      %v3506 = vadd.f32 %v3389, %v3505
      %v3507 = vpop.f32.mrb[0].mxu0
      %v3508 = vpop.f32.mrb[0].mxu0
      %v3509 = vadd.f32 %v3389, %v3508
      %v3510 = vpop.f32.mrb[0].mxu0
      %3511 = vmatprep.mubr.bf16.mxu0 0
      %3512 = vmatmul.mubr.bf16.gmra.mrb[0].mxu0 %v3423
      %v3513 = vpop.f32.mrb[0].mxu0
      %v3514 = vadd.f32 %v3389, %v3513
      %v3515 = vpop.f32.mrb[0].mxu0
      %v3516 = vpop.f32.mrb[0].mxu0
      %v3517 = vadd.f32 %v3389, %v3516
      %v3518 = vpop.f32.mrb[0].mxu0
      %3519 = vmatprep.mubr.bf16.mxu0 0
      %3520 = vmatmul.mubr.bf16.gmra.mrb[0].mxu0 %v3426
      %v3521 = vpop.f32.mrb[0].mxu0
      %v3522 = vadd.f32 %v3389, %v3521
      %v3523 = vpop.f32.mrb[0].mxu0
      %v3524 = vpop.f32.mrb[0].mxu0
      %v3525 = vadd.f32 %v3389, %v3524
      %v3526 = vpop.f32.mrb[0].mxu0
      %3527 = vmatprep.mubr.bf16.mxu0 0
      %3528 = vmatmul.mubr.bf16.gmra.mrb[0].mxu0 %v3429
      %v3529 = vpop.f32.mrb[0].mxu0
      %v3530 = vadd.f32 %v3389, %v3529
      %v3531 = vpop.f32.mrb[0].mxu0
      %v3532 = vpop.f32.mrb[0].mxu0
      %v3533 = vadd.f32 %v3389, %v3532
      %v3534 = vpop.f32.mrb[0].mxu0
      %3535 = vmatprep.mubr.bf16.mxu0 0
      %3536 = vmatmul.mubr.bf16.gmra.mrb[0].mxu0 %v3432
      %v3537 = vpop.f32.mrb[0].mxu0
      %v3538 = vadd.f32 %v3389, %v3537
      %v3539 = vpop.f32.mrb[0].mxu0
      %v3540 = vpop.f32.mrb[0].mxu0
      %v3541 = vadd.f32 %v3389, %v3540
      %v3542 = vpop.f32.mrb[0].mxu0
      %3543 = vmatprep.mubr.bf16.mxu0 0
      %3544 = vmatmul.mubr.bf16.gmra.mrb[0].mxu0 %v3435
      %v3545 = vpop.f32.mrb[0].mxu0
      %v3546 = vadd.f32 %v3389, %v3545
      %v3547 = vpop.f32.mrb[0].mxu0
      %v3548 = vpop.f32.mrb[0].mxu0
      %v3549 = vadd.f32 %v3389, %v3548
      %v3550 = vpop.f32.mrb[0].mxu0
      %3551 = vmatprep.mubr.bf16.mxu0 0
      %3552 = vmatmul.mubr.bf16.gmra.mrb[0].mxu0 %v3438
      %v3553 = vpop.f32.mrb[0].mxu0
      %v3554 = vadd.f32 %v3389, %v3553
      %v3555 = vpop.f32.mrb[0].mxu0
      %v3556 = vpop.f32.mrb[0].mxu0
      %v3557 = vadd.f32 %v3389, %v3556
      %v3558 = vpop.f32.mrb[0].mxu0
      %3559 = vmatprep.mubr.bf16.mxu0 0
      %3560 = vmatmul.mubr.bf16.gmra.mrb[0].mxu0 %v3441
      %v3561 = vpop.f32.mrb[0].mxu0
      %v3562 = vadd.f32 %v3389, %v3561
      %v3563 = vpop.f32.mrb[0].mxu0
      %v3564 = vpop.f32.mrb[0].mxu0
      %v3565 = vadd.f32 %v3389, %v3564
      %v3566 = vpop.f32.mrb[0].mxu0
      %3567 = vmatprep.mubr.bf16.mxu0 0
      %3568 = vmatmul.mubr.bf16.gmra.mrb[0].mxu0 %v3444
      %v3569 = vpop.f32.mrb[0].mxu0
      %v3570 = vadd.f32 %v3389, %v3569
      %v3571 = vpop.f32.mrb[0].mxu0
      %v3572 = vpop.f32.mrb[0].mxu0
      %v3573 = vadd.f32 %v3389, %v3572
      %v3574 = vpop.f32.mrb[0].mxu0
      %3575 = vmatprep.mubr.bf16.mxu0 0
      %3576 = vmatmul.mubr.bf16.gmra.mrb[0].mxu0 %v3447
      %v3577 = vpop.f32.mrb[0].mxu0
      %v3578 = vadd.f32 %v3389, %v3577
      %v3579 = vpop.f32.mrb[0].mxu0
      %v3580 = vpop.f32.mrb[0].mxu0
      %v3581 = vadd.f32 %v3389, %v3580
      %v3582 = vpop.f32.mrb[0].mxu0
      %3583 = vmatprep.mubr.bf16.mxu0 0
      %3584 = vmatmul.mubr.bf16.gmra.mrb[0].mxu0 %v3450
      %v3585 = vpop.f32.mrb[0].mxu0
      %v3586 = vadd.f32 %v3389, %v3585
      %v3587 = vpop.f32.mrb[0].mxu0
      %v3588 = vpop.f32.mrb[0].mxu0
      %v3589 = vadd.f32 %v3389, %v3588
      %v3590 = vpop.f32.mrb[0].mxu0
      %3591 = vmatprep.mubr.bf16.mxu0 0
      %3592 = vmatmul.mubr.bf16.gmra.mrb[0].mxu0 %v3453
      %v3593 = vpop.f32.mrb[0].mxu0
      %v3594 = vadd.f32 %v3389, %v3593
      %v3595 = vpop.f32.mrb[0].mxu0
      %v3596 = vpop.f32.mrb[0].mxu0
      %v3597 = vadd.f32 %v3389, %v3596
      %v3598 = vpop.f32.mrb[0].mxu0
      %3599 = vmatprep.mubr.bf16.mxu0 0
      %3600 = vmatmul.mubr.bf16.gmra.mrb[0].mxu0 %v3456
      %v3601 = vpop.f32.mrb[0].mxu0
      %v3602 = vadd.f32 %v3389, %v3601
      %v3603 = vpop.f32.mrb[0].mxu0
      %v3604 = vpop.f32.mrb[0].mxu0
      %v3605 = vadd.f32 %v3389, %v3604
      %v3606 = vpop.f32.mrb[0].mxu0
      %3607 = vmatprep.mubr.bf16.mxu0 0
      %3608 = vmatmul.mubr.bf16.gmra.mrb[0].mxu0 %v3459
      %v3609 = vpop.f32.mrb[0].mxu0
      %v3610 = vadd.f32 %v3389, %v3609
      %v3611 = vpop.f32.mrb[0].mxu0
      %v3612 = vpop.f32.mrb[0].mxu0
      %v3613 = vadd.f32 %v3389, %v3612
      %v3614 = vpop.f32.mrb[0].mxu0
      %3615 = vmatprep.mubr.bf16.mxu0 0
      %3616 = vmatmul.mubr.bf16.gmra.mrb[0].mxu0 %v3462
      %v3617 = vpop.f32.mrb[0].mxu0
      %v3618 = vadd.f32 %v3389, %v3617
      %v3619 = vpop.f32.mrb[0].mxu0
      %v3620 = vpop.f32.mrb[0].mxu0
      %v3621 = vadd.f32 %v3389, %v3620
      %v3622 = vpop.f32.mrb[0].mxu0
      %3623 = vmatprep.mubr.bf16.mxu0 0
      %3624 = vmatmul.mubr.bf16.gmra.mrb[0].mxu0 %v3465
      %v3625 = vpop.f32.mrb[0].mxu0
      %v3626 = vadd.f32 %v3389, %v3625
      %v3627 = vpop.f32.mrb[0].mxu0
      %v3628 = vpop.f32.mrb[0].mxu0
      %v3629 = vadd.f32 %v3389, %v3628
      %v3630 = vpop.f32.mrb[0].mxu0
      %3631 = vdwg.mxu0
      %v3632 = vmax.f32 %v3506, 0.0
      %v3633 = vmax.f32 %v3509, 0.0
      %v3634 = vmax.f32 %v3514, 0.0
      %v3635 = vmax.f32 %v3517, 0.0
      %v3636 = vmax.f32 %v3522, 0.0
      %v3637 = vmax.f32 %v3525, 0.0
      %v3638 = vmax.f32 %v3530, 0.0
      %v3639 = vmax.f32 %v3533, 0.0
      %v3640 = vmax.f32 %v3538, 0.0
      %v3641 = vmax.f32 %v3541, 0.0
      %v3642 = vmax.f32 %v3546, 0.0
      %v3643 = vmax.f32 %v3549, 0.0
      %v3644 = vmax.f32 %v3554, 0.0
      %v3645 = vmax.f32 %v3557, 0.0
      %v3646 = vmax.f32 %v3562, 0.0
      %v3647 = vmax.f32 %v3565, 0.0
      %v3648 = vmax.f32 %v3570, 0.0
      %v3649 = vmax.f32 %v3573, 0.0
      %v3650 = vmax.f32 %v3578, 0.0
      %v3651 = vmax.f32 %v3581, 0.0
      %v3652 = vmax.f32 %v3586, 0.0
      %v3653 = vmax.f32 %v3589, 0.0
      %v3654 = vmax.f32 %v3594, 0.0
      %v3655 = vmax.f32 %v3597, 0.0
      %v3656 = vmax.f32 %v3602, 0.0
      %v3657 = vmax.f32 %v3605, 0.0
      %v3658 = vmax.f32 %v3610, 0.0
      %v3659 = vmax.f32 %v3613, 0.0
      %v3660 = vmax.f32 %v3618, 0.0
      %v3661 = vmax.f32 %v3621, 0.0
      %v3662 = vmax.f32 %v3626, 0.0
      %v3663 = vmax.f32 %v3629, 0.0
      %vm3664 = vcmask 130048
      %3665 = vst.msk [vmem:[%s251] sm:$0xff] %vm3664, %v3632
      %3666 = vst.msk [vmem:[%s251 + $0x8] sm:$0xff] %vm3664, %v3633
      %3667 = vst.msk [vmem:[%s251 + $0x10] sm:$0xff] %vm3664, %v3634
      %3668 = vst.msk [vmem:[%s251 + $0x18] sm:$0xff] %vm3664, %v3635
      %3669 = vst.msk [vmem:[%s251 + $0x20] sm:$0xff] %vm3664, %v3636
      %3670 = vst.msk [vmem:[%s251 + $0x28] sm:$0xff] %vm3664, %v3637
      %3671 = vst.msk [vmem:[%s251 + $0x30] sm:$0xff] %vm3664, %v3638
      %3672 = vst.msk [vmem:[%s251 + $0x38] sm:$0xff] %vm3664, %v3639
      %3673 = vst.msk [vmem:[%s251 + $0x40] sm:$0xff] %vm3664, %v3640
      %3674 = vst.msk [vmem:[%s251 + $0x48] sm:$0xff] %vm3664, %v3641
      %3675 = vst.msk [vmem:[%s251 + $0x50] sm:$0xff] %vm3664, %v3642
      %3676 = vst.msk [vmem:[%s251 + $0x58] sm:$0xff] %vm3664, %v3643
      %3677 = vst.msk [vmem:[%s251 + $0x60] sm:$0xff] %vm3664, %v3644
      %3678 = vst.msk [vmem:[%s251 + $0x68] sm:$0xff] %vm3664, %v3645
      %3679 = vst.msk [vmem:[%s251 + $0x70] sm:$0xff] %vm3664, %v3646
      %3680 = vst.msk [vmem:[%s251 + $0x78] sm:$0xff] %vm3664, %v3647
      %3681 = vst.msk [vmem:[%s251 + $0x80] sm:$0xff] %vm3664, %v3648
      %3682 = vst.msk [vmem:[%s251 + $0x88] sm:$0xff] %vm3664, %v3649
      %3683 = vst.msk [vmem:[%s251 + $0x90] sm:$0xff] %vm3664, %v3650
      %3684 = vst.msk [vmem:[%s251 + $0x98] sm:$0xff] %vm3664, %v3651
      %3685 = vst.msk [vmem:[%s251 + $0xa0] sm:$0xff] %vm3664, %v3652
      %3686 = vst.msk [vmem:[%s251 + $0xa8] sm:$0xff] %vm3664, %v3653
      %3687 = vst.msk [vmem:[%s251 + $0xb0] sm:$0xff] %vm3664, %v3654
      %3688 = vst.msk [vmem:[%s251 + $0xb8] sm:$0xff] %vm3664, %v3655
      %3689 = vst.msk [vmem:[%s251 + $0xc0] sm:$0xff] %vm3664, %v3656
      %3690 = vst.msk [vmem:[%s251 + $0xc8] sm:$0xff] %vm3664, %v3657
      %3691 = vst.msk [vmem:[%s251 + $0xd0] sm:$0xff] %vm3664, %v3658
      %3692 = vst.msk [vmem:[%s251 + $0xd8] sm:$0xff] %vm3664, %v3659
      %3693 = vst.msk [vmem:[%s251 + $0xe0] sm:$0xff] %vm3664, %v3660
      %3694 = vst.msk [vmem:[%s251 + $0xe8] sm:$0xff] %vm3664, %v3661
      %3695 = vst.msk [vmem:[%s251 + $0xf0] sm:$0xff] %vm3664, %v3662
      %3696 = vst.msk [vmem:[%s251 + $0xf8] sm:$0xff] %vm3664, %v3663
      %p3697 = scmp.lt.s32.totalorder %s17, 1
      %s3698 = scalar_select %p3697, %s17, 1
      %s3699 = smul.addr %s3698, 32
      %s3700 = smul.addr %s3699, 8
      %s3701 = scalar_lea.vmem %s6, %s3700
      // Predicated region
      $region45: #{tpu_custom_call.1} parent=43 // pred_check
        %p3702 = pneg %p166
      $region46: #{tpu_custom_call.1} parent=43 // pred_check_branch
        %3704 = sbr.rel (%p3702) target = $region48
      $region47: #{tpu_custom_call.1} parent=43 // pred_region
        _
      $region48: #{tpu_custom_call.1} parent=43 // pred_fallthru
        _
    $region44: #{tpu_custom_call.1} parent=5 // pred_fallthru
      _
    %p3705 = scmp.le.s32.totalorder 2, %s12
    // Predicated region
    $region49: #{tpu_custom_call.1} parent=5 // pred_check
      %p3706 = pneg %p3705
    $region50: #{tpu_custom_call.1} parent=5 // pred_check_branch
      %3708 = sbr.rel (%p3706) target = $region52
    $region51: #{tpu_custom_call.1} parent=5 // pred_region
      %s3709 = ssub.s32 %s12, 2
      // Predicated region
      $region53: #{tpu_custom_call.1} parent=51 // pred_check
        %p3710 = pneg %p172
      $region54: #{tpu_custom_call.1} parent=51 // pred_check_branch
        %3712 = sbr.rel (%p3710) target = $region56
      $region55: #{tpu_custom_call.1} parent=51 // pred_region
        %p3713 = scmp.lt.s32.totalorder %s18, 1
        %s3714 = scalar_select %p3713, %s18, 1
        %s3715 = smul.addr %s3714, 32
        %s3716 = smul.addr %s3715, 8
        %s3717 = scalar_lea.vmem %s6, %s3716
      $region56: #{tpu_custom_call.1} parent=51 // pred_fallthru
        _
    $region52: #{tpu_custom_call.1} parent=5 // pred_fallthru
      _
  $region6: #{tpu_custom_call.1} parent=0 // loop_footer
    %s16 = sadd.s32 1, %s12
  $region7: #{tpu_custom_call.1} parent=0 // loop_footer_branch
    %11 = sbr.rel target = $region3
  $region8: #{tpu_custom_call.1} parent=0 // loop_exit
    _

</llo_original>
